<compile_context>
chip_gen: v5e
topology: v5e:2x2
jax: 0.10.0
libtpu: 0.0.40
codegen_flags: <defaults>
</compile_context>

<pallas_src>
import functools
import math

import jax
import jax.numpy as jnp
from jax.experimental import pallas as pl
from jax.experimental.pallas import tpu as pltpu

CONV1_OUT = 128      # conv1: Conv2d(3, 128, 1)
FC1_OUT = 128        # fc1:   Linear(., 128)
OUT_FEATURES = 10    # fc2:   Linear(128, 10)

# Per-step fc1-weight block budget.  4 MiB -> double-buffered pair is 8 MiB,
# comfortably inside v7x's 64 MiB VMEM (and v5e/v6e defaults), while the per-step
# DMA (several us) hides the ~0.35 us grid-step overhead on every generation.
_WFC1_BLOCK_BUDGET = 4 << 20


def _choose_chunk(hw, cc=CONV1_OUT, fh=FC1_OUT, dtype_bytes=4):
    """Returns (chunk, hw_pad): spatial positions per grid step and the
    (possibly zero-padded) spatial extent the kernel iterates over."""
    max_chunk = max(8, _WFC1_BLOCK_BUDGET // (cc * fh * dtype_bytes))   # e.g. 64
    max_chunk -= max_chunk % 8
    if hw <= max_chunk:
        return hw, hw                      # single grid step, no padding
    # Largest multiple of 8 (sublane-aligned) that divides hw and fits budget.
    for c in range(max_chunk, 0, -8):
        if hw % c == 0:
            return c, hw
    # No clean divisor (prime-ish hw): pad hw up.  Padded x rows and padded
    # fc1-weight rows are zero, so padded positions contribute exactly 0.
    return max_chunk, ((hw + max_chunk - 1) // max_chunk) * max_chunk


def _fused_kernel(x_ref, w1_ref, b1_ref, wfc1_ref, bfc1_ref, wfc2_ref,
                  bfc2_ref, o_ref, *acc_refs, n, chunk, cc, multi_step):
    # conv1 (1x1) + bias + relu over the whole chunk: ONE matmul, M = n*chunk.
    xb = x_ref[...].reshape(n * chunk, -1)                       # (N*chunk, Cin)
    y = jnp.dot(xb, w1_ref[...], preferred_element_type=jnp.float32)
    y = jnp.maximum(y + b1_ref[...], 0.0)                        # relu(conv1)
    # fc1 partial: flatten (p, o) into one K axis -> ONE matmul, K = chunk*Cc.
    # Row/col order matches the (p, o)-permuted fc1 weight built in pack_params.
    y2 = y.reshape(n, chunk * cc).astype(wfc1_ref.dtype)
    partial = jnp.dot(y2, wfc1_ref[...],
                      preferred_element_type=jnp.float32)        # (N, Fh)

    def epilogue(acc):
        v5 = jnp.maximum(acc + bfc1_ref[...], 0.0)               # relu(fc1)
        v6 = jnp.dot(v5.astype(wfc2_ref.dtype), wfc2_ref[...],
                     preferred_element_type=jnp.float32) + bfc2_ref[...]
        o_ref[...] = v6.astype(o_ref.dtype)                      # fc2, (N, 10)

    if not multi_step:
        # Single grid step: no scratch, no pl.when, write the output directly.
        epilogue(partial)
    else:
        (acc_ref,) = acc_refs
        k = pl.program_id(0)

        @pl.when(k == 0)
        def _init():
            acc_ref[...] = partial          # init-with-partial: no zero fill

        @pl.when(k > 0)
        def _accum():
            acc_ref[...] += partial

        @pl.when(k == pl.num_programs(0) - 1)
        def _finalize():
            epilogue(acc_ref[...])


def _fused_forward(x3, w1, b1, wfc1, bfc1, wfc2, bfc2, *, chunk):
    n, hw_pad, cin = x3.shape
    cc = w1.shape[1]
    fh = bfc1.shape[-1]
    n_out = wfc2.shape[1]
    num_steps = hw_pad // chunk
    multi = num_steps > 1
    kernel = functools.partial(_fused_kernel, n=n, chunk=chunk, cc=cc,
                               multi_step=multi)
    return pl.pallas_call(
        kernel,
        out_shape=jax.ShapeDtypeStruct((n, n_out), x3.dtype),
        grid_spec=pltpu.PrefetchScalarGridSpec(
            num_scalar_prefetch=0,
            grid=(num_steps,),
            in_specs=[
                pl.BlockSpec((n, chunk, cin), lambda k: (0, k, 0)),   # x (chunked)
                pl.BlockSpec((cin, cc), lambda k: (0, 0)),            # conv1 w
                pl.BlockSpec((1, cc), lambda k: (0, 0)),              # conv1 b
                pl.BlockSpec((chunk * cc, fh), lambda k: (k, 0)),     # fc1 w (streamed)
                pl.BlockSpec((1, fh), lambda k: (0, 0)),              # fc1 b
                pl.BlockSpec((fh, n_out), lambda k: (0, 0)),          # fc2 w
                pl.BlockSpec((1, n_out), lambda k: (0, 0)),           # fc2 b
            ],
            out_specs=pl.BlockSpec((n, n_out), lambda k: (0, 0)),
            scratch_shapes=([pltpu.VMEM((n, fh), jnp.float32)] if multi else []),
        ),
        compiler_params=pltpu.CompilerParams(
            # Single reduction axis with a resident accumulator -> "arbitrary".
            dimension_semantics=("arbitrary",),
            vmem_limit_bytes=32 * 1024 * 1024,
        ),
    )(x3, w1, b1, wfc1, bfc1, wfc2, bfc2)


def model_forward(packed, x1):
    n, cin, h, w = x1.shape
    hw = h * w
    chunk, hw_pad = _choose_chunk(hw)
    # NCHW -> (N, H*W, Cin): channels on the lane axis, spatial on the sublane
    # axis, so the in-kernel conv is one sublane-dense (N*chunk, Cin) matmul.
    # TODO(synk): this tiny transpose is still one extra XLA op; it could be
    # folded into the pallas_call operand via CompilerParams(allow_input_fusion).
    x3 = jnp.transpose(x1, (0, 2, 3, 1)).reshape(n, hw, cin)
    if hw_pad != hw:
        x3 = jnp.pad(x3, ((0, 0), (0, hw_pad - hw), (0, 0)))
    return _fused_forward(x3, packed["w1"], packed["b1"], packed["wfc1"],
                          packed["bfc1"], packed["wfc2"], packed["bfc2"],
                          chunk=chunk)


def pack_params(params, H, W, stream_dtype=jnp.float32):
    """One-time weight layout transforms (hoisted out of the hot path).
    stream_dtype=jnp.bfloat16 halves the streamed fc1-weight HBM traffic for
    large H*W (accumulation stays f32); default f32 for tight tolerances."""
    hw = H * W
    cc, cin = params["conv1_w"].shape[:2]
    fh = params["fc1_w"].shape[1]
    chunk, hw_pad = _choose_chunk(hw)
    del chunk
    # torch flatten index f = o*HW + p (channel-major).  Permute fc1's weight
    # rows to (p, o) order to match the kernel's (p, o)-flattened conv output,
    # pad (with zeros) if HW was padded, then flatten to 2-D for row streaming.
    wfc1 = params["fc1_w"].reshape(cc, hw, fh).transpose(1, 0, 2)     # (HW, Cc, Fh)
    if hw_pad != hw:
        wfc1 = jnp.pad(wfc1, ((0, hw_pad - hw), (0, 0), (0, 0)))
    wfc1 = wfc1.reshape(hw_pad * cc, fh).astype(stream_dtype)
    return dict(
        w1=params["conv1_w"].reshape(cc, cin).T,                      # (Cin, Cc)
        b1=params["conv1_b"].reshape(1, cc),
        wfc1=wfc1,                                                    # (HWp*Cc, Fh)
        bfc1=params["fc1_b"].reshape(1, fh),
        wfc2=params["fc2_w"],                                         # (Fh, 10)
        bfc2=params["fc2_b"].reshape(1, OUT_FEATURES),
    )


def reference_forward(params, x1):
    """Pure-JAX reference for correctness checking (live dataflow only)."""
    w1 = params["conv1_w"].reshape(params["conv1_w"].shape[0], -1)
    v1 = jax.nn.relu(jnp.einsum("nchw,oc->nohw", x1, w1)
                     + params["conv1_b"][None, :, None, None])
    v4 = v1.reshape(v1.shape[0], -1)                 # torch flatten(start_dim=1)
    v5 = jax.nn.relu(v4 @ params["fc1_w"] + params["fc1_b"])
    return v5 @ params["fc2_w"] + params["fc2_b"]


def init_params(key, H, W):
    ks = jax.random.split(key, 10)

    def uni(k, shape, fan_in):
        bound = 1.0 / math.sqrt(fan_in)
        return jax.random.uniform(k, shape, jnp.float32, -bound, bound)

    fc1_in = CONV1_OUT * H * W
    # TODO(synk): the original __init__ declares fc1 = Linear(8, 128), which is
    # shape-inconsistent with forward's fc1(v1.flatten(1)) (128*H*W features);
    # fc1 in_features is set to 128*H*W here so the forward graph is runnable.
    return dict(
        conv1_w=uni(ks[0], (128, 3, 1, 1), 3),
        conv1_b=uni(ks[1], (128,), 3),
        # conv2/conv3 exist in the module but their outputs (v2, v3) are dead
        # in forward(); kept only for module fidelity, never computed.
        conv2_w=uni(ks[2], (64, 3, 1, 1), 3),
        conv2_b=uni(ks[3], (64,), 3),
        conv3_w=uni(ks[4], (8, 64, 1, 1), 64),
        conv3_b=uni(ks[5], (8,), 64),
        fc1_w=uni(ks[6], (fc1_in, 128), fc1_in),          # stored (in, out)
        fc1_b=uni(ks[7], (128,), fc1_in),
        fc2_w=uni(ks[8], (128, OUT_FEATURES), 128),       # stored (in, out)
        fc2_b=uni(ks[9], (OUT_FEATURES,), 128),
    )


if __name__ == "__main__":
    key = jax.random.PRNGKey(0)
    kx, kp = jax.random.split(key)
    N, C, H, W = 2, 3, 16, 16               # small shapes consistent with forward
    x1 = jax.random.normal(kx, (N, C, H, W), jnp.float32)
    params = init_params(kp, H, W)
    packed = pack_params(params, H, W)      # one-time layout work, outside jit

    fwd = jax.jit(model_forward)
    out = jax.block_until_ready(fwd(packed, x1))

    ref = reference_forward(params, x1)
    assert out.shape == (N, OUT_FEATURES), out.shape
    assert jnp.allclose(out, ref, atol=1e-3, rtol=1e-3), (
        float(jnp.max(jnp.abs(out - ref))))
    print("KERNEL_OK")
</pallas_src>

<mosaic_0001>
module attributes {stable_mosaic.version = 11 : i64} {
  func.func @_fused_kernel(%arg0: i32, %arg1: memref<2x64x3xf32, #tpu.memory_space<vmem>>, %arg2: memref<3x128xf32, #tpu.memory_space<vmem>>, %arg3: memref<1x128xf32, #tpu.memory_space<vmem>>, %arg4: memref<8192x128xf32, #tpu.memory_space<vmem>>, %arg5: memref<1x128xf32, #tpu.memory_space<vmem>>, %arg6: memref<128x10xf32, #tpu.memory_space<vmem>>, %arg7: memref<1x10xf32, #tpu.memory_space<vmem>>, %arg8: memref<2x10xf32, #tpu.memory_space<vmem>>, %arg9: memref<2x128xf32, #tpu.memory_space<vmem>>) attributes {dimension_semantics = [#tpu.dimension_semantics<arbitrary>], iteration_bounds = array<i64: 4>, scalar_prefetch = 0 : i64, scratch_operands = 1 : i64, tpu.core_type = #tpu.core_type<tc>, window_params = [{transform_indices = @transform_0, window_bounds = array<i64: 2, 64, 3>}, {pipeline_mode = #tpu.pipeline_mode<synchronous>, transform_indices = @transform_1, window_bounds = array<i64: 3, 128>}, {pipeline_mode = #tpu.pipeline_mode<synchronous>, transform_indices = @transform_2, window_bounds = array<i64: 1, 128>}, {transform_indices = @transform_3, window_bounds = array<i64: 8192, 128>}, {pipeline_mode = #tpu.pipeline_mode<synchronous>, transform_indices = @transform_4, window_bounds = array<i64: 1, 128>}, {pipeline_mode = #tpu.pipeline_mode<synchronous>, transform_indices = @transform_5, window_bounds = array<i64: 128, 10>}, {pipeline_mode = #tpu.pipeline_mode<synchronous>, transform_indices = @transform_6, window_bounds = array<i64: 1, 10>}, {pipeline_mode = #tpu.pipeline_mode<synchronous>, transform_indices = @transform_7, window_bounds = array<i64: 2, 10>}]} {
    %c0 = arith.constant 0 : index
    %c0_0 = arith.constant 0 : index
    %c0_1 = arith.constant 0 : index
    %0 = vector.load %arg1[%c0, %c0_0, %c0_1] : memref<2x64x3xf32, #tpu.memory_space<vmem>>, vector<2x64x3xf32>
    %1 = vector.shape_cast %0 : vector<2x64x3xf32> to vector<128x3xf32>
    %c0_2 = arith.constant 0 : index
    %c0_3 = arith.constant 0 : index
    %2 = vector.load %arg2[%c0_2, %c0_3] : memref<3x128xf32, #tpu.memory_space<vmem>>, vector<3x128xf32>
    %cst = arith.constant dense<0.000000e+00> : vector<128x128xf32>
    %3 = tpu.matmul %1, %2, %cst {dimension_numbers = #tpu.dot_dimension_numbers<[1], [0], [0], [1], [0, 0, 1, 1], [], []>} : vector<128x3xf32>, vector<3x128xf32>, vector<128x128xf32> -> vector<128x128xf32>
    %c0_4 = arith.constant 0 : index
    %c0_5 = arith.constant 0 : index
    %4 = vector.load %arg3[%c0_4, %c0_5] : memref<1x128xf32, #tpu.memory_space<vmem>>, vector<1x128xf32>
    %5 = vector.broadcast %4 : vector<1x128xf32> to vector<128x128xf32>
    %6 = arith.addf %3, %5 : vector<128x128xf32>
    %cst_6 = arith.constant 0.000000e+00 : f32
    %7 = vector.broadcast %cst_6 : f32 to vector<128x128xf32>
    %8 = arith.maximumf %6, %7 : vector<128x128xf32>
    %9 = vector.shape_cast %8 : vector<128x128xf32> to vector<2x8192xf32>
    %c0_7 = arith.constant 0 : index
    %c0_8 = arith.constant 0 : index
    %10 = vector.load %arg4[%c0_7, %c0_8] : memref<8192x128xf32, #tpu.memory_space<vmem>>, vector<8192x128xf32>
    %cst_9 = arith.constant dense<0.000000e+00> : vector<2x128xf32>
    %11 = tpu.matmul %9, %10, %cst_9 {dimension_numbers = #tpu.dot_dimension_numbers<[1], [0], [0], [1], [0, 0, 1, 1], [], []>} : vector<2x8192xf32>, vector<8192x128xf32>, vector<2x128xf32> -> vector<2x128xf32>
    %c0_i32 = arith.constant 0 : i32
    %12 = arith.cmpi eq, %arg0, %c0_i32 : i32
    %13 = arith.extui %12 : i1 to i32
    %c0_i32_10 = arith.constant 0 : i32
    %14 = arith.cmpi ne, %13, %c0_i32_10 : i32
    scf.if %14 {
      %c0_14 = arith.constant 0 : index
      %c0_15 = arith.constant 0 : index
      %21 = vector.load %arg9[%c0_14, %c0_15] : memref<2x128xf32, #tpu.memory_space<vmem>>, vector<2x128xf32>
      tpu.vector_store %arg9[%c0_14, %c0_15], %11 {strides = array<i32>} : memref<2x128xf32, #tpu.memory_space<vmem>>, vector<2x128xf32>,
    } else {
    }
    %c0_i32_11 = arith.constant 0 : i32
    %15 = arith.cmpi sgt, %arg0, %c0_i32_11 : i32
    %16 = arith.extui %15 : i1 to i32
    %c0_i32_12 = arith.constant 0 : i32
    %17 = arith.cmpi ne, %16, %c0_i32_12 : i32
    scf.if %17 {
      %c0_14 = arith.constant 0 : index
      %c0_15 = arith.constant 0 : index
      %21 = vector.load %arg9[%c0_14, %c0_15] : memref<2x128xf32, #tpu.memory_space<vmem>>, vector<2x128xf32>
      %22 = arith.addf %21, %11 : vector<2x128xf32>
      %c0_16 = arith.constant 0 : index
      %c0_17 = arith.constant 0 : index
      %23 = vector.load %arg9[%c0_16, %c0_17] : memref<2x128xf32, #tpu.memory_space<vmem>>, vector<2x128xf32>
      tpu.vector_store %arg9[%c0_16, %c0_17], %22 {strides = array<i32>} : memref<2x128xf32, #tpu.memory_space<vmem>>, vector<2x128xf32>,
    } else {
    }
    %c3_i32 = arith.constant 3 : i32
    %18 = arith.cmpi eq, %arg0, %c3_i32 : i32
    %19 = arith.extui %18 : i1 to i32
    %c0_i32_13 = arith.constant 0 : i32
    %20 = arith.cmpi ne, %19, %c0_i32_13 : i32
    scf.if %20 {
      %c0_14 = arith.constant 0 : index
      %c0_15 = arith.constant 0 : index
      %21 = vector.load %arg9[%c0_14, %c0_15] : memref<2x128xf32, #tpu.memory_space<vmem>>, vector<2x128xf32>
      %c0_16 = arith.constant 0 : index
      %c0_17 = arith.constant 0 : index
      %22 = vector.load %arg5[%c0_16, %c0_17] : memref<1x128xf32, #tpu.memory_space<vmem>>, vector<1x128xf32>
      %23 = vector.broadcast %22 : vector<1x128xf32> to vector<2x128xf32>
      %24 = arith.addf %21, %23 : vector<2x128xf32>
      %cst_18 = arith.constant 0.000000e+00 : f32
      %25 = vector.broadcast %cst_18 : f32 to vector<2x128xf32>
      %26 = arith.maximumf %24, %25 : vector<2x128xf32>
      %c0_19 = arith.constant 0 : index
      %c0_20 = arith.constant 0 : index
      %27 = vector.load %arg6[%c0_19, %c0_20] : memref<128x10xf32, #tpu.memory_space<vmem>>, vector<128x10xf32>
      %cst_21 = arith.constant dense<0.000000e+00> : vector<2x10xf32>
      %28 = tpu.matmul %26, %27, %cst_21 {dimension_numbers = #tpu.dot_dimension_numbers<[1], [0], [0], [1], [0, 0, 1, 1], [], []>} : vector<2x128xf32>, vector<128x10xf32>, vector<2x10xf32> -> vector<2x10xf32>
      %c0_22 = arith.constant 0 : index
      %c0_23 = arith.constant 0 : index
      %29 = vector.load %arg7[%c0_22, %c0_23] : memref<1x10xf32, #tpu.memory_space<vmem>>, vector<1x10xf32>
      %30 = vector.broadcast %29 : vector<1x10xf32> to vector<2x10xf32>
      %31 = arith.addf %28, %30 : vector<2x10xf32>
      %c0_24 = arith.constant 0 : index
      %c0_25 = arith.constant 0 : index
      %32 = vector.load %arg8[%c0_24, %c0_25] : memref<2x10xf32, #tpu.memory_space<vmem>>, vector<2x10xf32>
      tpu.vector_store %arg8[%c0_24, %c0_25], %31 {strides = array<i32>} : memref<2x10xf32, #tpu.memory_space<vmem>>, vector<2x10xf32>,
    } else {
    }
    return
  }
  func.func @transform_0(%arg0: i32) -> (i32, i32, i32) {
    %c0_i32 = arith.constant 0 : i32
    %c0_i32_0 = arith.constant 0 : i32
    %c0_i32_1 = arith.constant 0 : i32
    return %c0_i32, %arg0, %c0_i32_0 : i32, i32, i32
  }
  func.func @transform_1(%arg0: i32) -> (i32, i32) {
    %c0_i32 = arith.constant 0 : i32
    %c0_i32_0 = arith.constant 0 : i32
    %c0_i32_1 = arith.constant 0 : i32
    return %c0_i32, %c0_i32_0 : i32, i32
  }
  func.func @transform_2(%arg0: i32) -> (i32, i32) {
    %c0_i32 = arith.constant 0 : i32
    %c0_i32_0 = arith.constant 0 : i32
    %c0_i32_1 = arith.constant 0 : i32
    return %c0_i32, %c0_i32_0 : i32, i32
  }
  func.func @transform_3(%arg0: i32) -> (i32, i32) {
    %c0_i32 = arith.constant 0 : i32
    %c0_i32_0 = arith.constant 0 : i32
    return %arg0, %c0_i32 : i32, i32
  }
  func.func @transform_4(%arg0: i32) -> (i32, i32) {
    %c0_i32 = arith.constant 0 : i32
    %c0_i32_0 = arith.constant 0 : i32
    %c0_i32_1 = arith.constant 0 : i32
    return %c0_i32, %c0_i32_0 : i32, i32
  }
  func.func @transform_5(%arg0: i32) -> (i32, i32) {
    %c0_i32 = arith.constant 0 : i32
    %c0_i32_0 = arith.constant 0 : i32
    %c0_i32_1 = arith.constant 0 : i32
    return %c0_i32, %c0_i32_0 : i32, i32
  }
  func.func @transform_6(%arg0: i32) -> (i32, i32) {
    %c0_i32 = arith.constant 0 : i32
    %c0_i32_0 = arith.constant 0 : i32
    %c0_i32_1 = arith.constant 0 : i32
    return %c0_i32, %c0_i32_0 : i32, i32
  }
  func.func @transform_7(%arg0: i32) -> (i32, i32) {
    %c0_i32 = arith.constant 0 : i32
    %c0_i32_0 = arith.constant 0 : i32
    %c0_i32_1 = arith.constant 0 : i32
    return %c0_i32, %c0_i32_0 : i32, i32
  }
}

</mosaic_0001>

<llo_original>
// kernel: model_forward.1
$region0: #{model_forward.1}
  #allocation0 [shape = 'u32[]', space=smem, size = 0x4, offset = 0x4, fixed_abs, tag = 'smem constant byte address 0x4 - core index']
  #allocation1 [shape = 'u32[72,128]{1,0:T(1,128)}', space=vmem, size = 0x9000, scoped, tag = 'internal scratch']
  #allocation2 [shape = 'f32[2,128]{1,0:T(2,128)}', space=vmem, size = 0x400, scoped, tag = 'scratch operand']
  %s0 = inlined_call_operand.vmem [shape: f32[2,256,3], index: 0, kind: input, shape index: {}]
  %s1 = inlined_call_operand.hbm [shape: f32[3,128], index: 1, kind: input, shape index: {}]
  %s2 = inlined_call_operand.hbm [shape: f32[1,128], index: 2, kind: input, shape index: {}]
  %s3 = inlined_call_operand.hbm [shape: f32[32768,128], index: 3, kind: input, shape index: {}]
  %s4 = inlined_call_operand.hbm [shape: f32[1,128], index: 4, kind: input, shape index: {}]
  %s5 = inlined_call_operand.vmem [shape: f32[128,10], index: 5, kind: input, shape index: {}]
  %s6 = inlined_call_operand.hbm [shape: f32[1,10], index: 6, kind: input, shape index: {}]
  %s7 = inlined_call_operand.hbm [shape: f32[2,10], index: 7, kind: output, shape index: {}]
  %s8 = sld [smem:[#allocation0]]
  $region131: #{model_forward.1} parent=0
    _
  %s10 = ssub.s32 1, %s8
  %s11 = scalar_select 0, %s10, %s8
  $region1: #{model_forward.1} parent=0
    #allocation3 [shape = 'u8[131072]{0}', space=vmem, size = 0x20000, scoped, tag = 'input window, operand 0']
    #allocation4 [shape = 'u8[2048]{0}', space=vmem, size = 0x800, scoped, tag = 'input window, operand 1, single buffered']
    #allocation5 [shape = 's32[2]{0}', space=sflag, size = 0x8, scoped, tag = 'scoped memory for model_forward.1']
    #allocation6 [shape = 's32[2]{0}', space=sflag, size = 0x8, scoped, tag = 'scoped memory for model_forward.1']
    #allocation7 [shape = 'u8[512]{0}', space=vmem, size = 0x400, scoped, tag = 'input window, operand 2, single buffered']
    #allocation8 [shape = 's32[1]{0}', space=sflag, size = 0x4, scoped, tag = 'scoped memory for model_forward.1']
    #allocation9 [shape = 'u8[8388608]{0}', space=vmem, size = 0x800000, scoped, tag = 'input window, operand 3']
    #allocation10 [shape = 'u8[512]{0}', space=vmem, size = 0x400, scoped, tag = 'input window, operand 4, single buffered']
    #allocation11 [shape = 'u8[512]{0}', space=vmem, size = 0x400, scoped, tag = 'input window, operand 6, single buffered']
    #allocation12 [shape = 's32[1]{0}', space=sflag, size = 0x4, scoped, tag = 'scoped memory for model_forward.1']
    #allocation13 [shape = 'u8[1024]{0}', space=vmem, size = 0x400, scoped, tag = 'output window, operand 0, single buffered']
    %12 = vsyncpa [#allocation5], 0
    %13 = vsyncpa [#allocation8], 0
    %14 = vsyncpa [#allocation12], 0
    %15 = vsyncpa [#allocation6], 0
    loop: start=0, step=1, limit=6
    $region2: #{model_forward.1} parent=1 // loop_pre_header
      _
    $region3: #{model_forward.1} parent=1 // loop_header
      %s17 = sphi 0, %s21
      %p18 = scmp.ge.s32.totalorder %s17, 6
      %s27 = sphi 0, %s29
      %s30 = sphi 0, %s27
      %s31 = sphi 0, %s30
      %s47 = sphi 0, %s31
      %s51 = sphi 0, %s51
      %s53 = sphi 0, %s51
      %s54 = sphi 0, %s53
      %s68 = sphi 0, %s54
      %s72 = sphi 0, %s72
      %s74 = sphi 0, %s72
      %s75 = sphi 0, %s74
      %s89 = sphi 0, %s75
      %s95 = sphi 0, %s97
      %s98 = sphi 0, %s95
      %s99 = sphi 0, %s98
      %s115 = sphi 0, %s99
      %s119 = sphi 0, %s119
      %s121 = sphi 0, %s119
      %s122 = sphi 0, %s121
      %s136 = sphi 0, %s122
      %s140 = sphi 0, %s140
      %s142 = sphi 0, %s140
      %s143 = sphi 0, %s142
      %s157 = sphi 0, %s143
      %s161 = sphi 0, %s161
      %s163 = sphi 0, %s161
      %s164 = sphi 0, %s163
      %s178 = sphi 0, %s164
      %s182 = sphi 0, %s182
      %s184 = sphi 0, %s182
      %s185 = sphi 0, %s184
      %s199 = sphi 0, %s185
    $region4: #{model_forward.1} parent=1 // loop_header_branch
      %20 = sbr.rel (%p18) target = $region8
    $region5: #{model_forward.1} parent=1 // loop_body
      %s22 = ssub.s32 %s17, 1
      %s23 = ssub.s32 %s17, 2
      %s24 = sadd.s32 %s17, 1
      %s25 = ssub.s32 %s17, %s24
      %p26 = scmp.eq.s32.totalorder %s25, 0
      %s28 = sadd.s32 %s27, 1
      %s29 = scalar_select %p26, %s27, %s28
      %p32 = pneg %p26
      %p33 = scmp.eq.s32.totalorder %s17, 3
      %p34 = por %p32, %p33
      %p35 = scmp.ne.s32.totalorder %s27, %s30
      %p36 = scmp.eq.s32.totalorder %s17, 0
      %p37 = por %p35, %p36
      %p38 = scmp.ne.s32.totalorder %s27, %s30
      %p39 = scmp.eq.s32.totalorder %s22, 3
      %p40 = por %p38, %p39
      %p41 = scmp.ne.s32.totalorder %s30, %s31
      %p42 = scmp.eq.s32.totalorder %s22, 0
      %p43 = por %p41, %p42
      %p44 = scmp.ne.s32.totalorder %s30, %s31
      %p45 = scmp.eq.s32.totalorder %s23, 3
      %p46 = por %p44, %p45
      %p48 = scmp.ne.s32.totalorder %s31, %s47
      %p49 = scmp.eq.s32.totalorder %s23, 0
      %p50 = por %p48, %p49
      %s52 = sadd.s32 %s51, 1
      %p55 = scmp.eq.s32.totalorder %s17, 3
      %p56 = scmp.ne.s32.totalorder %s51, %s53
      %p57 = scmp.eq.s32.totalorder %s17, 0
      %p58 = por %p56, %p57
      %p59 = scmp.ne.s32.totalorder %s51, %s53
      %p60 = scmp.eq.s32.totalorder %s22, 3
      %p61 = por %p59, %p60
      %p62 = scmp.ne.s32.totalorder %s53, %s54
      %p63 = scmp.eq.s32.totalorder %s22, 0
      %p64 = por %p62, %p63
      %p65 = scmp.ne.s32.totalorder %s53, %s54
      %p66 = scmp.eq.s32.totalorder %s23, 3
      %p67 = por %p65, %p66
      %p69 = scmp.ne.s32.totalorder %s54, %s68
      %p70 = scmp.eq.s32.totalorder %s23, 0
      %p71 = por %p69, %p70
      %s73 = sadd.s32 %s72, 1
      %p76 = scmp.eq.s32.totalorder %s17, 3
      %p77 = scmp.ne.s32.totalorder %s72, %s74
      %p78 = scmp.eq.s32.totalorder %s17, 0
      %p79 = por %p77, %p78
      %p80 = scmp.ne.s32.totalorder %s72, %s74
      %p81 = scmp.eq.s32.totalorder %s22, 3
      %p82 = por %p80, %p81
      %p83 = scmp.ne.s32.totalorder %s74, %s75
      %p84 = scmp.eq.s32.totalorder %s22, 0
      %p85 = por %p83, %p84
      %p86 = scmp.ne.s32.totalorder %s74, %s75
      %p87 = scmp.eq.s32.totalorder %s23, 3
      %p88 = por %p86, %p87
      %p90 = scmp.ne.s32.totalorder %s75, %s89
      %p91 = scmp.eq.s32.totalorder %s23, 0
      %p92 = por %p90, %p91
      %s93 = ssub.s32 %s17, %s24
      %p94 = scmp.eq.s32.totalorder %s93, 0
      %s96 = sadd.s32 %s95, 1
      %s97 = scalar_select %p94, %s95, %s96
      %p100 = pneg %p94
      %p101 = scmp.eq.s32.totalorder %s17, 3
      %p102 = por %p100, %p101
      %p103 = scmp.ne.s32.totalorder %s95, %s98
      %p104 = scmp.eq.s32.totalorder %s17, 0
      %p105 = por %p103, %p104
      %p106 = scmp.ne.s32.totalorder %s95, %s98
      %p107 = scmp.eq.s32.totalorder %s22, 3
      %p108 = por %p106, %p107
      %p109 = scmp.ne.s32.totalorder %s98, %s99
      %p110 = scmp.eq.s32.totalorder %s22, 0
      %p111 = por %p109, %p110
      %p112 = scmp.ne.s32.totalorder %s98, %s99
      %p113 = scmp.eq.s32.totalorder %s23, 3
      %p114 = por %p112, %p113
      %p116 = scmp.ne.s32.totalorder %s99, %s115
      %p117 = scmp.eq.s32.totalorder %s23, 0
      %p118 = por %p116, %p117
      %s120 = sadd.s32 %s119, 1
      %p123 = scmp.eq.s32.totalorder %s17, 3
      %p124 = scmp.ne.s32.totalorder %s119, %s121
      %p125 = scmp.eq.s32.totalorder %s17, 0
      %p126 = por %p124, %p125
      %p127 = scmp.ne.s32.totalorder %s119, %s121
      %p128 = scmp.eq.s32.totalorder %s22, 3
      %p129 = por %p127, %p128
      %p130 = scmp.ne.s32.totalorder %s121, %s122
      %p131 = scmp.eq.s32.totalorder %s22, 0
      %p132 = por %p130, %p131
      %p133 = scmp.ne.s32.totalorder %s121, %s122
      %p134 = scmp.eq.s32.totalorder %s23, 3
      %p135 = por %p133, %p134
      %p137 = scmp.ne.s32.totalorder %s122, %s136
      %p138 = scmp.eq.s32.totalorder %s23, 0
      %p139 = por %p137, %p138
      %s141 = sadd.s32 %s140, 1
      %p144 = scmp.eq.s32.totalorder %s17, 3
      %p145 = scmp.ne.s32.totalorder %s140, %s142
      %p146 = scmp.eq.s32.totalorder %s17, 0
      %p147 = por %p145, %p146
      %p148 = scmp.ne.s32.totalorder %s140, %s142
      %p149 = scmp.eq.s32.totalorder %s22, 3
      %p150 = por %p148, %p149
      %p151 = scmp.ne.s32.totalorder %s142, %s143
      %p152 = scmp.eq.s32.totalorder %s22, 0
      %p153 = por %p151, %p152
      %p154 = scmp.ne.s32.totalorder %s142, %s143
      %p155 = scmp.eq.s32.totalorder %s23, 3
      %p156 = por %p154, %p155
      %p158 = scmp.ne.s32.totalorder %s143, %s157
      %p159 = scmp.eq.s32.totalorder %s23, 0
      %p160 = por %p158, %p159
      %s162 = sadd.s32 %s161, 1
      %p165 = scmp.eq.s32.totalorder %s17, 3
      %p166 = scmp.ne.s32.totalorder %s161, %s163
      %p167 = scmp.eq.s32.totalorder %s17, 0
      %p168 = por %p166, %p167
      %p169 = scmp.ne.s32.totalorder %s161, %s163
      %p170 = scmp.eq.s32.totalorder %s22, 3
      %p171 = por %p169, %p170
      %p172 = scmp.ne.s32.totalorder %s163, %s164
      %p173 = scmp.eq.s32.totalorder %s22, 0
      %p174 = por %p172, %p173
      %p175 = scmp.ne.s32.totalorder %s163, %s164
      %p176 = scmp.eq.s32.totalorder %s23, 3
      %p177 = por %p175, %p176
      %p179 = scmp.ne.s32.totalorder %s164, %s178
      %p180 = scmp.eq.s32.totalorder %s23, 0
      %p181 = por %p179, %p180
      %s183 = sadd.s32 %s182, 1
      %p186 = scmp.eq.s32.totalorder %s17, 3
      %p187 = scmp.ne.s32.totalorder %s182, %s184
      %p188 = scmp.eq.s32.totalorder %s17, 0
      %p189 = por %p187, %p188
      %p190 = scmp.ne.s32.totalorder %s182, %s184
      %p191 = scmp.eq.s32.totalorder %s22, 3
      %p192 = por %p190, %p191
      %p193 = scmp.ne.s32.totalorder %s184, %s185
      %p194 = scmp.eq.s32.totalorder %s22, 0
      %p195 = por %p193, %p194
      %p196 = scmp.ne.s32.totalorder %s184, %s185
      %p197 = scmp.eq.s32.totalorder %s23, 3
      %p198 = por %p196, %p197
      %p200 = scmp.ne.s32.totalorder %s185, %s199
      %p201 = scmp.eq.s32.totalorder %s23, 0
      %p202 = por %p200, %p201
      %p203 = scmp.le.s32.totalorder 1, %s17
      %p204 = scmp.lt.s32.totalorder %s17, 5
      %p205 = pnand %p203, %p204
      %p206 = pneg %p205
      // Predicated region
      $region9: #{model_forward.1} parent=5 // pred_check
        _
      $region10: #{model_forward.1} parent=5 // pred_check_branch
        %208 = sbr.rel (%p205) target = $region12
      $region11: #{model_forward.1} parent=5 // pred_region
        %s209 = ssub.s32 %s17, 1
        // Predicated region
        $region13: #{model_forward.1} parent=11 // pred_check
          %p210 = pneg %p64
        $region14: #{model_forward.1} parent=11 // pred_check_branch
          %212 = sbr.rel (%p210) target = $region16
        $region15: #{model_forward.1} parent=11 // pred_region
          %214 = vsyncadd [#allocation5], 0
          %s216 = sshll.u32 %s1, 4
          %s217 = int_to_ptr.hbm [resolvable:$true] %s216
          %s218 = sshll.u32 [#allocation4], 4
          %s219 = int_to_ptr.vmem [resolvable:$true] %s218
          %221 = dma.hbm_to_vmem [thread:$0]  %s217, 64, %s219, [#allocation5]
        $region16: #{model_forward.1} parent=11 // pred_fallthru
          _
        // Predicated region
        $region17: #{model_forward.1} parent=11 // pred_check
          %p222 = pneg %p85
        $region18: #{model_forward.1} parent=11 // pred_check_branch
          %224 = sbr.rel (%p222) target = $region20
        $region19: #{model_forward.1} parent=11 // pred_region
          %226 = vsyncadd [#allocation8], 0
          %s228 = sshll.u32 %s2, 4
          %s229 = int_to_ptr.hbm [resolvable:$true] %s228
          %s230 = sshll.u32 [#allocation7], 4
          %s231 = int_to_ptr.vmem [resolvable:$true] %s230
          %233 = dma.hbm_to_vmem [thread:$0]  %s229, 16, %s231, [#allocation8]
        $region20: #{model_forward.1} parent=11 // pred_fallthru
          _
        // Predicated region
        $region21: #{model_forward.1} parent=11 // pred_check
          %p234 = pneg %p132
        $region22: #{model_forward.1} parent=11 // pred_check_branch
          %236 = sbr.rel (%p234) target = $region24
        $region23: #{model_forward.1} parent=11 // pred_region
          %238 = vsyncadd [#allocation8], 0
          %s240 = sshll.u32 %s4, 4
          %s241 = int_to_ptr.hbm [resolvable:$true] %s240
          %s242 = sshll.u32 [#allocation10], 4
          %s243 = int_to_ptr.vmem [resolvable:$true] %s242
          %245 = dma.hbm_to_vmem [thread:$0]  %s241, 16, %s243, [#allocation8]
        $region24: #{model_forward.1} parent=11 // pred_fallthru
          _
        // Predicated region
        $region25: #{model_forward.1} parent=11 // pred_check
          %p246 = pneg %p153
        $region26: #{model_forward.1} parent=11 // pred_check_branch
          %248 = sbr.rel (%p246) target = $region28
        $region27: #{model_forward.1} parent=11 // pred_region
          _
        $region28: #{model_forward.1} parent=11 // pred_fallthru
          _
        // Predicated region
        $region29: #{model_forward.1} parent=11 // pred_check
          %p249 = pneg %p174
        $region30: #{model_forward.1} parent=11 // pred_check_branch
          %251 = sbr.rel (%p249) target = $region32
        $region31: #{model_forward.1} parent=11 // pred_region
          %253 = vsyncadd [#allocation12], 0
          %s255 = sshll.u32 %s6, 4
          %s256 = int_to_ptr.hbm [resolvable:$true] %s255
          %s257 = sshll.u32 [#allocation11], 4
          %s258 = int_to_ptr.vmem [resolvable:$true] %s257
          %260 = dma.hbm_to_vmem [thread:$0]  %s256, 16, %s258, [#allocation12]
        $region32: #{model_forward.1} parent=11 // pred_fallthru
          _
      $region12: #{model_forward.1} parent=5 // pred_fallthru
        _
      %p261 = scmp.lt.s32.totalorder %s17, 4
      // Predicated region
      $region33: #{model_forward.1} parent=5 // pred_check
        %p262 = pneg %p261
      $region34: #{model_forward.1} parent=5 // pred_check_branch
        %264 = sbr.rel (%p262) target = $region36
      $region35: #{model_forward.1} parent=5 // pred_region
        // Predicated region
        $region37: #{model_forward.1} parent=35 // pred_check
          %p265 = pneg %p37
        $region38: #{model_forward.1} parent=35 // pred_check_branch
          %267 = sbr.rel (%p265) target = $region40
        $region39: #{model_forward.1} parent=35 // pred_region
          %s268 = sand.u32 %s27, 1
          %s269 = sand.u32 %s27, 1
          %s270 = smul.addr %s269, 128
          %s271 = scalar_lea.vmem [#allocation3], %s270
          %s272 = smul.u32 8, %s17
          %s273 = smul.addr %s272, 8
          %s274 = scalar_lea.vmem %s0, %s273
          // Predicated region
          $region41: #{model_forward.1} parent=39 // pred_check
            _
          $region42: #{model_forward.1} parent=39 // pred_check_branch
            %276 = sbr.rel (0) target = $region44
          $region43: #{model_forward.1} parent=39 // pred_region
            // Predicated region
            $region45: #{model_forward.1} parent=43 // pred_check
              _
            $region46: #{model_forward.1} parent=43 // pred_check_branch
              %278 = sbr.rel (0) target = $region48
            $region47: #{model_forward.1} parent=43 // pred_region
              // Predicated region
              $region60: #{model_forward.1} parent=47 // pred_check
                _
              $region61: #{model_forward.1} parent=47 // pred_check_branch
                %324 = sbr.rel (0) target = $region63
              $region62: #{model_forward.1} parent=47 // pred_region
                loop: start=0, step=1, limit=1
                $region64: #{model_forward.1} parent=62 // loop_pre_header
                  _
                $region65: #{model_forward.1} parent=62 // loop_header
                  %s326 = sphi 0, %s330
                  %p327 = scmp.ge.s32.totalorder %s326, 1
                  %s331 = sphi %s274, %s274
                  %s332 = sphi %s271, %s271
                $region66: #{model_forward.1} parent=62 // loop_header_branch
                  %329 = sbr.rel (%p327) target = $region70
                $region67: #{model_forward.1} parent=62 // loop_body
                  %v333 = vld [vmem:[%s331] sm:$0xff]
                  %334 = vst [vmem:[%s332] sm:$0xff] %v333
                  %v335 = vld [vmem:[%s331 + $0x8] sm:$0xff]
                  %336 = vst [vmem:[%s332 + $0x8] sm:$0xff] %v335
                  %v337 = vld [vmem:[%s331 + $0x10] sm:$0xff]
                  %338 = vst [vmem:[%s332 + $0x10] sm:$0xff] %v337
                  %v339 = vld [vmem:[%s331 + $0x18] sm:$0xff]
                  %340 = vst [vmem:[%s332 + $0x18] sm:$0xff] %v339
                  %v341 = vld [vmem:[%s331 + $0x20] sm:$0xff]
                  %342 = vst [vmem:[%s332 + $0x20] sm:$0xff] %v341
                  %v343 = vld [vmem:[%s331 + $0x28] sm:$0xff]
                  %344 = vst [vmem:[%s332 + $0x28] sm:$0xff] %v343
                  %v345 = vld [vmem:[%s331 + $0x30] sm:$0xff]
                  %346 = vst [vmem:[%s332 + $0x30] sm:$0xff] %v345
                  %v347 = vld [vmem:[%s331 + $0x38] sm:$0xff]
                  %348 = vst [vmem:[%s332 + $0x38] sm:$0xff] %v347
                  %v349 = vld [vmem:[%s331 + $0x100] sm:$0xff]
                  %350 = vst [vmem:[%s332 + $0x40] sm:$0xff] %v349
                  %v351 = vld [vmem:[%s331 + $0x108] sm:$0xff]
                  %352 = vst [vmem:[%s332 + $0x48] sm:$0xff] %v351
                  %v353 = vld [vmem:[%s331 + $0x110] sm:$0xff]
                  %354 = vst [vmem:[%s332 + $0x50] sm:$0xff] %v353
                  %v355 = vld [vmem:[%s331 + $0x118] sm:$0xff]
                  %356 = vst [vmem:[%s332 + $0x58] sm:$0xff] %v355
                  %v357 = vld [vmem:[%s331 + $0x120] sm:$0xff]
                  %358 = vst [vmem:[%s332 + $0x60] sm:$0xff] %v357
                  %v359 = vld [vmem:[%s331 + $0x128] sm:$0xff]
                  %360 = vst [vmem:[%s332 + $0x68] sm:$0xff] %v359
                  %v361 = vld [vmem:[%s331 + $0x130] sm:$0xff]
                  %362 = vst [vmem:[%s332 + $0x70] sm:$0xff] %v361
                  %v363 = vld [vmem:[%s331 + $0x138] sm:$0xff]
                  %364 = vst [vmem:[%s332 + $0x78] sm:$0xff] %v363
                $region68: #{model_forward.1} parent=62 // loop_footer
                  %s330 = sadd.s32 1, %s326
                $region69: #{model_forward.1} parent=62 // loop_footer_branch
                  %325 = sbr.rel target = $region65
                $region70: #{model_forward.1} parent=62 // loop_exit
                  _
              $region63: #{model_forward.1} parent=47 // pred_fallthru
                _
              // Predicated region
              $region71: #{model_forward.1} parent=47 // pred_check
                _
              $region72: #{model_forward.1} parent=47 // pred_check_branch
                %366 = sbr.rel target = $region74
              $region73: #{model_forward.1} parent=47 // pred_region
                _
              $region74: #{model_forward.1} parent=47 // pred_fallthru
                _
            $region48: #{model_forward.1} parent=43 // pred_fallthru
              _
            // Predicated region
            $region49: #{model_forward.1} parent=43 // pred_check
              _
            $region50: #{model_forward.1} parent=43 // pred_check_branch
              %280 = sbr.rel target = $region52
            $region51: #{model_forward.1} parent=43 // pred_region
              %s282 = ssub.s32 256, 1
              loop: start=0, step=1, limit=1
              $region53: #{model_forward.1} parent=51 // loop_pre_header
                _
              $region54: #{model_forward.1} parent=51 // loop_header
                %s284 = sphi 0, %s288
                %p285 = scmp.ge.s32.totalorder %s284, 1
                %s289 = sphi %s274, %s274
                %s290 = sphi %s271, %s271
              $region55: #{model_forward.1} parent=51 // loop_header_branch
                %287 = sbr.rel (%p285) target = $region59
              $region56: #{model_forward.1} parent=51 // loop_body
                %v291 = vld [vmem:[%s289] sm:%s282]
                %292 = vst [vmem:[%s290] sm:%s282] %v291
                %v293 = vld [vmem:[%s289 + $0x8] sm:%s282]
                %294 = vst [vmem:[%s290 + $0x8] sm:%s282] %v293
                %v295 = vld [vmem:[%s289 + $0x10] sm:%s282]
                %296 = vst [vmem:[%s290 + $0x10] sm:%s282] %v295
                %v297 = vld [vmem:[%s289 + $0x18] sm:%s282]
                %298 = vst [vmem:[%s290 + $0x18] sm:%s282] %v297
                %v299 = vld [vmem:[%s289 + $0x20] sm:%s282]
                %300 = vst [vmem:[%s290 + $0x20] sm:%s282] %v299
                %v301 = vld [vmem:[%s289 + $0x28] sm:%s282]
                %302 = vst [vmem:[%s290 + $0x28] sm:%s282] %v301
                %v303 = vld [vmem:[%s289 + $0x30] sm:%s282]
                %304 = vst [vmem:[%s290 + $0x30] sm:%s282] %v303
                %v305 = vld [vmem:[%s289 + $0x38] sm:%s282]
                %306 = vst [vmem:[%s290 + $0x38] sm:%s282] %v305
                %v307 = vld [vmem:[%s289 + $0x100] sm:%s282]
                %308 = vst [vmem:[%s290 + $0x40] sm:%s282] %v307
                %v309 = vld [vmem:[%s289 + $0x108] sm:%s282]
                %310 = vst [vmem:[%s290 + $0x48] sm:%s282] %v309
                %v311 = vld [vmem:[%s289 + $0x110] sm:%s282]
                %312 = vst [vmem:[%s290 + $0x50] sm:%s282] %v311
                %v313 = vld [vmem:[%s289 + $0x118] sm:%s282]
                %314 = vst [vmem:[%s290 + $0x58] sm:%s282] %v313
                %v315 = vld [vmem:[%s289 + $0x120] sm:%s282]
                %316 = vst [vmem:[%s290 + $0x60] sm:%s282] %v315
                %v317 = vld [vmem:[%s289 + $0x128] sm:%s282]
                %318 = vst [vmem:[%s290 + $0x68] sm:%s282] %v317
                %v319 = vld [vmem:[%s289 + $0x130] sm:%s282]
                %320 = vst [vmem:[%s290 + $0x70] sm:%s282] %v319
                %v321 = vld [vmem:[%s289 + $0x138] sm:%s282]
                %322 = vst [vmem:[%s290 + $0x78] sm:%s282] %v321
              $region57: #{model_forward.1} parent=51 // loop_footer
                %s288 = sadd.s32 1, %s284
              $region58: #{model_forward.1} parent=51 // loop_footer_branch
                %283 = sbr.rel target = $region54
              $region59: #{model_forward.1} parent=51 // loop_exit
                _
            $region52: #{model_forward.1} parent=43 // pred_fallthru
              _
          $region44: #{model_forward.1} parent=39 // pred_fallthru
            _
          %367 = vnop
        $region40: #{model_forward.1} parent=35 // pred_fallthru
          _
        // Predicated region
        $region75: #{model_forward.1} parent=35 // pred_check
          %p368 = pneg %p105
        $region76: #{model_forward.1} parent=35 // pred_check_branch
          %370 = sbr.rel (%p368) target = $region78
        $region77: #{model_forward.1} parent=35 // pred_region
          %s371 = sand.u32 %s17, 1
          %s372 = scalar_lea.sflag [#allocation5], %s371
          %s373 = sand.u32 %s95, 1
          %s374 = smul.addr %s373, 8192
          %s375 = scalar_lea.vmem [#allocation9], %s374
          %s376 = smul.u32 1024, %s17
          %378 = vsyncadd %s372, 0
          %s379 = smul.addr %s376, 8
          %s380 = scalar_lea.hbm %s3, %s379
          %s381 = sshll.u32 %s380, 4
          %s382 = int_to_ptr.hbm [resolvable:$true] %s381
          %s383 = sshll.u32 %s375, 4
          %s384 = int_to_ptr.vmem [resolvable:$true] %s383
          %389 = dma.hbm_to_vmem [thread:$0]  %s382, 131072, %s384, %s372, 128, 128, 8
        $region78: #{model_forward.1} parent=35 // pred_fallthru
          _
      $region36: #{model_forward.1} parent=5 // pred_fallthru
        _
      %p390 = scmp.le.s32.totalorder 1, %s17
      %p391 = scmp.lt.s32.totalorder %s17, 5
      %p392 = pnand %p390, %p391
      %p393 = pneg %p392
      // Predicated region
      $region79: #{model_forward.1} parent=5 // pred_check
        _
      $region80: #{model_forward.1} parent=5 // pred_check_branch
        %395 = sbr.rel (%p392) target = $region82
      $region81: #{model_forward.1} parent=5 // pred_region
        %s396 = ssub.s32 %s17, 1
        %s397 = sand.u32 %s30, 1
        %s398 = sand.u32 %s30, 1
        %s399 = smul.addr %s398, 128
        %s400 = scalar_lea.vmem [#allocation3], %s399
        // Predicated region
        $region83: #{model_forward.1} parent=81 // pred_check
          %p401 = pneg %p43
        $region84: #{model_forward.1} parent=81 // pred_check_branch
          %403 = sbr.rel (%p401) target = $region86
        $region85: #{model_forward.1} parent=81 // pred_region
          _
        $region86: #{model_forward.1} parent=81 // pred_fallthru
          _
        // Predicated region
        $region87: #{model_forward.1} parent=81 // pred_check
          %p404 = pneg %p64
        $region88: #{model_forward.1} parent=81 // pred_check_branch
          %406 = sbr.rel (%p404) target = $region90
        $region89: #{model_forward.1} parent=81 // pred_region
          %408 = dma.done [#allocation5], 64
        $region90: #{model_forward.1} parent=81 // pred_fallthru
          _
        // Predicated region
        $region91: #{model_forward.1} parent=81 // pred_check
          %p409 = pneg %p85
        $region92: #{model_forward.1} parent=81 // pred_check_branch
          %411 = sbr.rel (%p409) target = $region94
        $region93: #{model_forward.1} parent=81 // pred_region
          %413 = dma.done [#allocation8], 16
        $region94: #{model_forward.1} parent=81 // pred_fallthru
          _
        %s414 = sand.u32 %s22, 1
        %s415 = scalar_lea.sflag [#allocation5], %s414
        %s416 = sand.u32 %s98, 1
        %s417 = smul.addr %s416, 8192
        %s418 = scalar_lea.vmem [#allocation9], %s417
        // Predicated region
        $region95: #{model_forward.1} parent=81 // pred_check
          %p419 = pneg %p111
        $region96: #{model_forward.1} parent=81 // pred_check_branch
          %421 = sbr.rel (%p419) target = $region98
        $region97: #{model_forward.1} parent=81 // pred_region
          %423 = dma.done %s415, 131072
        $region98: #{model_forward.1} parent=81 // pred_fallthru
          _
        // Predicated region
        $region99: #{model_forward.1} parent=81 // pred_check
          %p424 = pneg %p132
        $region100: #{model_forward.1} parent=81 // pred_check_branch
          %426 = sbr.rel (%p424) target = $region102
        $region101: #{model_forward.1} parent=81 // pred_region
          %428 = dma.done [#allocation8], 16
        $region102: #{model_forward.1} parent=81 // pred_fallthru
          _
        // Predicated region
        $region103: #{model_forward.1} parent=81 // pred_check
          %p429 = pneg %p174
        $region104: #{model_forward.1} parent=81 // pred_check_branch
          %431 = sbr.rel (%p429) target = $region106
        $region105: #{model_forward.1} parent=81 // pred_region
          %433 = dma.done [#allocation12], 16
        $region106: #{model_forward.1} parent=81 // pred_fallthru
          _
        %s434 = sand.u32 %s30, 1
        %s435 = sand.u32 %s30, 1
        %s436 = smul.addr %s435, 128
        %s437 = scalar_lea.vmem [#allocation3], %s436
        %p438 = pneg %p43
        %p439 = pneg %p40
        %p440 = pneg %p64
        %p441 = pneg %p61
        %p442 = pneg %p85
        %p443 = pneg %p82
        %s444 = sand.u32 %s22, 1
        %s445 = scalar_lea.sflag [#allocation5], %s444
        %s446 = sand.u32 %s98, 1
        %s447 = smul.addr %s446, 8192
        %s448 = scalar_lea.vmem [#allocation9], %s447
        %p449 = pneg %p111
        %p450 = pneg %p108
        %p451 = pneg %p132
        %p452 = pneg %p129
        %p453 = pneg %p153
        %p454 = pneg %p150
        %p455 = pneg %p174
        %p456 = pneg %p171
        %p457 = pneg %p195
        %p458 = pneg %p192
        %s459 = smul.u32 8, %s22
        %s460 = smul.u32 1024, %s22
        %v461 = vld [vmem:[%s400] sm:$0xff]
        %v462 = vld [vmem:[%s400 + $0x8] sm:$0xff]
        %v463 = vld [vmem:[%s400 + $0x10] sm:$0xff]
        %v464 = vld [vmem:[%s400 + $0x18] sm:$0xff]
        %v465 = vld [vmem:[%s400 + $0x20] sm:$0xff]
        %v466 = vld [vmem:[%s400 + $0x28] sm:$0xff]
        %v467 = vld [vmem:[%s400 + $0x30] sm:$0xff]
        %v468 = vld [vmem:[%s400 + $0x38] sm:$0xff]
        %v469 = vld [vmem:[%s400 + $0x40] sm:$0xff]
        %v470 = vld [vmem:[%s400 + $0x48] sm:$0xff]
        %v471 = vld [vmem:[%s400 + $0x50] sm:$0xff]
        %v472 = vld [vmem:[%s400 + $0x58] sm:$0xff]
        %v473 = vld [vmem:[%s400 + $0x60] sm:$0xff]
        %v474 = vld [vmem:[%s400 + $0x68] sm:$0xff]
        %v475 = vld [vmem:[%s400 + $0x70] sm:$0xff]
        %v476 = vld [vmem:[%s400 + $0x78] sm:$0xff]
        %v477 = vld [vmem:[#allocation4] sm:$0x7]
        %v478 = vld [vmem:[#allocation7] sm:$0x1]
        %v480 = vperm.slane %v478, 0
        %vm482 = vcmask 23552
        %v484 = vsel %vm482, %v461, 0
        %v487 = vsel %vm482, %v462, 0
        %v490 = vsel %vm482, %v463, 0
        %v493 = vsel %vm482, %v464, 0
        %v496 = vsel %vm482, %v465, 0
        %v499 = vsel %vm482, %v466, 0
        %v502 = vsel %vm482, %v467, 0
        %v505 = vsel %vm482, %v468, 0
        %v508 = vsel %vm482, %v469, 0
        %v511 = vsel %vm482, %v470, 0
        %v514 = vsel %vm482, %v471, 0
        %v517 = vsel %vm482, %v472, 0
        %v520 = vsel %vm482, %v473, 0
        %v523 = vsel %vm482, %v474, 0
        %v526 = vsel %vm482, %v475, 0
        %v529 = vsel %vm482, %v476, 0
        %vm531 = vcmask 1042432
        %v533 = vsel %vm531, %v477, 0
        %535 = vmatpush.msra.mxu0 0.0
        %536 = vmatpush.msra.mxu0 0.0
        %537 = vmatpush.msra.mxu0 0.0
        %538 = vmatpush.msra.mxu0 0.0
        %539 = vmatpush.msra.mxu0 0.0
        %540 = vmatpush.msra.mxu0 0.0
        %541 = vmatpush.msra.mxu0 0.0
        %542 = vmatpush.msra.mxu0 0.0
        %543 = vmatpush.msra.mxu0 0.0
        %544 = vmatpush.msra.mxu0 0.0
        %545 = vmatpush.msra.mxu0 0.0
        %546 = vmatpush.msra.mxu0 0.0
        %547 = vmatpush.msra.mxu0 0.0
        %548 = vmatpush.msra.mxu0 0.0
        %549 = vmatpush.msra.mxu0 0.0
        %550 = vmatpush.msra.mxu0 %v533
        %551 = vmatmul.f32.gmra.mxu0 %v484
        %v552 = vpop.f32.mrf.mxu0
        %v553 = vadd.f32 %v480, %v552
        %554 = vmatmul.f32.gmra.mxu0 %v487
        %v555 = vpop.f32.mrf.mxu0
        %v556 = vadd.f32 %v480, %v555
        %557 = vmatmul.f32.gmra.mxu0 %v490
        %v558 = vpop.f32.mrf.mxu0
        %v559 = vadd.f32 %v480, %v558
        %560 = vmatmul.f32.gmra.mxu0 %v493
        %v561 = vpop.f32.mrf.mxu0
        %v562 = vadd.f32 %v480, %v561
        %563 = vmatmul.f32.gmra.mxu0 %v496
        %v564 = vpop.f32.mrf.mxu0
        %v565 = vadd.f32 %v480, %v564
        %566 = vmatmul.f32.gmra.mxu0 %v499
        %v567 = vpop.f32.mrf.mxu0
        %v568 = vadd.f32 %v480, %v567
        %569 = vmatmul.f32.gmra.mxu0 %v502
        %v570 = vpop.f32.mrf.mxu0
        %v571 = vadd.f32 %v480, %v570
        %572 = vmatmul.f32.gmra.mxu0 %v505
        %v573 = vpop.f32.mrf.mxu0
        %v574 = vadd.f32 %v480, %v573
        %575 = vmatmul.f32.gmra.mxu0 %v508
        %v576 = vpop.f32.mrf.mxu0
        %v577 = vadd.f32 %v480, %v576
        %578 = vmatmul.f32.gmra.mxu0 %v511
        %v579 = vpop.f32.mrf.mxu0
        %v580 = vadd.f32 %v480, %v579
        %581 = vmatmul.f32.gmra.mxu0 %v514
        %v582 = vpop.f32.mrf.mxu0
        %v583 = vadd.f32 %v480, %v582
        %584 = vmatmul.f32.gmra.mxu0 %v517
        %v585 = vpop.f32.mrf.mxu0
        %v586 = vadd.f32 %v480, %v585
        %587 = vmatmul.f32.gmra.mxu0 %v520
        %v588 = vpop.f32.mrf.mxu0
        %v589 = vadd.f32 %v480, %v588
        %590 = vmatmul.f32.gmra.mxu0 %v523
        %v591 = vpop.f32.mrf.mxu0
        %v592 = vadd.f32 %v480, %v591
        %593 = vmatmul.f32.gmra.mxu0 %v526
        %v594 = vpop.f32.mrf.mxu0
        %v595 = vadd.f32 %v480, %v594
        %596 = vmatmul.f32.gmra.mxu0 %v529
        %v597 = vpop.f32.mrf.mxu0
        %v598 = vadd.f32 %v480, %v597
        %599 = vdwg.mxu0
        %v600 = vmax.f32 %v553, 0.0
        %v601 = vmax.f32 %v556, 0.0
        %v602 = vmax.f32 %v559, 0.0
        %v603 = vmax.f32 %v562, 0.0
        %v604 = vmax.f32 %v565, 0.0
        %v605 = vmax.f32 %v568, 0.0
        %v606 = vmax.f32 %v571, 0.0
        %v607 = vmax.f32 %v574, 0.0
        %v608 = vmax.f32 %v577, 0.0
        %v609 = vmax.f32 %v580, 0.0
        %v610 = vmax.f32 %v583, 0.0
        %v611 = vmax.f32 %v586, 0.0
        %v612 = vmax.f32 %v589, 0.0
        %v613 = vmax.f32 %v592, 0.0
        %v614 = vmax.f32 %v595, 0.0
        %v615 = vmax.f32 %v598, 0.0
        %v616 = vld [vmem:[%s418] sm:$0xff]
        %v617 = vld [vmem:[%s418 + $0x8] sm:$0xff]
        %v618 = vld [vmem:[%s418 + $0x10] sm:$0xff]
        %v619 = vld [vmem:[%s418 + $0x18] sm:$0xff]
        %v620 = vld [vmem:[%s418 + $0x20] sm:$0xff]
        %v621 = vld [vmem:[%s418 + $0x28] sm:$0xff]
        %v622 = vld [vmem:[%s418 + $0x30] sm:$0xff]
        %v623 = vld [vmem:[%s418 + $0x38] sm:$0xff]
        %v624 = vld [vmem:[%s418 + $0x40] sm:$0xff]
        %v625 = vld [vmem:[%s418 + $0x48] sm:$0xff]
        %v626 = vld [vmem:[%s418 + $0x50] sm:$0xff]
        %v627 = vld [vmem:[%s418 + $0x58] sm:$0xff]
        %v628 = vld [vmem:[%s418 + $0x60] sm:$0xff]
        %v629 = vld [vmem:[%s418 + $0x68] sm:$0xff]
        %v630 = vld [vmem:[%s418 + $0x70] sm:$0xff]
        %v631 = vld [vmem:[%s418 + $0x78] sm:$0xff]
        %v632 = vld [vmem:[%s418 + $0x80] sm:$0xff]
        %v633 = vld [vmem:[%s418 + $0x88] sm:$0xff]
        %v634 = vld [vmem:[%s418 + $0x90] sm:$0xff]
        %v635 = vld [vmem:[%s418 + $0x98] sm:$0xff]
        %v636 = vld [vmem:[%s418 + $0xa0] sm:$0xff]
        %v637 = vld [vmem:[%s418 + $0xa8] sm:$0xff]
        %v638 = vld [vmem:[%s418 + $0xb0] sm:$0xff]
        %v639 = vld [vmem:[%s418 + $0xb8] sm:$0xff]
        %v640 = vld [vmem:[%s418 + $0xc0] sm:$0xff]
        %v641 = vld [vmem:[%s418 + $0xc8] sm:$0xff]
        %v642 = vld [vmem:[%s418 + $0xd0] sm:$0xff]
        %v643 = vld [vmem:[%s418 + $0xd8] sm:$0xff]
        %v644 = vld [vmem:[%s418 + $0xe0] sm:$0xff]
        %v645 = vld [vmem:[%s418 + $0xe8] sm:$0xff]
        %v646 = vld [vmem:[%s418 + $0xf0] sm:$0xff]
        %v647 = vld [vmem:[%s418 + $0xf8] sm:$0xff]
        %v648 = vld [vmem:[%s418 + $0x100] sm:$0xff]
        %v649 = vld [vmem:[%s418 + $0x108] sm:$0xff]
        %v650 = vld [vmem:[%s418 + $0x110] sm:$0xff]
        %v651 = vld [vmem:[%s418 + $0x118] sm:$0xff]
        %v652 = vld [vmem:[%s418 + $0x120] sm:$0xff]
        %v653 = vld [vmem:[%s418 + $0x128] sm:$0xff]
        %v654 = vld [vmem:[%s418 + $0x130] sm:$0xff]
        %v655 = vld [vmem:[%s418 + $0x138] sm:$0xff]
        %v656 = vld [vmem:[%s418 + $0x140] sm:$0xff]
        %v657 = vld [vmem:[%s418 + $0x148] sm:$0xff]
        %v658 = vld [vmem:[%s418 + $0x150] sm:$0xff]
        %v659 = vld [vmem:[%s418 + $0x158] sm:$0xff]
        %v660 = vld [vmem:[%s418 + $0x160] sm:$0xff]
        %v661 = vld [vmem:[%s418 + $0x168] sm:$0xff]
        %v662 = vld [vmem:[%s418 + $0x170] sm:$0xff]
        %v663 = vld [vmem:[%s418 + $0x178] sm:$0xff]
        %v664 = vld [vmem:[%s418 + $0x180] sm:$0xff]
        %v665 = vld [vmem:[%s418 + $0x188] sm:$0xff]
        %v666 = vld [vmem:[%s418 + $0x190] sm:$0xff]
        %v667 = vld [vmem:[%s418 + $0x198] sm:$0xff]
        %v668 = vld [vmem:[%s418 + $0x1a0] sm:$0xff]
        %v669 = vld [vmem:[%s418 + $0x1a8] sm:$0xff]
        %v670 = vld [vmem:[%s418 + $0x1b0] sm:$0xff]
        %v671 = vld [vmem:[%s418 + $0x1b8] sm:$0xff]
        %v672 = vld [vmem:[%s418 + $0x1c0] sm:$0xff]
        %v673 = vld [vmem:[%s418 + $0x1c8] sm:$0xff]
        %v674 = vld [vmem:[%s418 + $0x1d0] sm:$0xff]
        %v675 = vld [vmem:[%s418 + $0x1d8] sm:$0xff]
        %v676 = vld [vmem:[%s418 + $0x1e0] sm:$0xff]
        %v677 = vld [vmem:[%s418 + $0x1e8] sm:$0xff]
        %v678 = vld [vmem:[%s418 + $0x1f0] sm:$0xff]
        %v679 = vld [vmem:[%s418 + $0x1f8] sm:$0xff]
        %v680 = vld [vmem:[%s418 + $0x200] sm:$0xff]
        %v681 = vld [vmem:[%s418 + $0x208] sm:$0xff]
        %v682 = vld [vmem:[%s418 + $0x210] sm:$0xff]
        %v683 = vld [vmem:[%s418 + $0x218] sm:$0xff]
        %v684 = vld [vmem:[%s418 + $0x220] sm:$0xff]
        %v685 = vld [vmem:[%s418 + $0x228] sm:$0xff]
        %v686 = vld [vmem:[%s418 + $0x230] sm:$0xff]
        %v687 = vld [vmem:[%s418 + $0x238] sm:$0xff]
        %v688 = vld [vmem:[%s418 + $0x240] sm:$0xff]
        %v689 = vld [vmem:[%s418 + $0x248] sm:$0xff]
        %v690 = vld [vmem:[%s418 + $0x250] sm:$0xff]
        %v691 = vld [vmem:[%s418 + $0x258] sm:$0xff]
        %v692 = vld [vmem:[%s418 + $0x260] sm:$0xff]
        %v693 = vld [vmem:[%s418 + $0x268] sm:$0xff]
        %v694 = vld [vmem:[%s418 + $0x270] sm:$0xff]
        %v695 = vld [vmem:[%s418 + $0x278] sm:$0xff]
        %v696 = vld [vmem:[%s418 + $0x280] sm:$0xff]
        %v697 = vld [vmem:[%s418 + $0x288] sm:$0xff]
        %v698 = vld [vmem:[%s418 + $0x290] sm:$0xff]
        %v699 = vld [vmem:[%s418 + $0x298] sm:$0xff]
        %v700 = vld [vmem:[%s418 + $0x2a0] sm:$0xff]
        %v701 = vld [vmem:[%s418 + $0x2a8] sm:$0xff]
        %v702 = vld [vmem:[%s418 + $0x2b0] sm:$0xff]
        %v703 = vld [vmem:[%s418 + $0x2b8] sm:$0xff]
        %v704 = vld [vmem:[%s418 + $0x2c0] sm:$0xff]
        %v705 = vld [vmem:[%s418 + $0x2c8] sm:$0xff]
        %v706 = vld [vmem:[%s418 + $0x2d0] sm:$0xff]
        %v707 = vld [vmem:[%s418 + $0x2d8] sm:$0xff]
        %v708 = vld [vmem:[%s418 + $0x2e0] sm:$0xff]
        %v709 = vld [vmem:[%s418 + $0x2e8] sm:$0xff]
        %v710 = vld [vmem:[%s418 + $0x2f0] sm:$0xff]
        %v711 = vld [vmem:[%s418 + $0x2f8] sm:$0xff]
        %v712 = vld [vmem:[%s418 + $0x300] sm:$0xff]
        %v713 = vld [vmem:[%s418 + $0x308] sm:$0xff]
        %v714 = vld [vmem:[%s418 + $0x310] sm:$0xff]
        %v715 = vld [vmem:[%s418 + $0x318] sm:$0xff]
        %v716 = vld [vmem:[%s418 + $0x320] sm:$0xff]
        %v717 = vld [vmem:[%s418 + $0x328] sm:$0xff]
        %v718 = vld [vmem:[%s418 + $0x330] sm:$0xff]
        %v719 = vld [vmem:[%s418 + $0x338] sm:$0xff]
        %v720 = vld [vmem:[%s418 + $0x340] sm:$0xff]
        %v721 = vld [vmem:[%s418 + $0x348] sm:$0xff]
        %v722 = vld [vmem:[%s418 + $0x350] sm:$0xff]
        %v723 = vld [vmem:[%s418 + $0x358] sm:$0xff]
        %v724 = vld [vmem:[%s418 + $0x360] sm:$0xff]
        %v725 = vld [vmem:[%s418 + $0x368] sm:$0xff]
        %v726 = vld [vmem:[%s418 + $0x370] sm:$0xff]
        %v727 = vld [vmem:[%s418 + $0x378] sm:$0xff]
        %v728 = vld [vmem:[%s418 + $0x380] sm:$0xff]
        %v729 = vld [vmem:[%s418 + $0x388] sm:$0xff]
        %v730 = vld [vmem:[%s418 + $0x390] sm:$0xff]
        %v731 = vld [vmem:[%s418 + $0x398] sm:$0xff]
        %v732 = vld [vmem:[%s418 + $0x3a0] sm:$0xff]
        %v733 = vld [vmem:[%s418 + $0x3a8] sm:$0xff]
        %v734 = vld [vmem:[%s418 + $0x3b0] sm:$0xff]
        %v735 = vld [vmem:[%s418 + $0x3b8] sm:$0xff]
        %v736 = vld [vmem:[%s418 + $0x3c0] sm:$0xff]
        %v737 = vld [vmem:[%s418 + $0x3c8] sm:$0xff]
        %v738 = vld [vmem:[%s418 + $0x3d0] sm:$0xff]
        %v739 = vld [vmem:[%s418 + $0x3d8] sm:$0xff]
        %v740 = vld [vmem:[%s418 + $0x3e0] sm:$0xff]
        %v741 = vld [vmem:[%s418 + $0x3e8] sm:$0xff]
        %v742 = vld [vmem:[%s418 + $0x3f0] sm:$0xff]
        %v743 = vld [vmem:[%s418 + $0x3f8] sm:$0xff]
        %v744 = vld [vmem:[%s418 + $0x400] sm:$0xff]
        %v745 = vld [vmem:[%s418 + $0x408] sm:$0xff]
        %v746 = vld [vmem:[%s418 + $0x410] sm:$0xff]
        %v747 = vld [vmem:[%s418 + $0x418] sm:$0xff]
        %v748 = vld [vmem:[%s418 + $0x420] sm:$0xff]
        %v749 = vld [vmem:[%s418 + $0x428] sm:$0xff]
        %v750 = vld [vmem:[%s418 + $0x430] sm:$0xff]
        %v751 = vld [vmem:[%s418 + $0x438] sm:$0xff]
        %v752 = vld [vmem:[%s418 + $0x440] sm:$0xff]
        %v753 = vld [vmem:[%s418 + $0x448] sm:$0xff]
        %v754 = vld [vmem:[%s418 + $0x450] sm:$0xff]
        %v755 = vld [vmem:[%s418 + $0x458] sm:$0xff]
        %v756 = vld [vmem:[%s418 + $0x460] sm:$0xff]
        %v757 = vld [vmem:[%s418 + $0x468] sm:$0xff]
        %v758 = vld [vmem:[%s418 + $0x470] sm:$0xff]
        %v759 = vld [vmem:[%s418 + $0x478] sm:$0xff]
        %v760 = vld [vmem:[%s418 + $0x480] sm:$0xff]
        %v761 = vld [vmem:[%s418 + $0x488] sm:$0xff]
        %v762 = vld [vmem:[%s418 + $0x490] sm:$0xff]
        %v763 = vld [vmem:[%s418 + $0x498] sm:$0xff]
        %v764 = vld [vmem:[%s418 + $0x4a0] sm:$0xff]
        %v765 = vld [vmem:[%s418 + $0x4a8] sm:$0xff]
        %v766 = vld [vmem:[%s418 + $0x4b0] sm:$0xff]
        %v767 = vld [vmem:[%s418 + $0x4b8] sm:$0xff]
        %v768 = vld [vmem:[%s418 + $0x4c0] sm:$0xff]
        %v769 = vld [vmem:[%s418 + $0x4c8] sm:$0xff]
        %v770 = vld [vmem:[%s418 + $0x4d0] sm:$0xff]
        %v771 = vld [vmem:[%s418 + $0x4d8] sm:$0xff]
        %v772 = vld [vmem:[%s418 + $0x4e0] sm:$0xff]
        %v773 = vld [vmem:[%s418 + $0x4e8] sm:$0xff]
        %v774 = vld [vmem:[%s418 + $0x4f0] sm:$0xff]
        %v775 = vld [vmem:[%s418 + $0x4f8] sm:$0xff]
        %v776 = vld [vmem:[%s418 + $0x500] sm:$0xff]
        %v777 = vld [vmem:[%s418 + $0x508] sm:$0xff]
        %v778 = vld [vmem:[%s418 + $0x510] sm:$0xff]
        %v779 = vld [vmem:[%s418 + $0x518] sm:$0xff]
        %v780 = vld [vmem:[%s418 + $0x520] sm:$0xff]
        %v781 = vld [vmem:[%s418 + $0x528] sm:$0xff]
        %v782 = vld [vmem:[%s418 + $0x530] sm:$0xff]
        %v783 = vld [vmem:[%s418 + $0x538] sm:$0xff]
        %v784 = vld [vmem:[%s418 + $0x540] sm:$0xff]
        %v785 = vld [vmem:[%s418 + $0x548] sm:$0xff]
        %v786 = vld [vmem:[%s418 + $0x550] sm:$0xff]
        %v787 = vld [vmem:[%s418 + $0x558] sm:$0xff]
        %v788 = vld [vmem:[%s418 + $0x560] sm:$0xff]
        %v789 = vld [vmem:[%s418 + $0x568] sm:$0xff]
        %v790 = vld [vmem:[%s418 + $0x570] sm:$0xff]
        %v791 = vld [vmem:[%s418 + $0x578] sm:$0xff]
        %v792 = vld [vmem:[%s418 + $0x580] sm:$0xff]
        %v793 = vld [vmem:[%s418 + $0x588] sm:$0xff]
        %v794 = vld [vmem:[%s418 + $0x590] sm:$0xff]
        %v795 = vld [vmem:[%s418 + $0x598] sm:$0xff]
        %v796 = vld [vmem:[%s418 + $0x5a0] sm:$0xff]
        %v797 = vld [vmem:[%s418 + $0x5a8] sm:$0xff]
        %v798 = vld [vmem:[%s418 + $0x5b0] sm:$0xff]
        %v799 = vld [vmem:[%s418 + $0x5b8] sm:$0xff]
        %v800 = vld [vmem:[%s418 + $0x5c0] sm:$0xff]
        %v801 = vld [vmem:[%s418 + $0x5c8] sm:$0xff]
        %v802 = vld [vmem:[%s418 + $0x5d0] sm:$0xff]
        %v803 = vld [vmem:[%s418 + $0x5d8] sm:$0xff]
        %v804 = vld [vmem:[%s418 + $0x5e0] sm:$0xff]
        %v805 = vld [vmem:[%s418 + $0x5e8] sm:$0xff]
        %v806 = vld [vmem:[%s418 + $0x5f0] sm:$0xff]
        %v807 = vld [vmem:[%s418 + $0x5f8] sm:$0xff]
        %v808 = vld [vmem:[%s418 + $0x600] sm:$0xff]
        %v809 = vld [vmem:[%s418 + $0x608] sm:$0xff]
        %v810 = vld [vmem:[%s418 + $0x610] sm:$0xff]
        %v811 = vld [vmem:[%s418 + $0x618] sm:$0xff]
        %v812 = vld [vmem:[%s418 + $0x620] sm:$0xff]
        %v813 = vld [vmem:[%s418 + $0x628] sm:$0xff]
        %v814 = vld [vmem:[%s418 + $0x630] sm:$0xff]
        %v815 = vld [vmem:[%s418 + $0x638] sm:$0xff]
        %v816 = vld [vmem:[%s418 + $0x640] sm:$0xff]
        %v817 = vld [vmem:[%s418 + $0x648] sm:$0xff]
        %v818 = vld [vmem:[%s418 + $0x650] sm:$0xff]
        %v819 = vld [vmem:[%s418 + $0x658] sm:$0xff]
        %v820 = vld [vmem:[%s418 + $0x660] sm:$0xff]
        %v821 = vld [vmem:[%s418 + $0x668] sm:$0xff]
        %v822 = vld [vmem:[%s418 + $0x670] sm:$0xff]
        %v823 = vld [vmem:[%s418 + $0x678] sm:$0xff]
        %v824 = vld [vmem:[%s418 + $0x680] sm:$0xff]
        %v825 = vld [vmem:[%s418 + $0x688] sm:$0xff]
        %v826 = vld [vmem:[%s418 + $0x690] sm:$0xff]
        %v827 = vld [vmem:[%s418 + $0x698] sm:$0xff]
        %v828 = vld [vmem:[%s418 + $0x6a0] sm:$0xff]
        %v829 = vld [vmem:[%s418 + $0x6a8] sm:$0xff]
        %v830 = vld [vmem:[%s418 + $0x6b0] sm:$0xff]
        %v831 = vld [vmem:[%s418 + $0x6b8] sm:$0xff]
        %v832 = vld [vmem:[%s418 + $0x6c0] sm:$0xff]
        %v833 = vld [vmem:[%s418 + $0x6c8] sm:$0xff]
        %v834 = vld [vmem:[%s418 + $0x6d0] sm:$0xff]
        %v835 = vld [vmem:[%s418 + $0x6d8] sm:$0xff]
        %v836 = vld [vmem:[%s418 + $0x6e0] sm:$0xff]
        %v837 = vld [vmem:[%s418 + $0x6e8] sm:$0xff]
        %v838 = vld [vmem:[%s418 + $0x6f0] sm:$0xff]
        %v839 = vld [vmem:[%s418 + $0x6f8] sm:$0xff]
        %v840 = vld [vmem:[%s418 + $0x700] sm:$0xff]
        %v841 = vld [vmem:[%s418 + $0x708] sm:$0xff]
        %v842 = vld [vmem:[%s418 + $0x710] sm:$0xff]
        %v843 = vld [vmem:[%s418 + $0x718] sm:$0xff]
        %v844 = vld [vmem:[%s418 + $0x720] sm:$0xff]
        %v845 = vld [vmem:[%s418 + $0x728] sm:$0xff]
        %v846 = vld [vmem:[%s418 + $0x730] sm:$0xff]
        %v847 = vld [vmem:[%s418 + $0x738] sm:$0xff]
        %v848 = vld [vmem:[%s418 + $0x740] sm:$0xff]
        %v849 = vld [vmem:[%s418 + $0x748] sm:$0xff]
        %v850 = vld [vmem:[%s418 + $0x750] sm:$0xff]
        %v851 = vld [vmem:[%s418 + $0x758] sm:$0xff]
        %v852 = vld [vmem:[%s418 + $0x760] sm:$0xff]
        %v853 = vld [vmem:[%s418 + $0x768] sm:$0xff]
        %v854 = vld [vmem:[%s418 + $0x770] sm:$0xff]
        %v855 = vld [vmem:[%s418 + $0x778] sm:$0xff]
        %v856 = vld [vmem:[%s418 + $0x780] sm:$0xff]
        %v857 = vld [vmem:[%s418 + $0x788] sm:$0xff]
        %v858 = vld [vmem:[%s418 + $0x790] sm:$0xff]
        %v859 = vld [vmem:[%s418 + $0x798] sm:$0xff]
        %v860 = vld [vmem:[%s418 + $0x7a0] sm:$0xff]
        %v861 = vld [vmem:[%s418 + $0x7a8] sm:$0xff]
        %v862 = vld [vmem:[%s418 + $0x7b0] sm:$0xff]
        %v863 = vld [vmem:[%s418 + $0x7b8] sm:$0xff]
        %v864 = vld [vmem:[%s418 + $0x7c0] sm:$0xff]
        %v865 = vld [vmem:[%s418 + $0x7c8] sm:$0xff]
        %v866 = vld [vmem:[%s418 + $0x7d0] sm:$0xff]
        %v867 = vld [vmem:[%s418 + $0x7d8] sm:$0xff]
        %v868 = vld [vmem:[%s418 + $0x7e0] sm:$0xff]
        %v869 = vld [vmem:[%s418 + $0x7e8] sm:$0xff]
        %v870 = vld [vmem:[%s418 + $0x7f0] sm:$0xff]
        %v871 = vld [vmem:[%s418 + $0x7f8] sm:$0xff]
        %v872 = vld [vmem:[%s418 + $0x800] sm:$0xff]
        %v873 = vld [vmem:[%s418 + $0x808] sm:$0xff]
        %v874 = vld [vmem:[%s418 + $0x810] sm:$0xff]
        %v875 = vld [vmem:[%s418 + $0x818] sm:$0xff]
        %v876 = vld [vmem:[%s418 + $0x820] sm:$0xff]
        %v877 = vld [vmem:[%s418 + $0x828] sm:$0xff]
        %v878 = vld [vmem:[%s418 + $0x830] sm:$0xff]
        %v879 = vld [vmem:[%s418 + $0x838] sm:$0xff]
        %v880 = vld [vmem:[%s418 + $0x840] sm:$0xff]
        %v881 = vld [vmem:[%s418 + $0x848] sm:$0xff]
        %v882 = vld [vmem:[%s418 + $0x850] sm:$0xff]
        %v883 = vld [vmem:[%s418 + $0x858] sm:$0xff]
        %v884 = vld [vmem:[%s418 + $0x860] sm:$0xff]
        %v885 = vld [vmem:[%s418 + $0x868] sm:$0xff]
        %v886 = vld [vmem:[%s418 + $0x870] sm:$0xff]
        %v887 = vld [vmem:[%s418 + $0x878] sm:$0xff]
        %v888 = vld [vmem:[%s418 + $0x880] sm:$0xff]
        %v889 = vld [vmem:[%s418 + $0x888] sm:$0xff]
        %v890 = vld [vmem:[%s418 + $0x890] sm:$0xff]
        %v891 = vld [vmem:[%s418 + $0x898] sm:$0xff]
        %v892 = vld [vmem:[%s418 + $0x8a0] sm:$0xff]
        %v893 = vld [vmem:[%s418 + $0x8a8] sm:$0xff]
        %v894 = vld [vmem:[%s418 + $0x8b0] sm:$0xff]
        %v895 = vld [vmem:[%s418 + $0x8b8] sm:$0xff]
        %v896 = vld [vmem:[%s418 + $0x8c0] sm:$0xff]
        %v897 = vld [vmem:[%s418 + $0x8c8] sm:$0xff]
        %v898 = vld [vmem:[%s418 + $0x8d0] sm:$0xff]
        %v899 = vld [vmem:[%s418 + $0x8d8] sm:$0xff]
        %v900 = vld [vmem:[%s418 + $0x8e0] sm:$0xff]
        %v901 = vld [vmem:[%s418 + $0x8e8] sm:$0xff]
        %v902 = vld [vmem:[%s418 + $0x8f0] sm:$0xff]
        %v903 = vld [vmem:[%s418 + $0x8f8] sm:$0xff]
        %v904 = vld [vmem:[%s418 + $0x900] sm:$0xff]
        %v905 = vld [vmem:[%s418 + $0x908] sm:$0xff]
        %v906 = vld [vmem:[%s418 + $0x910] sm:$0xff]
        %v907 = vld [vmem:[%s418 + $0x918] sm:$0xff]
        %v908 = vld [vmem:[%s418 + $0x920] sm:$0xff]
        %v909 = vld [vmem:[%s418 + $0x928] sm:$0xff]
        %v910 = vld [vmem:[%s418 + $0x930] sm:$0xff]
        %v911 = vld [vmem:[%s418 + $0x938] sm:$0xff]
        %v912 = vld [vmem:[%s418 + $0x940] sm:$0xff]
        %v913 = vld [vmem:[%s418 + $0x948] sm:$0xff]
        %v914 = vld [vmem:[%s418 + $0x950] sm:$0xff]
        %v915 = vld [vmem:[%s418 + $0x958] sm:$0xff]
        %v916 = vld [vmem:[%s418 + $0x960] sm:$0xff]
        %v917 = vld [vmem:[%s418 + $0x968] sm:$0xff]
        %v918 = vld [vmem:[%s418 + $0x970] sm:$0xff]
        %v919 = vld [vmem:[%s418 + $0x978] sm:$0xff]
        %v920 = vld [vmem:[%s418 + $0x980] sm:$0xff]
        %v921 = vld [vmem:[%s418 + $0x988] sm:$0xff]
        %v922 = vld [vmem:[%s418 + $0x990] sm:$0xff]
        %v923 = vld [vmem:[%s418 + $0x998] sm:$0xff]
        %v924 = vld [vmem:[%s418 + $0x9a0] sm:$0xff]
        %v925 = vld [vmem:[%s418 + $0x9a8] sm:$0xff]
        %v926 = vld [vmem:[%s418 + $0x9b0] sm:$0xff]
        %v927 = vld [vmem:[%s418 + $0x9b8] sm:$0xff]
        %v928 = vld [vmem:[%s418 + $0x9c0] sm:$0xff]
        %v929 = vld [vmem:[%s418 + $0x9c8] sm:$0xff]
        %v930 = vld [vmem:[%s418 + $0x9d0] sm:$0xff]
        %v931 = vld [vmem:[%s418 + $0x9d8] sm:$0xff]
        %v932 = vld [vmem:[%s418 + $0x9e0] sm:$0xff]
        %v933 = vld [vmem:[%s418 + $0x9e8] sm:$0xff]
        %v934 = vld [vmem:[%s418 + $0x9f0] sm:$0xff]
        %v935 = vld [vmem:[%s418 + $0x9f8] sm:$0xff]
        %v936 = vld [vmem:[%s418 + $0xa00] sm:$0xff]
        %v937 = vld [vmem:[%s418 + $0xa08] sm:$0xff]
        %v938 = vld [vmem:[%s418 + $0xa10] sm:$0xff]
        %v939 = vld [vmem:[%s418 + $0xa18] sm:$0xff]
        %v940 = vld [vmem:[%s418 + $0xa20] sm:$0xff]
        %v941 = vld [vmem:[%s418 + $0xa28] sm:$0xff]
        %v942 = vld [vmem:[%s418 + $0xa30] sm:$0xff]
        %v943 = vld [vmem:[%s418 + $0xa38] sm:$0xff]
        %v944 = vld [vmem:[%s418 + $0xa40] sm:$0xff]
        %v945 = vld [vmem:[%s418 + $0xa48] sm:$0xff]
        %v946 = vld [vmem:[%s418 + $0xa50] sm:$0xff]
        %v947 = vld [vmem:[%s418 + $0xa58] sm:$0xff]
        %v948 = vld [vmem:[%s418 + $0xa60] sm:$0xff]
        %v949 = vld [vmem:[%s418 + $0xa68] sm:$0xff]
        %v950 = vld [vmem:[%s418 + $0xa70] sm:$0xff]
        %v951 = vld [vmem:[%s418 + $0xa78] sm:$0xff]
        %v952 = vld [vmem:[%s418 + $0xa80] sm:$0xff]
        %v953 = vld [vmem:[%s418 + $0xa88] sm:$0xff]
        %v954 = vld [vmem:[%s418 + $0xa90] sm:$0xff]
        %v955 = vld [vmem:[%s418 + $0xa98] sm:$0xff]
        %v956 = vld [vmem:[%s418 + $0xaa0] sm:$0xff]
        %v957 = vld [vmem:[%s418 + $0xaa8] sm:$0xff]
        %v958 = vld [vmem:[%s418 + $0xab0] sm:$0xff]
        %v959 = vld [vmem:[%s418 + $0xab8] sm:$0xff]
        %v960 = vld [vmem:[%s418 + $0xac0] sm:$0xff]
        %v961 = vld [vmem:[%s418 + $0xac8] sm:$0xff]
        %v962 = vld [vmem:[%s418 + $0xad0] sm:$0xff]
        %v963 = vld [vmem:[%s418 + $0xad8] sm:$0xff]
        %v964 = vld [vmem:[%s418 + $0xae0] sm:$0xff]
        %v965 = vld [vmem:[%s418 + $0xae8] sm:$0xff]
        %v966 = vld [vmem:[%s418 + $0xaf0] sm:$0xff]
        %v967 = vld [vmem:[%s418 + $0xaf8] sm:$0xff]
        %v968 = vld [vmem:[%s418 + $0xb00] sm:$0xff]
        %v969 = vld [vmem:[%s418 + $0xb08] sm:$0xff]
        %v970 = vld [vmem:[%s418 + $0xb10] sm:$0xff]
        %v971 = vld [vmem:[%s418 + $0xb18] sm:$0xff]
        %v972 = vld [vmem:[%s418 + $0xb20] sm:$0xff]
        %v973 = vld [vmem:[%s418 + $0xb28] sm:$0xff]
        %v974 = vld [vmem:[%s418 + $0xb30] sm:$0xff]
        %v975 = vld [vmem:[%s418 + $0xb38] sm:$0xff]
        %v976 = vld [vmem:[%s418 + $0xb40] sm:$0xff]
        %v977 = vld [vmem:[%s418 + $0xb48] sm:$0xff]
        %v978 = vld [vmem:[%s418 + $0xb50] sm:$0xff]
        %v979 = vld [vmem:[%s418 + $0xb58] sm:$0xff]
        %v980 = vld [vmem:[%s418 + $0xb60] sm:$0xff]
        %v981 = vld [vmem:[%s418 + $0xb68] sm:$0xff]
        %v982 = vld [vmem:[%s418 + $0xb70] sm:$0xff]
        %v983 = vld [vmem:[%s418 + $0xb78] sm:$0xff]
        %v984 = vld [vmem:[%s418 + $0xb80] sm:$0xff]
        %v985 = vld [vmem:[%s418 + $0xb88] sm:$0xff]
        %v986 = vld [vmem:[%s418 + $0xb90] sm:$0xff]
        %v987 = vld [vmem:[%s418 + $0xb98] sm:$0xff]
        %v988 = vld [vmem:[%s418 + $0xba0] sm:$0xff]
        %v989 = vld [vmem:[%s418 + $0xba8] sm:$0xff]
        %v990 = vld [vmem:[%s418 + $0xbb0] sm:$0xff]
        %v991 = vld [vmem:[%s418 + $0xbb8] sm:$0xff]
        %v992 = vld [vmem:[%s418 + $0xbc0] sm:$0xff]
        %v993 = vld [vmem:[%s418 + $0xbc8] sm:$0xff]
        %v994 = vld [vmem:[%s418 + $0xbd0] sm:$0xff]
        %v995 = vld [vmem:[%s418 + $0xbd8] sm:$0xff]
        %v996 = vld [vmem:[%s418 + $0xbe0] sm:$0xff]
        %v997 = vld [vmem:[%s418 + $0xbe8] sm:$0xff]
        %v998 = vld [vmem:[%s418 + $0xbf0] sm:$0xff]
        %v999 = vld [vmem:[%s418 + $0xbf8] sm:$0xff]
        %v1000 = vld [vmem:[%s418 + $0xc00] sm:$0xff]
        %v1001 = vld [vmem:[%s418 + $0xc08] sm:$0xff]
        %v1002 = vld [vmem:[%s418 + $0xc10] sm:$0xff]
        %v1003 = vld [vmem:[%s418 + $0xc18] sm:$0xff]
        %v1004 = vld [vmem:[%s418 + $0xc20] sm:$0xff]
        %v1005 = vld [vmem:[%s418 + $0xc28] sm:$0xff]
        %v1006 = vld [vmem:[%s418 + $0xc30] sm:$0xff]
        %v1007 = vld [vmem:[%s418 + $0xc38] sm:$0xff]
        %v1008 = vld [vmem:[%s418 + $0xc40] sm:$0xff]
        %v1009 = vld [vmem:[%s418 + $0xc48] sm:$0xff]
        %v1010 = vld [vmem:[%s418 + $0xc50] sm:$0xff]
        %v1011 = vld [vmem:[%s418 + $0xc58] sm:$0xff]
        %v1012 = vld [vmem:[%s418 + $0xc60] sm:$0xff]
        %v1013 = vld [vmem:[%s418 + $0xc68] sm:$0xff]
        %v1014 = vld [vmem:[%s418 + $0xc70] sm:$0xff]
        %v1015 = vld [vmem:[%s418 + $0xc78] sm:$0xff]
        %v1016 = vld [vmem:[%s418 + $0xc80] sm:$0xff]
        %v1017 = vld [vmem:[%s418 + $0xc88] sm:$0xff]
        %v1018 = vld [vmem:[%s418 + $0xc90] sm:$0xff]
        %v1019 = vld [vmem:[%s418 + $0xc98] sm:$0xff]
        %v1020 = vld [vmem:[%s418 + $0xca0] sm:$0xff]
        %v1021 = vld [vmem:[%s418 + $0xca8] sm:$0xff]
        %v1022 = vld [vmem:[%s418 + $0xcb0] sm:$0xff]
        %v1023 = vld [vmem:[%s418 + $0xcb8] sm:$0xff]
        %v1024 = vld [vmem:[%s418 + $0xcc0] sm:$0xff]
        %v1025 = vld [vmem:[%s418 + $0xcc8] sm:$0xff]
        %v1026 = vld [vmem:[%s418 + $0xcd0] sm:$0xff]
        %v1027 = vld [vmem:[%s418 + $0xcd8] sm:$0xff]
        %v1028 = vld [vmem:[%s418 + $0xce0] sm:$0xff]
        %v1029 = vld [vmem:[%s418 + $0xce8] sm:$0xff]
        %v1030 = vld [vmem:[%s418 + $0xcf0] sm:$0xff]
        %v1031 = vld [vmem:[%s418 + $0xcf8] sm:$0xff]
        %v1032 = vld [vmem:[%s418 + $0xd00] sm:$0xff]
        %v1033 = vld [vmem:[%s418 + $0xd08] sm:$0xff]
        %v1034 = vld [vmem:[%s418 + $0xd10] sm:$0xff]
        %v1035 = vld [vmem:[%s418 + $0xd18] sm:$0xff]
        %v1036 = vld [vmem:[%s418 + $0xd20] sm:$0xff]
        %v1037 = vld [vmem:[%s418 + $0xd28] sm:$0xff]
        %v1038 = vld [vmem:[%s418 + $0xd30] sm:$0xff]
        %v1039 = vld [vmem:[%s418 + $0xd38] sm:$0xff]
        %v1040 = vld [vmem:[%s418 + $0xd40] sm:$0xff]
        %v1041 = vld [vmem:[%s418 + $0xd48] sm:$0xff]
        %v1042 = vld [vmem:[%s418 + $0xd50] sm:$0xff]
        %v1043 = vld [vmem:[%s418 + $0xd58] sm:$0xff]
        %v1044 = vld [vmem:[%s418 + $0xd60] sm:$0xff]
        %v1045 = vld [vmem:[%s418 + $0xd68] sm:$0xff]
        %v1046 = vld [vmem:[%s418 + $0xd70] sm:$0xff]
        %v1047 = vld [vmem:[%s418 + $0xd78] sm:$0xff]
        %v1048 = vld [vmem:[%s418 + $0xd80] sm:$0xff]
        %v1049 = vld [vmem:[%s418 + $0xd88] sm:$0xff]
        %v1050 = vld [vmem:[%s418 + $0xd90] sm:$0xff]
        %v1051 = vld [vmem:[%s418 + $0xd98] sm:$0xff]
        %v1052 = vld [vmem:[%s418 + $0xda0] sm:$0xff]
        %v1053 = vld [vmem:[%s418 + $0xda8] sm:$0xff]
        %v1054 = vld [vmem:[%s418 + $0xdb0] sm:$0xff]
        %v1055 = vld [vmem:[%s418 + $0xdb8] sm:$0xff]
        %v1056 = vld [vmem:[%s418 + $0xdc0] sm:$0xff]
        %v1057 = vld [vmem:[%s418 + $0xdc8] sm:$0xff]
        %v1058 = vld [vmem:[%s418 + $0xdd0] sm:$0xff]
        %v1059 = vld [vmem:[%s418 + $0xdd8] sm:$0xff]
        %v1060 = vld [vmem:[%s418 + $0xde0] sm:$0xff]
        %v1061 = vld [vmem:[%s418 + $0xde8] sm:$0xff]
        %v1062 = vld [vmem:[%s418 + $0xdf0] sm:$0xff]
        %v1063 = vld [vmem:[%s418 + $0xdf8] sm:$0xff]
        %v1064 = vld [vmem:[%s418 + $0xe00] sm:$0xff]
        %v1065 = vld [vmem:[%s418 + $0xe08] sm:$0xff]
        %v1066 = vld [vmem:[%s418 + $0xe10] sm:$0xff]
        %v1067 = vld [vmem:[%s418 + $0xe18] sm:$0xff]
        %v1068 = vld [vmem:[%s418 + $0xe20] sm:$0xff]
        %v1069 = vld [vmem:[%s418 + $0xe28] sm:$0xff]
        %v1070 = vld [vmem:[%s418 + $0xe30] sm:$0xff]
        %v1071 = vld [vmem:[%s418 + $0xe38] sm:$0xff]
        %v1072 = vld [vmem:[%s418 + $0xe40] sm:$0xff]
        %v1073 = vld [vmem:[%s418 + $0xe48] sm:$0xff]
        %v1074 = vld [vmem:[%s418 + $0xe50] sm:$0xff]
        %v1075 = vld [vmem:[%s418 + $0xe58] sm:$0xff]
        %v1076 = vld [vmem:[%s418 + $0xe60] sm:$0xff]
        %v1077 = vld [vmem:[%s418 + $0xe68] sm:$0xff]
        %v1078 = vld [vmem:[%s418 + $0xe70] sm:$0xff]
        %v1079 = vld [vmem:[%s418 + $0xe78] sm:$0xff]
        %v1080 = vld [vmem:[%s418 + $0xe80] sm:$0xff]
        %v1081 = vld [vmem:[%s418 + $0xe88] sm:$0xff]
        %v1082 = vld [vmem:[%s418 + $0xe90] sm:$0xff]
        %v1083 = vld [vmem:[%s418 + $0xe98] sm:$0xff]
        %v1084 = vld [vmem:[%s418 + $0xea0] sm:$0xff]
        %v1085 = vld [vmem:[%s418 + $0xea8] sm:$0xff]
        %v1086 = vld [vmem:[%s418 + $0xeb0] sm:$0xff]
        %v1087 = vld [vmem:[%s418 + $0xeb8] sm:$0xff]
        %v1088 = vld [vmem:[%s418 + $0xec0] sm:$0xff]
        %v1089 = vld [vmem:[%s418 + $0xec8] sm:$0xff]
        %v1090 = vld [vmem:[%s418 + $0xed0] sm:$0xff]
        %v1091 = vld [vmem:[%s418 + $0xed8] sm:$0xff]
        %v1092 = vld [vmem:[%s418 + $0xee0] sm:$0xff]
        %v1093 = vld [vmem:[%s418 + $0xee8] sm:$0xff]
        %v1094 = vld [vmem:[%s418 + $0xef0] sm:$0xff]
        %v1095 = vld [vmem:[%s418 + $0xef8] sm:$0xff]
        %v1096 = vld [vmem:[%s418 + $0xf00] sm:$0xff]
        %v1097 = vld [vmem:[%s418 + $0xf08] sm:$0xff]
        %v1098 = vld [vmem:[%s418 + $0xf10] sm:$0xff]
        %v1099 = vld [vmem:[%s418 + $0xf18] sm:$0xff]
        %v1100 = vld [vmem:[%s418 + $0xf20] sm:$0xff]
        %v1101 = vld [vmem:[%s418 + $0xf28] sm:$0xff]
        %v1102 = vld [vmem:[%s418 + $0xf30] sm:$0xff]
        %v1103 = vld [vmem:[%s418 + $0xf38] sm:$0xff]
        %v1104 = vld [vmem:[%s418 + $0xf40] sm:$0xff]
        %v1105 = vld [vmem:[%s418 + $0xf48] sm:$0xff]
        %v1106 = vld [vmem:[%s418 + $0xf50] sm:$0xff]
        %v1107 = vld [vmem:[%s418 + $0xf58] sm:$0xff]
        %v1108 = vld [vmem:[%s418 + $0xf60] sm:$0xff]
        %v1109 = vld [vmem:[%s418 + $0xf68] sm:$0xff]
        %v1110 = vld [vmem:[%s418 + $0xf70] sm:$0xff]
        %v1111 = vld [vmem:[%s418 + $0xf78] sm:$0xff]
        %v1112 = vld [vmem:[%s418 + $0xf80] sm:$0xff]
        %v1113 = vld [vmem:[%s418 + $0xf88] sm:$0xff]
        %v1114 = vld [vmem:[%s418 + $0xf90] sm:$0xff]
        %v1115 = vld [vmem:[%s418 + $0xf98] sm:$0xff]
        %v1116 = vld [vmem:[%s418 + $0xfa0] sm:$0xff]
        %v1117 = vld [vmem:[%s418 + $0xfa8] sm:$0xff]
        %v1118 = vld [vmem:[%s418 + $0xfb0] sm:$0xff]
        %v1119 = vld [vmem:[%s418 + $0xfb8] sm:$0xff]
        %v1120 = vld [vmem:[%s418 + $0xfc0] sm:$0xff]
        %v1121 = vld [vmem:[%s418 + $0xfc8] sm:$0xff]
        %v1122 = vld [vmem:[%s418 + $0xfd0] sm:$0xff]
        %v1123 = vld [vmem:[%s418 + $0xfd8] sm:$0xff]
        %v1124 = vld [vmem:[%s418 + $0xfe0] sm:$0xff]
        %v1125 = vld [vmem:[%s418 + $0xfe8] sm:$0xff]
        %v1126 = vld [vmem:[%s418 + $0xff0] sm:$0xff]
        %v1127 = vld [vmem:[%s418 + $0xff8] sm:$0xff]
        %v1128 = vld [vmem:[%s418 + $0x1000] sm:$0xff]
        %v1129 = vld [vmem:[%s418 + $0x1008] sm:$0xff]
        %v1130 = vld [vmem:[%s418 + $0x1010] sm:$0xff]
        %v1131 = vld [vmem:[%s418 + $0x1018] sm:$0xff]
        %v1132 = vld [vmem:[%s418 + $0x1020] sm:$0xff]
        %v1133 = vld [vmem:[%s418 + $0x1028] sm:$0xff]
        %v1134 = vld [vmem:[%s418 + $0x1030] sm:$0xff]
        %v1135 = vld [vmem:[%s418 + $0x1038] sm:$0xff]
        %v1136 = vld [vmem:[%s418 + $0x1040] sm:$0xff]
        %v1137 = vld [vmem:[%s418 + $0x1048] sm:$0xff]
        %v1138 = vld [vmem:[%s418 + $0x1050] sm:$0xff]
        %v1139 = vld [vmem:[%s418 + $0x1058] sm:$0xff]
        %v1140 = vld [vmem:[%s418 + $0x1060] sm:$0xff]
        %v1141 = vld [vmem:[%s418 + $0x1068] sm:$0xff]
        %v1142 = vld [vmem:[%s418 + $0x1070] sm:$0xff]
        %v1143 = vld [vmem:[%s418 + $0x1078] sm:$0xff]
        %v1144 = vld [vmem:[%s418 + $0x1080] sm:$0xff]
        %v1145 = vld [vmem:[%s418 + $0x1088] sm:$0xff]
        %v1146 = vld [vmem:[%s418 + $0x1090] sm:$0xff]
        %v1147 = vld [vmem:[%s418 + $0x1098] sm:$0xff]
        %v1148 = vld [vmem:[%s418 + $0x10a0] sm:$0xff]
        %v1149 = vld [vmem:[%s418 + $0x10a8] sm:$0xff]
        %v1150 = vld [vmem:[%s418 + $0x10b0] sm:$0xff]
        %v1151 = vld [vmem:[%s418 + $0x10b8] sm:$0xff]
        %v1152 = vld [vmem:[%s418 + $0x10c0] sm:$0xff]
        %v1153 = vld [vmem:[%s418 + $0x10c8] sm:$0xff]
        %v1154 = vld [vmem:[%s418 + $0x10d0] sm:$0xff]
        %v1155 = vld [vmem:[%s418 + $0x10d8] sm:$0xff]
        %v1156 = vld [vmem:[%s418 + $0x10e0] sm:$0xff]
        %v1157 = vld [vmem:[%s418 + $0x10e8] sm:$0xff]
        %v1158 = vld [vmem:[%s418 + $0x10f0] sm:$0xff]
        %v1159 = vld [vmem:[%s418 + $0x10f8] sm:$0xff]
        %v1160 = vld [vmem:[%s418 + $0x1100] sm:$0xff]
        %v1161 = vld [vmem:[%s418 + $0x1108] sm:$0xff]
        %v1162 = vld [vmem:[%s418 + $0x1110] sm:$0xff]
        %v1163 = vld [vmem:[%s418 + $0x1118] sm:$0xff]
        %v1164 = vld [vmem:[%s418 + $0x1120] sm:$0xff]
        %v1165 = vld [vmem:[%s418 + $0x1128] sm:$0xff]
        %v1166 = vld [vmem:[%s418 + $0x1130] sm:$0xff]
        %v1167 = vld [vmem:[%s418 + $0x1138] sm:$0xff]
        %v1168 = vld [vmem:[%s418 + $0x1140] sm:$0xff]
        %v1169 = vld [vmem:[%s418 + $0x1148] sm:$0xff]
        %v1170 = vld [vmem:[%s418 + $0x1150] sm:$0xff]
        %v1171 = vld [vmem:[%s418 + $0x1158] sm:$0xff]
        %v1172 = vld [vmem:[%s418 + $0x1160] sm:$0xff]
        %v1173 = vld [vmem:[%s418 + $0x1168] sm:$0xff]
        %v1174 = vld [vmem:[%s418 + $0x1170] sm:$0xff]
        %v1175 = vld [vmem:[%s418 + $0x1178] sm:$0xff]
        %v1176 = vld [vmem:[%s418 + $0x1180] sm:$0xff]
        %v1177 = vld [vmem:[%s418 + $0x1188] sm:$0xff]
        %v1178 = vld [vmem:[%s418 + $0x1190] sm:$0xff]
        %v1179 = vld [vmem:[%s418 + $0x1198] sm:$0xff]
        %v1180 = vld [vmem:[%s418 + $0x11a0] sm:$0xff]
        %v1181 = vld [vmem:[%s418 + $0x11a8] sm:$0xff]
        %v1182 = vld [vmem:[%s418 + $0x11b0] sm:$0xff]
        %v1183 = vld [vmem:[%s418 + $0x11b8] sm:$0xff]
        %v1184 = vld [vmem:[%s418 + $0x11c0] sm:$0xff]
        %v1185 = vld [vmem:[%s418 + $0x11c8] sm:$0xff]
        %v1186 = vld [vmem:[%s418 + $0x11d0] sm:$0xff]
        %v1187 = vld [vmem:[%s418 + $0x11d8] sm:$0xff]
        %v1188 = vld [vmem:[%s418 + $0x11e0] sm:$0xff]
        %v1189 = vld [vmem:[%s418 + $0x11e8] sm:$0xff]
        %v1190 = vld [vmem:[%s418 + $0x11f0] sm:$0xff]
        %v1191 = vld [vmem:[%s418 + $0x11f8] sm:$0xff]
        %v1192 = vld [vmem:[%s418 + $0x1200] sm:$0xff]
        %v1193 = vld [vmem:[%s418 + $0x1208] sm:$0xff]
        %v1194 = vld [vmem:[%s418 + $0x1210] sm:$0xff]
        %v1195 = vld [vmem:[%s418 + $0x1218] sm:$0xff]
        %v1196 = vld [vmem:[%s418 + $0x1220] sm:$0xff]
        %v1197 = vld [vmem:[%s418 + $0x1228] sm:$0xff]
        %v1198 = vld [vmem:[%s418 + $0x1230] sm:$0xff]
        %v1199 = vld [vmem:[%s418 + $0x1238] sm:$0xff]
        %v1200 = vld [vmem:[%s418 + $0x1240] sm:$0xff]
        %v1201 = vld [vmem:[%s418 + $0x1248] sm:$0xff]
        %v1202 = vld [vmem:[%s418 + $0x1250] sm:$0xff]
        %v1203 = vld [vmem:[%s418 + $0x1258] sm:$0xff]
        %v1204 = vld [vmem:[%s418 + $0x1260] sm:$0xff]
        %v1205 = vld [vmem:[%s418 + $0x1268] sm:$0xff]
        %v1206 = vld [vmem:[%s418 + $0x1270] sm:$0xff]
        %v1207 = vld [vmem:[%s418 + $0x1278] sm:$0xff]
        %v1208 = vld [vmem:[%s418 + $0x1280] sm:$0xff]
        %v1209 = vld [vmem:[%s418 + $0x1288] sm:$0xff]
        %v1210 = vld [vmem:[%s418 + $0x1290] sm:$0xff]
        %v1211 = vld [vmem:[%s418 + $0x1298] sm:$0xff]
        %v1212 = vld [vmem:[%s418 + $0x12a0] sm:$0xff]
        %v1213 = vld [vmem:[%s418 + $0x12a8] sm:$0xff]
        %v1214 = vld [vmem:[%s418 + $0x12b0] sm:$0xff]
        %v1215 = vld [vmem:[%s418 + $0x12b8] sm:$0xff]
        %v1216 = vld [vmem:[%s418 + $0x12c0] sm:$0xff]
        %v1217 = vld [vmem:[%s418 + $0x12c8] sm:$0xff]
        %v1218 = vld [vmem:[%s418 + $0x12d0] sm:$0xff]
        %v1219 = vld [vmem:[%s418 + $0x12d8] sm:$0xff]
        %v1220 = vld [vmem:[%s418 + $0x12e0] sm:$0xff]
        %v1221 = vld [vmem:[%s418 + $0x12e8] sm:$0xff]
        %v1222 = vld [vmem:[%s418 + $0x12f0] sm:$0xff]
        %v1223 = vld [vmem:[%s418 + $0x12f8] sm:$0xff]
        %v1224 = vld [vmem:[%s418 + $0x1300] sm:$0xff]
        %v1225 = vld [vmem:[%s418 + $0x1308] sm:$0xff]
        %v1226 = vld [vmem:[%s418 + $0x1310] sm:$0xff]
        %v1227 = vld [vmem:[%s418 + $0x1318] sm:$0xff]
        %v1228 = vld [vmem:[%s418 + $0x1320] sm:$0xff]
        %v1229 = vld [vmem:[%s418 + $0x1328] sm:$0xff]
        %v1230 = vld [vmem:[%s418 + $0x1330] sm:$0xff]
        %v1231 = vld [vmem:[%s418 + $0x1338] sm:$0xff]
        %v1232 = vld [vmem:[%s418 + $0x1340] sm:$0xff]
        %v1233 = vld [vmem:[%s418 + $0x1348] sm:$0xff]
        %v1234 = vld [vmem:[%s418 + $0x1350] sm:$0xff]
        %v1235 = vld [vmem:[%s418 + $0x1358] sm:$0xff]
        %v1236 = vld [vmem:[%s418 + $0x1360] sm:$0xff]
        %v1237 = vld [vmem:[%s418 + $0x1368] sm:$0xff]
        %v1238 = vld [vmem:[%s418 + $0x1370] sm:$0xff]
        %v1239 = vld [vmem:[%s418 + $0x1378] sm:$0xff]
        %v1240 = vld [vmem:[%s418 + $0x1380] sm:$0xff]
        %v1241 = vld [vmem:[%s418 + $0x1388] sm:$0xff]
        %v1242 = vld [vmem:[%s418 + $0x1390] sm:$0xff]
        %v1243 = vld [vmem:[%s418 + $0x1398] sm:$0xff]
        %v1244 = vld [vmem:[%s418 + $0x13a0] sm:$0xff]
        %v1245 = vld [vmem:[%s418 + $0x13a8] sm:$0xff]
        %v1246 = vld [vmem:[%s418 + $0x13b0] sm:$0xff]
        %v1247 = vld [vmem:[%s418 + $0x13b8] sm:$0xff]
        %v1248 = vld [vmem:[%s418 + $0x13c0] sm:$0xff]
        %v1249 = vld [vmem:[%s418 + $0x13c8] sm:$0xff]
        %v1250 = vld [vmem:[%s418 + $0x13d0] sm:$0xff]
        %v1251 = vld [vmem:[%s418 + $0x13d8] sm:$0xff]
        %v1252 = vld [vmem:[%s418 + $0x13e0] sm:$0xff]
        %v1253 = vld [vmem:[%s418 + $0x13e8] sm:$0xff]
        %v1254 = vld [vmem:[%s418 + $0x13f0] sm:$0xff]
        %v1255 = vld [vmem:[%s418 + $0x13f8] sm:$0xff]
        %v1256 = vld [vmem:[%s418 + $0x1400] sm:$0xff]
        %v1257 = vld [vmem:[%s418 + $0x1408] sm:$0xff]
        %v1258 = vld [vmem:[%s418 + $0x1410] sm:$0xff]
        %v1259 = vld [vmem:[%s418 + $0x1418] sm:$0xff]
        %v1260 = vld [vmem:[%s418 + $0x1420] sm:$0xff]
        %v1261 = vld [vmem:[%s418 + $0x1428] sm:$0xff]
        %v1262 = vld [vmem:[%s418 + $0x1430] sm:$0xff]
        %v1263 = vld [vmem:[%s418 + $0x1438] sm:$0xff]
        %v1264 = vld [vmem:[%s418 + $0x1440] sm:$0xff]
        %v1265 = vld [vmem:[%s418 + $0x1448] sm:$0xff]
        %v1266 = vld [vmem:[%s418 + $0x1450] sm:$0xff]
        %v1267 = vld [vmem:[%s418 + $0x1458] sm:$0xff]
        %v1268 = vld [vmem:[%s418 + $0x1460] sm:$0xff]
        %v1269 = vld [vmem:[%s418 + $0x1468] sm:$0xff]
        %v1270 = vld [vmem:[%s418 + $0x1470] sm:$0xff]
        %v1271 = vld [vmem:[%s418 + $0x1478] sm:$0xff]
        %v1272 = vld [vmem:[%s418 + $0x1480] sm:$0xff]
        %v1273 = vld [vmem:[%s418 + $0x1488] sm:$0xff]
        %v1274 = vld [vmem:[%s418 + $0x1490] sm:$0xff]
        %v1275 = vld [vmem:[%s418 + $0x1498] sm:$0xff]
        %v1276 = vld [vmem:[%s418 + $0x14a0] sm:$0xff]
        %v1277 = vld [vmem:[%s418 + $0x14a8] sm:$0xff]
        %v1278 = vld [vmem:[%s418 + $0x14b0] sm:$0xff]
        %v1279 = vld [vmem:[%s418 + $0x14b8] sm:$0xff]
        %v1280 = vld [vmem:[%s418 + $0x14c0] sm:$0xff]
        %v1281 = vld [vmem:[%s418 + $0x14c8] sm:$0xff]
        %v1282 = vld [vmem:[%s418 + $0x14d0] sm:$0xff]
        %v1283 = vld [vmem:[%s418 + $0x14d8] sm:$0xff]
        %v1284 = vld [vmem:[%s418 + $0x14e0] sm:$0xff]
        %v1285 = vld [vmem:[%s418 + $0x14e8] sm:$0xff]
        %v1286 = vld [vmem:[%s418 + $0x14f0] sm:$0xff]
        %v1287 = vld [vmem:[%s418 + $0x14f8] sm:$0xff]
        %v1288 = vld [vmem:[%s418 + $0x1500] sm:$0xff]
        %v1289 = vld [vmem:[%s418 + $0x1508] sm:$0xff]
        %v1290 = vld [vmem:[%s418 + $0x1510] sm:$0xff]
        %v1291 = vld [vmem:[%s418 + $0x1518] sm:$0xff]
        %v1292 = vld [vmem:[%s418 + $0x1520] sm:$0xff]
        %v1293 = vld [vmem:[%s418 + $0x1528] sm:$0xff]
        %v1294 = vld [vmem:[%s418 + $0x1530] sm:$0xff]
        %v1295 = vld [vmem:[%s418 + $0x1538] sm:$0xff]
        %v1296 = vld [vmem:[%s418 + $0x1540] sm:$0xff]
        %v1297 = vld [vmem:[%s418 + $0x1548] sm:$0xff]
        %v1298 = vld [vmem:[%s418 + $0x1550] sm:$0xff]
        %v1299 = vld [vmem:[%s418 + $0x1558] sm:$0xff]
        %v1300 = vld [vmem:[%s418 + $0x1560] sm:$0xff]
        %v1301 = vld [vmem:[%s418 + $0x1568] sm:$0xff]
        %v1302 = vld [vmem:[%s418 + $0x1570] sm:$0xff]
        %v1303 = vld [vmem:[%s418 + $0x1578] sm:$0xff]
        %v1304 = vld [vmem:[%s418 + $0x1580] sm:$0xff]
        %v1305 = vld [vmem:[%s418 + $0x1588] sm:$0xff]
        %v1306 = vld [vmem:[%s418 + $0x1590] sm:$0xff]
        %v1307 = vld [vmem:[%s418 + $0x1598] sm:$0xff]
        %v1308 = vld [vmem:[%s418 + $0x15a0] sm:$0xff]
        %v1309 = vld [vmem:[%s418 + $0x15a8] sm:$0xff]
        %v1310 = vld [vmem:[%s418 + $0x15b0] sm:$0xff]
        %v1311 = vld [vmem:[%s418 + $0x15b8] sm:$0xff]
        %v1312 = vld [vmem:[%s418 + $0x15c0] sm:$0xff]
        %v1313 = vld [vmem:[%s418 + $0x15c8] sm:$0xff]
        %v1314 = vld [vmem:[%s418 + $0x15d0] sm:$0xff]
        %v1315 = vld [vmem:[%s418 + $0x15d8] sm:$0xff]
        %v1316 = vld [vmem:[%s418 + $0x15e0] sm:$0xff]
        %v1317 = vld [vmem:[%s418 + $0x15e8] sm:$0xff]
        %v1318 = vld [vmem:[%s418 + $0x15f0] sm:$0xff]
        %v1319 = vld [vmem:[%s418 + $0x15f8] sm:$0xff]
        %v1320 = vld [vmem:[%s418 + $0x1600] sm:$0xff]
        %v1321 = vld [vmem:[%s418 + $0x1608] sm:$0xff]
        %v1322 = vld [vmem:[%s418 + $0x1610] sm:$0xff]
        %v1323 = vld [vmem:[%s418 + $0x1618] sm:$0xff]
        %v1324 = vld [vmem:[%s418 + $0x1620] sm:$0xff]
        %v1325 = vld [vmem:[%s418 + $0x1628] sm:$0xff]
        %v1326 = vld [vmem:[%s418 + $0x1630] sm:$0xff]
        %v1327 = vld [vmem:[%s418 + $0x1638] sm:$0xff]
        %v1328 = vld [vmem:[%s418 + $0x1640] sm:$0xff]
        %v1329 = vld [vmem:[%s418 + $0x1648] sm:$0xff]
        %v1330 = vld [vmem:[%s418 + $0x1650] sm:$0xff]
        %v1331 = vld [vmem:[%s418 + $0x1658] sm:$0xff]
        %v1332 = vld [vmem:[%s418 + $0x1660] sm:$0xff]
        %v1333 = vld [vmem:[%s418 + $0x1668] sm:$0xff]
        %v1334 = vld [vmem:[%s418 + $0x1670] sm:$0xff]
        %v1335 = vld [vmem:[%s418 + $0x1678] sm:$0xff]
        %v1336 = vld [vmem:[%s418 + $0x1680] sm:$0xff]
        %v1337 = vld [vmem:[%s418 + $0x1688] sm:$0xff]
        %v1338 = vld [vmem:[%s418 + $0x1690] sm:$0xff]
        %v1339 = vld [vmem:[%s418 + $0x1698] sm:$0xff]
        %v1340 = vld [vmem:[%s418 + $0x16a0] sm:$0xff]
        %v1341 = vld [vmem:[%s418 + $0x16a8] sm:$0xff]
        %v1342 = vld [vmem:[%s418 + $0x16b0] sm:$0xff]
        %v1343 = vld [vmem:[%s418 + $0x16b8] sm:$0xff]
        %v1344 = vld [vmem:[%s418 + $0x16c0] sm:$0xff]
        %v1345 = vld [vmem:[%s418 + $0x16c8] sm:$0xff]
        %v1346 = vld [vmem:[%s418 + $0x16d0] sm:$0xff]
        %v1347 = vld [vmem:[%s418 + $0x16d8] sm:$0xff]
        %v1348 = vld [vmem:[%s418 + $0x16e0] sm:$0xff]
        %v1349 = vld [vmem:[%s418 + $0x16e8] sm:$0xff]
        %v1350 = vld [vmem:[%s418 + $0x16f0] sm:$0xff]
        %v1351 = vld [vmem:[%s418 + $0x16f8] sm:$0xff]
        %v1352 = vld [vmem:[%s418 + $0x1700] sm:$0xff]
        %v1353 = vld [vmem:[%s418 + $0x1708] sm:$0xff]
        %v1354 = vld [vmem:[%s418 + $0x1710] sm:$0xff]
        %v1355 = vld [vmem:[%s418 + $0x1718] sm:$0xff]
        %v1356 = vld [vmem:[%s418 + $0x1720] sm:$0xff]
        %v1357 = vld [vmem:[%s418 + $0x1728] sm:$0xff]
        %v1358 = vld [vmem:[%s418 + $0x1730] sm:$0xff]
        %v1359 = vld [vmem:[%s418 + $0x1738] sm:$0xff]
        %v1360 = vld [vmem:[%s418 + $0x1740] sm:$0xff]
        %v1361 = vld [vmem:[%s418 + $0x1748] sm:$0xff]
        %v1362 = vld [vmem:[%s418 + $0x1750] sm:$0xff]
        %v1363 = vld [vmem:[%s418 + $0x1758] sm:$0xff]
        %v1364 = vld [vmem:[%s418 + $0x1760] sm:$0xff]
        %v1365 = vld [vmem:[%s418 + $0x1768] sm:$0xff]
        %v1366 = vld [vmem:[%s418 + $0x1770] sm:$0xff]
        %v1367 = vld [vmem:[%s418 + $0x1778] sm:$0xff]
        %v1368 = vld [vmem:[%s418 + $0x1780] sm:$0xff]
        %v1369 = vld [vmem:[%s418 + $0x1788] sm:$0xff]
        %v1370 = vld [vmem:[%s418 + $0x1790] sm:$0xff]
        %v1371 = vld [vmem:[%s418 + $0x1798] sm:$0xff]
        %v1372 = vld [vmem:[%s418 + $0x17a0] sm:$0xff]
        %v1373 = vld [vmem:[%s418 + $0x17a8] sm:$0xff]
        %v1374 = vld [vmem:[%s418 + $0x17b0] sm:$0xff]
        %v1375 = vld [vmem:[%s418 + $0x17b8] sm:$0xff]
        %v1376 = vld [vmem:[%s418 + $0x17c0] sm:$0xff]
        %v1377 = vld [vmem:[%s418 + $0x17c8] sm:$0xff]
        %v1378 = vld [vmem:[%s418 + $0x17d0] sm:$0xff]
        %v1379 = vld [vmem:[%s418 + $0x17d8] sm:$0xff]
        %v1380 = vld [vmem:[%s418 + $0x17e0] sm:$0xff]
        %v1381 = vld [vmem:[%s418 + $0x17e8] sm:$0xff]
        %v1382 = vld [vmem:[%s418 + $0x17f0] sm:$0xff]
        %v1383 = vld [vmem:[%s418 + $0x17f8] sm:$0xff]
        %v1384 = vld [vmem:[%s418 + $0x1800] sm:$0xff]
        %v1385 = vld [vmem:[%s418 + $0x1808] sm:$0xff]
        %v1386 = vld [vmem:[%s418 + $0x1810] sm:$0xff]
        %v1387 = vld [vmem:[%s418 + $0x1818] sm:$0xff]
        %v1388 = vld [vmem:[%s418 + $0x1820] sm:$0xff]
        %v1389 = vld [vmem:[%s418 + $0x1828] sm:$0xff]
        %v1390 = vld [vmem:[%s418 + $0x1830] sm:$0xff]
        %v1391 = vld [vmem:[%s418 + $0x1838] sm:$0xff]
        %v1392 = vld [vmem:[%s418 + $0x1840] sm:$0xff]
        %v1393 = vld [vmem:[%s418 + $0x1848] sm:$0xff]
        %v1394 = vld [vmem:[%s418 + $0x1850] sm:$0xff]
        %v1395 = vld [vmem:[%s418 + $0x1858] sm:$0xff]
        %v1396 = vld [vmem:[%s418 + $0x1860] sm:$0xff]
        %v1397 = vld [vmem:[%s418 + $0x1868] sm:$0xff]
        %v1398 = vld [vmem:[%s418 + $0x1870] sm:$0xff]
        %v1399 = vld [vmem:[%s418 + $0x1878] sm:$0xff]
        %v1400 = vld [vmem:[%s418 + $0x1880] sm:$0xff]
        %v1401 = vld [vmem:[%s418 + $0x1888] sm:$0xff]
        %v1402 = vld [vmem:[%s418 + $0x1890] sm:$0xff]
        %v1403 = vld [vmem:[%s418 + $0x1898] sm:$0xff]
        %v1404 = vld [vmem:[%s418 + $0x18a0] sm:$0xff]
        %v1405 = vld [vmem:[%s418 + $0x18a8] sm:$0xff]
        %v1406 = vld [vmem:[%s418 + $0x18b0] sm:$0xff]
        %v1407 = vld [vmem:[%s418 + $0x18b8] sm:$0xff]
        %v1408 = vld [vmem:[%s418 + $0x18c0] sm:$0xff]
        %v1409 = vld [vmem:[%s418 + $0x18c8] sm:$0xff]
        %v1410 = vld [vmem:[%s418 + $0x18d0] sm:$0xff]
        %v1411 = vld [vmem:[%s418 + $0x18d8] sm:$0xff]
        %v1412 = vld [vmem:[%s418 + $0x18e0] sm:$0xff]
        %v1413 = vld [vmem:[%s418 + $0x18e8] sm:$0xff]
        %v1414 = vld [vmem:[%s418 + $0x18f0] sm:$0xff]
        %v1415 = vld [vmem:[%s418 + $0x18f8] sm:$0xff]
        %v1416 = vld [vmem:[%s418 + $0x1900] sm:$0xff]
        %v1417 = vld [vmem:[%s418 + $0x1908] sm:$0xff]
        %v1418 = vld [vmem:[%s418 + $0x1910] sm:$0xff]
        %v1419 = vld [vmem:[%s418 + $0x1918] sm:$0xff]
        %v1420 = vld [vmem:[%s418 + $0x1920] sm:$0xff]
        %v1421 = vld [vmem:[%s418 + $0x1928] sm:$0xff]
        %v1422 = vld [vmem:[%s418 + $0x1930] sm:$0xff]
        %v1423 = vld [vmem:[%s418 + $0x1938] sm:$0xff]
        %v1424 = vld [vmem:[%s418 + $0x1940] sm:$0xff]
        %v1425 = vld [vmem:[%s418 + $0x1948] sm:$0xff]
        %v1426 = vld [vmem:[%s418 + $0x1950] sm:$0xff]
        %v1427 = vld [vmem:[%s418 + $0x1958] sm:$0xff]
        %v1428 = vld [vmem:[%s418 + $0x1960] sm:$0xff]
        %v1429 = vld [vmem:[%s418 + $0x1968] sm:$0xff]
        %v1430 = vld [vmem:[%s418 + $0x1970] sm:$0xff]
        %v1431 = vld [vmem:[%s418 + $0x1978] sm:$0xff]
        %v1432 = vld [vmem:[%s418 + $0x1980] sm:$0xff]
        %v1433 = vld [vmem:[%s418 + $0x1988] sm:$0xff]
        %v1434 = vld [vmem:[%s418 + $0x1990] sm:$0xff]
        %v1435 = vld [vmem:[%s418 + $0x1998] sm:$0xff]
        %v1436 = vld [vmem:[%s418 + $0x19a0] sm:$0xff]
        %v1437 = vld [vmem:[%s418 + $0x19a8] sm:$0xff]
        %v1438 = vld [vmem:[%s418 + $0x19b0] sm:$0xff]
        %v1439 = vld [vmem:[%s418 + $0x19b8] sm:$0xff]
        %v1440 = vld [vmem:[%s418 + $0x19c0] sm:$0xff]
        %v1441 = vld [vmem:[%s418 + $0x19c8] sm:$0xff]
        %v1442 = vld [vmem:[%s418 + $0x19d0] sm:$0xff]
        %v1443 = vld [vmem:[%s418 + $0x19d8] sm:$0xff]
        %v1444 = vld [vmem:[%s418 + $0x19e0] sm:$0xff]
        %v1445 = vld [vmem:[%s418 + $0x19e8] sm:$0xff]
        %v1446 = vld [vmem:[%s418 + $0x19f0] sm:$0xff]
        %v1447 = vld [vmem:[%s418 + $0x19f8] sm:$0xff]
        %v1448 = vld [vmem:[%s418 + $0x1a00] sm:$0xff]
        %v1449 = vld [vmem:[%s418 + $0x1a08] sm:$0xff]
        %v1450 = vld [vmem:[%s418 + $0x1a10] sm:$0xff]
        %v1451 = vld [vmem:[%s418 + $0x1a18] sm:$0xff]
        %v1452 = vld [vmem:[%s418 + $0x1a20] sm:$0xff]
        %v1453 = vld [vmem:[%s418 + $0x1a28] sm:$0xff]
        %v1454 = vld [vmem:[%s418 + $0x1a30] sm:$0xff]
        %v1455 = vld [vmem:[%s418 + $0x1a38] sm:$0xff]
        %v1456 = vld [vmem:[%s418 + $0x1a40] sm:$0xff]
        %v1457 = vld [vmem:[%s418 + $0x1a48] sm:$0xff]
        %v1458 = vld [vmem:[%s418 + $0x1a50] sm:$0xff]
        %v1459 = vld [vmem:[%s418 + $0x1a58] sm:$0xff]
        %v1460 = vld [vmem:[%s418 + $0x1a60] sm:$0xff]
        %v1461 = vld [vmem:[%s418 + $0x1a68] sm:$0xff]
        %v1462 = vld [vmem:[%s418 + $0x1a70] sm:$0xff]
        %v1463 = vld [vmem:[%s418 + $0x1a78] sm:$0xff]
        %v1464 = vld [vmem:[%s418 + $0x1a80] sm:$0xff]
        %v1465 = vld [vmem:[%s418 + $0x1a88] sm:$0xff]
        %v1466 = vld [vmem:[%s418 + $0x1a90] sm:$0xff]
        %v1467 = vld [vmem:[%s418 + $0x1a98] sm:$0xff]
        %v1468 = vld [vmem:[%s418 + $0x1aa0] sm:$0xff]
        %v1469 = vld [vmem:[%s418 + $0x1aa8] sm:$0xff]
        %v1470 = vld [vmem:[%s418 + $0x1ab0] sm:$0xff]
        %v1471 = vld [vmem:[%s418 + $0x1ab8] sm:$0xff]
        %v1472 = vld [vmem:[%s418 + $0x1ac0] sm:$0xff]
        %v1473 = vld [vmem:[%s418 + $0x1ac8] sm:$0xff]
        %v1474 = vld [vmem:[%s418 + $0x1ad0] sm:$0xff]
        %v1475 = vld [vmem:[%s418 + $0x1ad8] sm:$0xff]
        %v1476 = vld [vmem:[%s418 + $0x1ae0] sm:$0xff]
        %v1477 = vld [vmem:[%s418 + $0x1ae8] sm:$0xff]
        %v1478 = vld [vmem:[%s418 + $0x1af0] sm:$0xff]
        %v1479 = vld [vmem:[%s418 + $0x1af8] sm:$0xff]
        %v1480 = vld [vmem:[%s418 + $0x1b00] sm:$0xff]
        %v1481 = vld [vmem:[%s418 + $0x1b08] sm:$0xff]
        %v1482 = vld [vmem:[%s418 + $0x1b10] sm:$0xff]
        %v1483 = vld [vmem:[%s418 + $0x1b18] sm:$0xff]
        %v1484 = vld [vmem:[%s418 + $0x1b20] sm:$0xff]
        %v1485 = vld [vmem:[%s418 + $0x1b28] sm:$0xff]
        %v1486 = vld [vmem:[%s418 + $0x1b30] sm:$0xff]
        %v1487 = vld [vmem:[%s418 + $0x1b38] sm:$0xff]
        %v1488 = vld [vmem:[%s418 + $0x1b40] sm:$0xff]
        %v1489 = vld [vmem:[%s418 + $0x1b48] sm:$0xff]
        %v1490 = vld [vmem:[%s418 + $0x1b50] sm:$0xff]
        %v1491 = vld [vmem:[%s418 + $0x1b58] sm:$0xff]
        %v1492 = vld [vmem:[%s418 + $0x1b60] sm:$0xff]
        %v1493 = vld [vmem:[%s418 + $0x1b68] sm:$0xff]
        %v1494 = vld [vmem:[%s418 + $0x1b70] sm:$0xff]
        %v1495 = vld [vmem:[%s418 + $0x1b78] sm:$0xff]
        %v1496 = vld [vmem:[%s418 + $0x1b80] sm:$0xff]
        %v1497 = vld [vmem:[%s418 + $0x1b88] sm:$0xff]
        %v1498 = vld [vmem:[%s418 + $0x1b90] sm:$0xff]
        %v1499 = vld [vmem:[%s418 + $0x1b98] sm:$0xff]
        %v1500 = vld [vmem:[%s418 + $0x1ba0] sm:$0xff]
        %v1501 = vld [vmem:[%s418 + $0x1ba8] sm:$0xff]
        %v1502 = vld [vmem:[%s418 + $0x1bb0] sm:$0xff]
        %v1503 = vld [vmem:[%s418 + $0x1bb8] sm:$0xff]
        %v1504 = vld [vmem:[%s418 + $0x1bc0] sm:$0xff]
        %v1505 = vld [vmem:[%s418 + $0x1bc8] sm:$0xff]
        %v1506 = vld [vmem:[%s418 + $0x1bd0] sm:$0xff]
        %v1507 = vld [vmem:[%s418 + $0x1bd8] sm:$0xff]
        %v1508 = vld [vmem:[%s418 + $0x1be0] sm:$0xff]
        %v1509 = vld [vmem:[%s418 + $0x1be8] sm:$0xff]
        %v1510 = vld [vmem:[%s418 + $0x1bf0] sm:$0xff]
        %v1511 = vld [vmem:[%s418 + $0x1bf8] sm:$0xff]
        %v1512 = vld [vmem:[%s418 + $0x1c00] sm:$0xff]
        %v1513 = vld [vmem:[%s418 + $0x1c08] sm:$0xff]
        %v1514 = vld [vmem:[%s418 + $0x1c10] sm:$0xff]
        %v1515 = vld [vmem:[%s418 + $0x1c18] sm:$0xff]
        %v1516 = vld [vmem:[%s418 + $0x1c20] sm:$0xff]
        %v1517 = vld [vmem:[%s418 + $0x1c28] sm:$0xff]
        %v1518 = vld [vmem:[%s418 + $0x1c30] sm:$0xff]
        %v1519 = vld [vmem:[%s418 + $0x1c38] sm:$0xff]
        %v1520 = vld [vmem:[%s418 + $0x1c40] sm:$0xff]
        %v1521 = vld [vmem:[%s418 + $0x1c48] sm:$0xff]
        %v1522 = vld [vmem:[%s418 + $0x1c50] sm:$0xff]
        %v1523 = vld [vmem:[%s418 + $0x1c58] sm:$0xff]
        %v1524 = vld [vmem:[%s418 + $0x1c60] sm:$0xff]
        %v1525 = vld [vmem:[%s418 + $0x1c68] sm:$0xff]
        %v1526 = vld [vmem:[%s418 + $0x1c70] sm:$0xff]
        %v1527 = vld [vmem:[%s418 + $0x1c78] sm:$0xff]
        %v1528 = vld [vmem:[%s418 + $0x1c80] sm:$0xff]
        %v1529 = vld [vmem:[%s418 + $0x1c88] sm:$0xff]
        %v1530 = vld [vmem:[%s418 + $0x1c90] sm:$0xff]
        %v1531 = vld [vmem:[%s418 + $0x1c98] sm:$0xff]
        %v1532 = vld [vmem:[%s418 + $0x1ca0] sm:$0xff]
        %v1533 = vld [vmem:[%s418 + $0x1ca8] sm:$0xff]
        %v1534 = vld [vmem:[%s418 + $0x1cb0] sm:$0xff]
        %v1535 = vld [vmem:[%s418 + $0x1cb8] sm:$0xff]
        %v1536 = vld [vmem:[%s418 + $0x1cc0] sm:$0xff]
        %v1537 = vld [vmem:[%s418 + $0x1cc8] sm:$0xff]
        %v1538 = vld [vmem:[%s418 + $0x1cd0] sm:$0xff]
        %v1539 = vld [vmem:[%s418 + $0x1cd8] sm:$0xff]
        %v1540 = vld [vmem:[%s418 + $0x1ce0] sm:$0xff]
        %v1541 = vld [vmem:[%s418 + $0x1ce8] sm:$0xff]
        %v1542 = vld [vmem:[%s418 + $0x1cf0] sm:$0xff]
        %v1543 = vld [vmem:[%s418 + $0x1cf8] sm:$0xff]
        %v1544 = vld [vmem:[%s418 + $0x1d00] sm:$0xff]
        %v1545 = vld [vmem:[%s418 + $0x1d08] sm:$0xff]
        %v1546 = vld [vmem:[%s418 + $0x1d10] sm:$0xff]
        %v1547 = vld [vmem:[%s418 + $0x1d18] sm:$0xff]
        %v1548 = vld [vmem:[%s418 + $0x1d20] sm:$0xff]
        %v1549 = vld [vmem:[%s418 + $0x1d28] sm:$0xff]
        %v1550 = vld [vmem:[%s418 + $0x1d30] sm:$0xff]
        %v1551 = vld [vmem:[%s418 + $0x1d38] sm:$0xff]
        %v1552 = vld [vmem:[%s418 + $0x1d40] sm:$0xff]
        %v1553 = vld [vmem:[%s418 + $0x1d48] sm:$0xff]
        %v1554 = vld [vmem:[%s418 + $0x1d50] sm:$0xff]
        %v1555 = vld [vmem:[%s418 + $0x1d58] sm:$0xff]
        %v1556 = vld [vmem:[%s418 + $0x1d60] sm:$0xff]
        %v1557 = vld [vmem:[%s418 + $0x1d68] sm:$0xff]
        %v1558 = vld [vmem:[%s418 + $0x1d70] sm:$0xff]
        %v1559 = vld [vmem:[%s418 + $0x1d78] sm:$0xff]
        %v1560 = vld [vmem:[%s418 + $0x1d80] sm:$0xff]
        %v1561 = vld [vmem:[%s418 + $0x1d88] sm:$0xff]
        %v1562 = vld [vmem:[%s418 + $0x1d90] sm:$0xff]
        %v1563 = vld [vmem:[%s418 + $0x1d98] sm:$0xff]
        %v1564 = vld [vmem:[%s418 + $0x1da0] sm:$0xff]
        %v1565 = vld [vmem:[%s418 + $0x1da8] sm:$0xff]
        %v1566 = vld [vmem:[%s418 + $0x1db0] sm:$0xff]
        %v1567 = vld [vmem:[%s418 + $0x1db8] sm:$0xff]
        %v1568 = vld [vmem:[%s418 + $0x1dc0] sm:$0xff]
        %v1569 = vld [vmem:[%s418 + $0x1dc8] sm:$0xff]
        %v1570 = vld [vmem:[%s418 + $0x1dd0] sm:$0xff]
        %v1571 = vld [vmem:[%s418 + $0x1dd8] sm:$0xff]
        %v1572 = vld [vmem:[%s418 + $0x1de0] sm:$0xff]
        %v1573 = vld [vmem:[%s418 + $0x1de8] sm:$0xff]
        %v1574 = vld [vmem:[%s418 + $0x1df0] sm:$0xff]
        %v1575 = vld [vmem:[%s418 + $0x1df8] sm:$0xff]
        %v1576 = vld [vmem:[%s418 + $0x1e00] sm:$0xff]
        %v1577 = vld [vmem:[%s418 + $0x1e08] sm:$0xff]
        %v1578 = vld [vmem:[%s418 + $0x1e10] sm:$0xff]
        %v1579 = vld [vmem:[%s418 + $0x1e18] sm:$0xff]
        %v1580 = vld [vmem:[%s418 + $0x1e20] sm:$0xff]
        %v1581 = vld [vmem:[%s418 + $0x1e28] sm:$0xff]
        %v1582 = vld [vmem:[%s418 + $0x1e30] sm:$0xff]
        %v1583 = vld [vmem:[%s418 + $0x1e38] sm:$0xff]
        %v1584 = vld [vmem:[%s418 + $0x1e40] sm:$0xff]
        %v1585 = vld [vmem:[%s418 + $0x1e48] sm:$0xff]
        %v1586 = vld [vmem:[%s418 + $0x1e50] sm:$0xff]
        %v1587 = vld [vmem:[%s418 + $0x1e58] sm:$0xff]
        %v1588 = vld [vmem:[%s418 + $0x1e60] sm:$0xff]
        %v1589 = vld [vmem:[%s418 + $0x1e68] sm:$0xff]
        %v1590 = vld [vmem:[%s418 + $0x1e70] sm:$0xff]
        %v1591 = vld [vmem:[%s418 + $0x1e78] sm:$0xff]
        %v1592 = vld [vmem:[%s418 + $0x1e80] sm:$0xff]
        %v1593 = vld [vmem:[%s418 + $0x1e88] sm:$0xff]
        %v1594 = vld [vmem:[%s418 + $0x1e90] sm:$0xff]
        %v1595 = vld [vmem:[%s418 + $0x1e98] sm:$0xff]
        %v1596 = vld [vmem:[%s418 + $0x1ea0] sm:$0xff]
        %v1597 = vld [vmem:[%s418 + $0x1ea8] sm:$0xff]
        %v1598 = vld [vmem:[%s418 + $0x1eb0] sm:$0xff]
        %v1599 = vld [vmem:[%s418 + $0x1eb8] sm:$0xff]
        %v1600 = vld [vmem:[%s418 + $0x1ec0] sm:$0xff]
        %v1601 = vld [vmem:[%s418 + $0x1ec8] sm:$0xff]
        %v1602 = vld [vmem:[%s418 + $0x1ed0] sm:$0xff]
        %v1603 = vld [vmem:[%s418 + $0x1ed8] sm:$0xff]
        %v1604 = vld [vmem:[%s418 + $0x1ee0] sm:$0xff]
        %v1605 = vld [vmem:[%s418 + $0x1ee8] sm:$0xff]
        %v1606 = vld [vmem:[%s418 + $0x1ef0] sm:$0xff]
        %v1607 = vld [vmem:[%s418 + $0x1ef8] sm:$0xff]
        %v1608 = vld [vmem:[%s418 + $0x1f00] sm:$0xff]
        %v1609 = vld [vmem:[%s418 + $0x1f08] sm:$0xff]
        %v1610 = vld [vmem:[%s418 + $0x1f10] sm:$0xff]
        %v1611 = vld [vmem:[%s418 + $0x1f18] sm:$0xff]
        %v1612 = vld [vmem:[%s418 + $0x1f20] sm:$0xff]
        %v1613 = vld [vmem:[%s418 + $0x1f28] sm:$0xff]
        %v1614 = vld [vmem:[%s418 + $0x1f30] sm:$0xff]
        %v1615 = vld [vmem:[%s418 + $0x1f38] sm:$0xff]
        %v1616 = vld [vmem:[%s418 + $0x1f40] sm:$0xff]
        %v1617 = vld [vmem:[%s418 + $0x1f48] sm:$0xff]
        %v1618 = vld [vmem:[%s418 + $0x1f50] sm:$0xff]
        %v1619 = vld [vmem:[%s418 + $0x1f58] sm:$0xff]
        %v1620 = vld [vmem:[%s418 + $0x1f60] sm:$0xff]
        %v1621 = vld [vmem:[%s418 + $0x1f68] sm:$0xff]
        %v1622 = vld [vmem:[%s418 + $0x1f70] sm:$0xff]
        %v1623 = vld [vmem:[%s418 + $0x1f78] sm:$0xff]
        %v1624 = vld [vmem:[%s418 + $0x1f80] sm:$0xff]
        %v1625 = vld [vmem:[%s418 + $0x1f88] sm:$0xff]
        %v1626 = vld [vmem:[%s418 + $0x1f90] sm:$0xff]
        %v1627 = vld [vmem:[%s418 + $0x1f98] sm:$0xff]
        %v1628 = vld [vmem:[%s418 + $0x1fa0] sm:$0xff]
        %v1629 = vld [vmem:[%s418 + $0x1fa8] sm:$0xff]
        %v1630 = vld [vmem:[%s418 + $0x1fb0] sm:$0xff]
        %v1631 = vld [vmem:[%s418 + $0x1fb8] sm:$0xff]
        %v1632 = vld [vmem:[%s418 + $0x1fc0] sm:$0xff]
        %v1633 = vld [vmem:[%s418 + $0x1fc8] sm:$0xff]
        %v1634 = vld [vmem:[%s418 + $0x1fd0] sm:$0xff]
        %v1635 = vld [vmem:[%s418 + $0x1fd8] sm:$0xff]
        %v1636 = vld [vmem:[%s418 + $0x1fe0] sm:$0xff]
        %v1637 = vld [vmem:[%s418 + $0x1fe8] sm:$0xff]
        %v1638 = vld [vmem:[%s418 + $0x1ff0] sm:$0xff]
        %v1639 = vld [vmem:[%s418 + $0x1ff8] sm:$0xff]
        %1656 = vst [vmem:[#allocation1] ss:$9 sm:$0xff] %v600
        %s1657 = scalar_lea.vmem [#allocation1], 1
        %1658 = vst [vmem:[%s1657] ss:$9 sm:$0xff] %v608
        %v1659 = vld [vmem:[#allocation1] sm:$0xff]
        %v1660 = vld [vmem:[#allocation1 + $0x9] sm:$0xff]
        %v1661 = vld [vmem:[#allocation1 + $0x12] sm:$0xff]
        %v1662 = vld [vmem:[#allocation1 + $0x1b] sm:$0xff]
        %v1663 = vld [vmem:[#allocation1 + $0x24] sm:$0xff]
        %v1664 = vld [vmem:[#allocation1 + $0x2d] sm:$0xff]
        %v1665 = vld [vmem:[#allocation1 + $0x36] sm:$0xff]
        %v1666 = vld [vmem:[#allocation1 + $0x3f] sm:$0xff]
        %1667 = vst [vmem:[#allocation1] ss:$9 sm:$0xff] %v601
        %1668 = vst [vmem:[%s1657] ss:$9 sm:$0xff] %v609
        %v1669 = vld [vmem:[#allocation1] sm:$0xff]
        %v1670 = vld [vmem:[#allocation1 + $0x9] sm:$0xff]
        %v1671 = vld [vmem:[#allocation1 + $0x12] sm:$0xff]
        %v1672 = vld [vmem:[#allocation1 + $0x1b] sm:$0xff]
        %v1673 = vld [vmem:[#allocation1 + $0x24] sm:$0xff]
        %v1674 = vld [vmem:[#allocation1 + $0x2d] sm:$0xff]
        %v1675 = vld [vmem:[#allocation1 + $0x36] sm:$0xff]
        %v1676 = vld [vmem:[#allocation1 + $0x3f] sm:$0xff]
        %1677 = vst [vmem:[#allocation1] ss:$9 sm:$0xff] %v602
        %1678 = vst [vmem:[%s1657] ss:$9 sm:$0xff] %v610
        %v1679 = vld [vmem:[#allocation1] sm:$0xff]
        %v1680 = vld [vmem:[#allocation1 + $0x9] sm:$0xff]
        %v1681 = vld [vmem:[#allocation1 + $0x12] sm:$0xff]
        %v1682 = vld [vmem:[#allocation1 + $0x1b] sm:$0xff]
        %v1683 = vld [vmem:[#allocation1 + $0x24] sm:$0xff]
        %v1684 = vld [vmem:[#allocation1 + $0x2d] sm:$0xff]
        %v1685 = vld [vmem:[#allocation1 + $0x36] sm:$0xff]
        %v1686 = vld [vmem:[#allocation1 + $0x3f] sm:$0xff]
        %1687 = vst [vmem:[#allocation1] ss:$9 sm:$0xff] %v603
        %1688 = vst [vmem:[%s1657] ss:$9 sm:$0xff] %v611
        %v1689 = vld [vmem:[#allocation1] sm:$0xff]
        %v1690 = vld [vmem:[#allocation1 + $0x9] sm:$0xff]
        %v1691 = vld [vmem:[#allocation1 + $0x12] sm:$0xff]
        %v1692 = vld [vmem:[#allocation1 + $0x1b] sm:$0xff]
        %v1693 = vld [vmem:[#allocation1 + $0x24] sm:$0xff]
        %v1694 = vld [vmem:[#allocation1 + $0x2d] sm:$0xff]
        %v1695 = vld [vmem:[#allocation1 + $0x36] sm:$0xff]
        %v1696 = vld [vmem:[#allocation1 + $0x3f] sm:$0xff]
        %1697 = vst [vmem:[#allocation1] ss:$9 sm:$0xff] %v604
        %1698 = vst [vmem:[%s1657] ss:$9 sm:$0xff] %v612
        %v1699 = vld [vmem:[#allocation1] sm:$0xff]
        %v1700 = vld [vmem:[#allocation1 + $0x9] sm:$0xff]
        %v1701 = vld [vmem:[#allocation1 + $0x12] sm:$0xff]
        %v1702 = vld [vmem:[#allocation1 + $0x1b] sm:$0xff]
        %v1703 = vld [vmem:[#allocation1 + $0x24] sm:$0xff]
        %v1704 = vld [vmem:[#allocation1 + $0x2d] sm:$0xff]
        %v1705 = vld [vmem:[#allocation1 + $0x36] sm:$0xff]
        %v1706 = vld [vmem:[#allocation1 + $0x3f] sm:$0xff]
        %1707 = vst [vmem:[#allocation1] ss:$9 sm:$0xff] %v605
        %1708 = vst [vmem:[%s1657] ss:$9 sm:$0xff] %v613
        %v1709 = vld [vmem:[#allocation1] sm:$0xff]
        %v1710 = vld [vmem:[#allocation1 + $0x9] sm:$0xff]
        %v1711 = vld [vmem:[#allocation1 + $0x12] sm:$0xff]
        %v1712 = vld [vmem:[#allocation1 + $0x1b] sm:$0xff]
        %v1713 = vld [vmem:[#allocation1 + $0x24] sm:$0xff]
        %v1714 = vld [vmem:[#allocation1 + $0x2d] sm:$0xff]
        %v1715 = vld [vmem:[#allocation1 + $0x36] sm:$0xff]
        %v1716 = vld [vmem:[#allocation1 + $0x3f] sm:$0xff]
        %1717 = vst [vmem:[#allocation1] ss:$9 sm:$0xff] %v606
        %1718 = vst [vmem:[%s1657] ss:$9 sm:$0xff] %v614
        %v1719 = vld [vmem:[#allocation1] sm:$0xff]
        %v1720 = vld [vmem:[#allocation1 + $0x9] sm:$0xff]
        %v1721 = vld [vmem:[#allocation1 + $0x12] sm:$0xff]
        %v1722 = vld [vmem:[#allocation1 + $0x1b] sm:$0xff]
        %v1723 = vld [vmem:[#allocation1 + $0x24] sm:$0xff]
        %v1724 = vld [vmem:[#allocation1 + $0x2d] sm:$0xff]
        %v1725 = vld [vmem:[#allocation1 + $0x36] sm:$0xff]
        %v1726 = vld [vmem:[#allocation1 + $0x3f] sm:$0xff]
        %1727 = vst [vmem:[#allocation1] ss:$9 sm:$0xff] %v607
        %1728 = vst [vmem:[%s1657] ss:$9 sm:$0xff] %v615
        %v1729 = vld [vmem:[#allocation1] sm:$0xff]
        %v1730 = vld [vmem:[#allocation1 + $0x9] sm:$0xff]
        %v1731 = vld [vmem:[#allocation1 + $0x12] sm:$0xff]
        %v1732 = vld [vmem:[#allocation1 + $0x1b] sm:$0xff]
        %v1733 = vld [vmem:[#allocation1 + $0x24] sm:$0xff]
        %v1734 = vld [vmem:[#allocation1 + $0x2d] sm:$0xff]
        %v1735 = vld [vmem:[#allocation1 + $0x36] sm:$0xff]
        %v1736 = vld [vmem:[#allocation1 + $0x3f] sm:$0xff]
        %1801 = vmatpush.msra.mxu0 %v631
        %1802 = vmatpush.msra.mxu0 %v630
        %1803 = vmatpush.msra.mxu0 %v629
        %1804 = vmatpush.msra.mxu0 %v628
        %1805 = vmatpush.msra.mxu0 %v627
        %1806 = vmatpush.msra.mxu0 %v626
        %1807 = vmatpush.msra.mxu0 %v625
        %1808 = vmatpush.msra.mxu0 %v624
        %1809 = vmatpush.msra.mxu0 %v623
        %1810 = vmatpush.msra.mxu0 %v622
        %1811 = vmatpush.msra.mxu0 %v621
        %1812 = vmatpush.msra.mxu0 %v620
        %1813 = vmatpush.msra.mxu0 %v619
        %1814 = vmatpush.msra.mxu0 %v618
        %1815 = vmatpush.msra.mxu0 %v617
        %1816 = vmatpush.msra.mxu0 %v616
        %1817 = vmatmul.f32.gmra.mxu0 %v1659
        %v1818 = vpop.f32.mrf.mxu0
        %v1819 = vadd.f32 0.0, %v1818
        %1820 = vdwg.mxu0
        %1821 = vmatpush.msra.mxu0 %v647
        %1822 = vmatpush.msra.mxu0 %v646
        %1823 = vmatpush.msra.mxu0 %v645
        %1824 = vmatpush.msra.mxu0 %v644
        %1825 = vmatpush.msra.mxu0 %v643
        %1826 = vmatpush.msra.mxu0 %v642
        %1827 = vmatpush.msra.mxu0 %v641
        %1828 = vmatpush.msra.mxu0 %v640
        %1829 = vmatpush.msra.mxu0 %v639
        %1830 = vmatpush.msra.mxu0 %v638
        %1831 = vmatpush.msra.mxu0 %v637
        %1832 = vmatpush.msra.mxu0 %v636
        %1833 = vmatpush.msra.mxu0 %v635
        %1834 = vmatpush.msra.mxu0 %v634
        %1835 = vmatpush.msra.mxu0 %v633
        %1836 = vmatpush.msra.mxu0 %v632
        %1837 = vmatmul.f32.gmra.mxu0 %v1660
        %v1838 = vpop.f32.mrf.mxu0
        %v1839 = vadd.f32 %v1819, %v1838
        %1840 = vdwg.mxu0
        %1841 = vmatpush.msra.mxu0 %v663
        %1842 = vmatpush.msra.mxu0 %v662
        %1843 = vmatpush.msra.mxu0 %v661
        %1844 = vmatpush.msra.mxu0 %v660
        %1845 = vmatpush.msra.mxu0 %v659
        %1846 = vmatpush.msra.mxu0 %v658
        %1847 = vmatpush.msra.mxu0 %v657
        %1848 = vmatpush.msra.mxu0 %v656
        %1849 = vmatpush.msra.mxu0 %v655
        %1850 = vmatpush.msra.mxu0 %v654
        %1851 = vmatpush.msra.mxu0 %v653
        %1852 = vmatpush.msra.mxu0 %v652
        %1853 = vmatpush.msra.mxu0 %v651
        %1854 = vmatpush.msra.mxu0 %v650
        %1855 = vmatpush.msra.mxu0 %v649
        %1856 = vmatpush.msra.mxu0 %v648
        %1857 = vmatmul.f32.gmra.mxu0 %v1661
        %v1858 = vpop.f32.mrf.mxu0
        %v1859 = vadd.f32 %v1839, %v1858
        %1860 = vdwg.mxu0
        %1861 = vmatpush.msra.mxu0 %v679
        %1862 = vmatpush.msra.mxu0 %v678
        %1863 = vmatpush.msra.mxu0 %v677
        %1864 = vmatpush.msra.mxu0 %v676
        %1865 = vmatpush.msra.mxu0 %v675
        %1866 = vmatpush.msra.mxu0 %v674
        %1867 = vmatpush.msra.mxu0 %v673
        %1868 = vmatpush.msra.mxu0 %v672
        %1869 = vmatpush.msra.mxu0 %v671
        %1870 = vmatpush.msra.mxu0 %v670
        %1871 = vmatpush.msra.mxu0 %v669
        %1872 = vmatpush.msra.mxu0 %v668
        %1873 = vmatpush.msra.mxu0 %v667
        %1874 = vmatpush.msra.mxu0 %v666
        %1875 = vmatpush.msra.mxu0 %v665
        %1876 = vmatpush.msra.mxu0 %v664
        %1877 = vmatmul.f32.gmra.mxu0 %v1662
        %v1878 = vpop.f32.mrf.mxu0
        %v1879 = vadd.f32 %v1859, %v1878
        %1880 = vdwg.mxu0
        %1881 = vmatpush.msra.mxu0 %v695
        %1882 = vmatpush.msra.mxu0 %v694
        %1883 = vmatpush.msra.mxu0 %v693
        %1884 = vmatpush.msra.mxu0 %v692
        %1885 = vmatpush.msra.mxu0 %v691
        %1886 = vmatpush.msra.mxu0 %v690
        %1887 = vmatpush.msra.mxu0 %v689
        %1888 = vmatpush.msra.mxu0 %v688
        %1889 = vmatpush.msra.mxu0 %v687
        %1890 = vmatpush.msra.mxu0 %v686
        %1891 = vmatpush.msra.mxu0 %v685
        %1892 = vmatpush.msra.mxu0 %v684
        %1893 = vmatpush.msra.mxu0 %v683
        %1894 = vmatpush.msra.mxu0 %v682
        %1895 = vmatpush.msra.mxu0 %v681
        %1896 = vmatpush.msra.mxu0 %v680
        %1897 = vmatmul.f32.gmra.mxu0 %v1663
        %v1898 = vpop.f32.mrf.mxu0
        %v1899 = vadd.f32 %v1879, %v1898
        %1900 = vdwg.mxu0
        %1901 = vmatpush.msra.mxu0 %v711
        %1902 = vmatpush.msra.mxu0 %v710
        %1903 = vmatpush.msra.mxu0 %v709
        %1904 = vmatpush.msra.mxu0 %v708
        %1905 = vmatpush.msra.mxu0 %v707
        %1906 = vmatpush.msra.mxu0 %v706
        %1907 = vmatpush.msra.mxu0 %v705
        %1908 = vmatpush.msra.mxu0 %v704
        %1909 = vmatpush.msra.mxu0 %v703
        %1910 = vmatpush.msra.mxu0 %v702
        %1911 = vmatpush.msra.mxu0 %v701
        %1912 = vmatpush.msra.mxu0 %v700
        %1913 = vmatpush.msra.mxu0 %v699
        %1914 = vmatpush.msra.mxu0 %v698
        %1915 = vmatpush.msra.mxu0 %v697
        %1916 = vmatpush.msra.mxu0 %v696
        %1917 = vmatmul.f32.gmra.mxu0 %v1664
        %v1918 = vpop.f32.mrf.mxu0
        %v1919 = vadd.f32 %v1899, %v1918
        %1920 = vdwg.mxu0
        %1921 = vmatpush.msra.mxu0 %v727
        %1922 = vmatpush.msra.mxu0 %v726
        %1923 = vmatpush.msra.mxu0 %v725
        %1924 = vmatpush.msra.mxu0 %v724
        %1925 = vmatpush.msra.mxu0 %v723
        %1926 = vmatpush.msra.mxu0 %v722
        %1927 = vmatpush.msra.mxu0 %v721
        %1928 = vmatpush.msra.mxu0 %v720
        %1929 = vmatpush.msra.mxu0 %v719
        %1930 = vmatpush.msra.mxu0 %v718
        %1931 = vmatpush.msra.mxu0 %v717
        %1932 = vmatpush.msra.mxu0 %v716
        %1933 = vmatpush.msra.mxu0 %v715
        %1934 = vmatpush.msra.mxu0 %v714
        %1935 = vmatpush.msra.mxu0 %v713
        %1936 = vmatpush.msra.mxu0 %v712
        %1937 = vmatmul.f32.gmra.mxu0 %v1665
        %v1938 = vpop.f32.mrf.mxu0
        %v1939 = vadd.f32 %v1919, %v1938
        %1940 = vdwg.mxu0
        %1941 = vmatpush.msra.mxu0 %v743
        %1942 = vmatpush.msra.mxu0 %v742
        %1943 = vmatpush.msra.mxu0 %v741
        %1944 = vmatpush.msra.mxu0 %v740
        %1945 = vmatpush.msra.mxu0 %v739
        %1946 = vmatpush.msra.mxu0 %v738
        %1947 = vmatpush.msra.mxu0 %v737
        %1948 = vmatpush.msra.mxu0 %v736
        %1949 = vmatpush.msra.mxu0 %v735
        %1950 = vmatpush.msra.mxu0 %v734
        %1951 = vmatpush.msra.mxu0 %v733
        %1952 = vmatpush.msra.mxu0 %v732
        %1953 = vmatpush.msra.mxu0 %v731
        %1954 = vmatpush.msra.mxu0 %v730
        %1955 = vmatpush.msra.mxu0 %v729
        %1956 = vmatpush.msra.mxu0 %v728
        %1957 = vmatmul.f32.gmra.mxu0 %v1666
        %v1958 = vpop.f32.mrf.mxu0
        %v1959 = vadd.f32 %v1939, %v1958
        %1960 = vdwg.mxu0
        %1961 = vmatpush.msra.mxu0 %v759
        %1962 = vmatpush.msra.mxu0 %v758
        %1963 = vmatpush.msra.mxu0 %v757
        %1964 = vmatpush.msra.mxu0 %v756
        %1965 = vmatpush.msra.mxu0 %v755
        %1966 = vmatpush.msra.mxu0 %v754
        %1967 = vmatpush.msra.mxu0 %v753
        %1968 = vmatpush.msra.mxu0 %v752
        %1969 = vmatpush.msra.mxu0 %v751
        %1970 = vmatpush.msra.mxu0 %v750
        %1971 = vmatpush.msra.mxu0 %v749
        %1972 = vmatpush.msra.mxu0 %v748
        %1973 = vmatpush.msra.mxu0 %v747
        %1974 = vmatpush.msra.mxu0 %v746
        %1975 = vmatpush.msra.mxu0 %v745
        %1976 = vmatpush.msra.mxu0 %v744
        %1977 = vmatmul.f32.gmra.mxu0 %v1669
        %v1978 = vpop.f32.mrf.mxu0
        %v1979 = vadd.f32 %v1959, %v1978
        %1980 = vdwg.mxu0
        %1981 = vmatpush.msra.mxu0 %v775
        %1982 = vmatpush.msra.mxu0 %v774
        %1983 = vmatpush.msra.mxu0 %v773
        %1984 = vmatpush.msra.mxu0 %v772
        %1985 = vmatpush.msra.mxu0 %v771
        %1986 = vmatpush.msra.mxu0 %v770
        %1987 = vmatpush.msra.mxu0 %v769
        %1988 = vmatpush.msra.mxu0 %v768
        %1989 = vmatpush.msra.mxu0 %v767
        %1990 = vmatpush.msra.mxu0 %v766
        %1991 = vmatpush.msra.mxu0 %v765
        %1992 = vmatpush.msra.mxu0 %v764
        %1993 = vmatpush.msra.mxu0 %v763
        %1994 = vmatpush.msra.mxu0 %v762
        %1995 = vmatpush.msra.mxu0 %v761
        %1996 = vmatpush.msra.mxu0 %v760
        %1997 = vmatmul.f32.gmra.mxu0 %v1670
        %v1998 = vpop.f32.mrf.mxu0
        %v1999 = vadd.f32 %v1979, %v1998
        %2000 = vdwg.mxu0
        %2001 = vmatpush.msra.mxu0 %v791
        %2002 = vmatpush.msra.mxu0 %v790
        %2003 = vmatpush.msra.mxu0 %v789
        %2004 = vmatpush.msra.mxu0 %v788
        %2005 = vmatpush.msra.mxu0 %v787
        %2006 = vmatpush.msra.mxu0 %v786
        %2007 = vmatpush.msra.mxu0 %v785
        %2008 = vmatpush.msra.mxu0 %v784
        %2009 = vmatpush.msra.mxu0 %v783
        %2010 = vmatpush.msra.mxu0 %v782
        %2011 = vmatpush.msra.mxu0 %v781
        %2012 = vmatpush.msra.mxu0 %v780
        %2013 = vmatpush.msra.mxu0 %v779
        %2014 = vmatpush.msra.mxu0 %v778
        %2015 = vmatpush.msra.mxu0 %v777
        %2016 = vmatpush.msra.mxu0 %v776
        %2017 = vmatmul.f32.gmra.mxu0 %v1671
        %v2018 = vpop.f32.mrf.mxu0
        %v2019 = vadd.f32 %v1999, %v2018
        %2020 = vdwg.mxu0
        %2021 = vmatpush.msra.mxu0 %v807
        %2022 = vmatpush.msra.mxu0 %v806
        %2023 = vmatpush.msra.mxu0 %v805
        %2024 = vmatpush.msra.mxu0 %v804
        %2025 = vmatpush.msra.mxu0 %v803
        %2026 = vmatpush.msra.mxu0 %v802
        %2027 = vmatpush.msra.mxu0 %v801
        %2028 = vmatpush.msra.mxu0 %v800
        %2029 = vmatpush.msra.mxu0 %v799
        %2030 = vmatpush.msra.mxu0 %v798
        %2031 = vmatpush.msra.mxu0 %v797
        %2032 = vmatpush.msra.mxu0 %v796
        %2033 = vmatpush.msra.mxu0 %v795
        %2034 = vmatpush.msra.mxu0 %v794
        %2035 = vmatpush.msra.mxu0 %v793
        %2036 = vmatpush.msra.mxu0 %v792
        %2037 = vmatmul.f32.gmra.mxu0 %v1672
        %v2038 = vpop.f32.mrf.mxu0
        %v2039 = vadd.f32 %v2019, %v2038
        %2040 = vdwg.mxu0
        %2041 = vmatpush.msra.mxu0 %v823
        %2042 = vmatpush.msra.mxu0 %v822
        %2043 = vmatpush.msra.mxu0 %v821
        %2044 = vmatpush.msra.mxu0 %v820
        %2045 = vmatpush.msra.mxu0 %v819
        %2046 = vmatpush.msra.mxu0 %v818
        %2047 = vmatpush.msra.mxu0 %v817
        %2048 = vmatpush.msra.mxu0 %v816
        %2049 = vmatpush.msra.mxu0 %v815
        %2050 = vmatpush.msra.mxu0 %v814
        %2051 = vmatpush.msra.mxu0 %v813
        %2052 = vmatpush.msra.mxu0 %v812
        %2053 = vmatpush.msra.mxu0 %v811
        %2054 = vmatpush.msra.mxu0 %v810
        %2055 = vmatpush.msra.mxu0 %v809
        %2056 = vmatpush.msra.mxu0 %v808
        %2057 = vmatmul.f32.gmra.mxu0 %v1673
        %v2058 = vpop.f32.mrf.mxu0
        %v2059 = vadd.f32 %v2039, %v2058
        %2060 = vdwg.mxu0
        %2061 = vmatpush.msra.mxu0 %v839
        %2062 = vmatpush.msra.mxu0 %v838
        %2063 = vmatpush.msra.mxu0 %v837
        %2064 = vmatpush.msra.mxu0 %v836
        %2065 = vmatpush.msra.mxu0 %v835
        %2066 = vmatpush.msra.mxu0 %v834
        %2067 = vmatpush.msra.mxu0 %v833
        %2068 = vmatpush.msra.mxu0 %v832
        %2069 = vmatpush.msra.mxu0 %v831
        %2070 = vmatpush.msra.mxu0 %v830
        %2071 = vmatpush.msra.mxu0 %v829
        %2072 = vmatpush.msra.mxu0 %v828
        %2073 = vmatpush.msra.mxu0 %v827
        %2074 = vmatpush.msra.mxu0 %v826
        %2075 = vmatpush.msra.mxu0 %v825
        %2076 = vmatpush.msra.mxu0 %v824
        %2077 = vmatmul.f32.gmra.mxu0 %v1674
        %v2078 = vpop.f32.mrf.mxu0
        %v2079 = vadd.f32 %v2059, %v2078
        %2080 = vdwg.mxu0
        %2081 = vmatpush.msra.mxu0 %v855
        %2082 = vmatpush.msra.mxu0 %v854
        %2083 = vmatpush.msra.mxu0 %v853
        %2084 = vmatpush.msra.mxu0 %v852
        %2085 = vmatpush.msra.mxu0 %v851
        %2086 = vmatpush.msra.mxu0 %v850
        %2087 = vmatpush.msra.mxu0 %v849
        %2088 = vmatpush.msra.mxu0 %v848
        %2089 = vmatpush.msra.mxu0 %v847
        %2090 = vmatpush.msra.mxu0 %v846
        %2091 = vmatpush.msra.mxu0 %v845
        %2092 = vmatpush.msra.mxu0 %v844
        %2093 = vmatpush.msra.mxu0 %v843
        %2094 = vmatpush.msra.mxu0 %v842
        %2095 = vmatpush.msra.mxu0 %v841
        %2096 = vmatpush.msra.mxu0 %v840
        %2097 = vmatmul.f32.gmra.mxu0 %v1675
        %v2098 = vpop.f32.mrf.mxu0
        %v2099 = vadd.f32 %v2079, %v2098
        %2100 = vdwg.mxu0
        %2101 = vmatpush.msra.mxu0 %v871
        %2102 = vmatpush.msra.mxu0 %v870
        %2103 = vmatpush.msra.mxu0 %v869
        %2104 = vmatpush.msra.mxu0 %v868
        %2105 = vmatpush.msra.mxu0 %v867
        %2106 = vmatpush.msra.mxu0 %v866
        %2107 = vmatpush.msra.mxu0 %v865
        %2108 = vmatpush.msra.mxu0 %v864
        %2109 = vmatpush.msra.mxu0 %v863
        %2110 = vmatpush.msra.mxu0 %v862
        %2111 = vmatpush.msra.mxu0 %v861
        %2112 = vmatpush.msra.mxu0 %v860
        %2113 = vmatpush.msra.mxu0 %v859
        %2114 = vmatpush.msra.mxu0 %v858
        %2115 = vmatpush.msra.mxu0 %v857
        %2116 = vmatpush.msra.mxu0 %v856
        %2117 = vmatmul.f32.gmra.mxu0 %v1676
        %v2118 = vpop.f32.mrf.mxu0
        %v2119 = vadd.f32 %v2099, %v2118
        %2120 = vdwg.mxu0
        %2121 = vmatpush.msra.mxu0 %v887
        %2122 = vmatpush.msra.mxu0 %v886
        %2123 = vmatpush.msra.mxu0 %v885
        %2124 = vmatpush.msra.mxu0 %v884
        %2125 = vmatpush.msra.mxu0 %v883
        %2126 = vmatpush.msra.mxu0 %v882
        %2127 = vmatpush.msra.mxu0 %v881
        %2128 = vmatpush.msra.mxu0 %v880
        %2129 = vmatpush.msra.mxu0 %v879
        %2130 = vmatpush.msra.mxu0 %v878
        %2131 = vmatpush.msra.mxu0 %v877
        %2132 = vmatpush.msra.mxu0 %v876
        %2133 = vmatpush.msra.mxu0 %v875
        %2134 = vmatpush.msra.mxu0 %v874
        %2135 = vmatpush.msra.mxu0 %v873
        %2136 = vmatpush.msra.mxu0 %v872
        %2137 = vmatmul.f32.gmra.mxu0 %v1679
        %v2138 = vpop.f32.mrf.mxu0
        %v2139 = vadd.f32 %v2119, %v2138
        %2140 = vdwg.mxu0
        %2141 = vmatpush.msra.mxu0 %v903
        %2142 = vmatpush.msra.mxu0 %v902
        %2143 = vmatpush.msra.mxu0 %v901
        %2144 = vmatpush.msra.mxu0 %v900
        %2145 = vmatpush.msra.mxu0 %v899
        %2146 = vmatpush.msra.mxu0 %v898
        %2147 = vmatpush.msra.mxu0 %v897
        %2148 = vmatpush.msra.mxu0 %v896
        %2149 = vmatpush.msra.mxu0 %v895
        %2150 = vmatpush.msra.mxu0 %v894
        %2151 = vmatpush.msra.mxu0 %v893
        %2152 = vmatpush.msra.mxu0 %v892
        %2153 = vmatpush.msra.mxu0 %v891
        %2154 = vmatpush.msra.mxu0 %v890
        %2155 = vmatpush.msra.mxu0 %v889
        %2156 = vmatpush.msra.mxu0 %v888
        %2157 = vmatmul.f32.gmra.mxu0 %v1680
        %v2158 = vpop.f32.mrf.mxu0
        %v2159 = vadd.f32 %v2139, %v2158
        %2160 = vdwg.mxu0
        %2161 = vmatpush.msra.mxu0 %v919
        %2162 = vmatpush.msra.mxu0 %v918
        %2163 = vmatpush.msra.mxu0 %v917
        %2164 = vmatpush.msra.mxu0 %v916
        %2165 = vmatpush.msra.mxu0 %v915
        %2166 = vmatpush.msra.mxu0 %v914
        %2167 = vmatpush.msra.mxu0 %v913
        %2168 = vmatpush.msra.mxu0 %v912
        %2169 = vmatpush.msra.mxu0 %v911
        %2170 = vmatpush.msra.mxu0 %v910
        %2171 = vmatpush.msra.mxu0 %v909
        %2172 = vmatpush.msra.mxu0 %v908
        %2173 = vmatpush.msra.mxu0 %v907
        %2174 = vmatpush.msra.mxu0 %v906
        %2175 = vmatpush.msra.mxu0 %v905
        %2176 = vmatpush.msra.mxu0 %v904
        %2177 = vmatmul.f32.gmra.mxu0 %v1681
        %v2178 = vpop.f32.mrf.mxu0
        %v2179 = vadd.f32 %v2159, %v2178
        %2180 = vdwg.mxu0
        %2181 = vmatpush.msra.mxu0 %v935
        %2182 = vmatpush.msra.mxu0 %v934
        %2183 = vmatpush.msra.mxu0 %v933
        %2184 = vmatpush.msra.mxu0 %v932
        %2185 = vmatpush.msra.mxu0 %v931
        %2186 = vmatpush.msra.mxu0 %v930
        %2187 = vmatpush.msra.mxu0 %v929
        %2188 = vmatpush.msra.mxu0 %v928
        %2189 = vmatpush.msra.mxu0 %v927
        %2190 = vmatpush.msra.mxu0 %v926
        %2191 = vmatpush.msra.mxu0 %v925
        %2192 = vmatpush.msra.mxu0 %v924
        %2193 = vmatpush.msra.mxu0 %v923
        %2194 = vmatpush.msra.mxu0 %v922
        %2195 = vmatpush.msra.mxu0 %v921
        %2196 = vmatpush.msra.mxu0 %v920
        %2197 = vmatmul.f32.gmra.mxu0 %v1682
        %v2198 = vpop.f32.mrf.mxu0
        %v2199 = vadd.f32 %v2179, %v2198
        %2200 = vdwg.mxu0
        %2201 = vmatpush.msra.mxu0 %v951
        %2202 = vmatpush.msra.mxu0 %v950
        %2203 = vmatpush.msra.mxu0 %v949
        %2204 = vmatpush.msra.mxu0 %v948
        %2205 = vmatpush.msra.mxu0 %v947
        %2206 = vmatpush.msra.mxu0 %v946
        %2207 = vmatpush.msra.mxu0 %v945
        %2208 = vmatpush.msra.mxu0 %v944
        %2209 = vmatpush.msra.mxu0 %v943
        %2210 = vmatpush.msra.mxu0 %v942
        %2211 = vmatpush.msra.mxu0 %v941
        %2212 = vmatpush.msra.mxu0 %v940
        %2213 = vmatpush.msra.mxu0 %v939
        %2214 = vmatpush.msra.mxu0 %v938
        %2215 = vmatpush.msra.mxu0 %v937
        %2216 = vmatpush.msra.mxu0 %v936
        %2217 = vmatmul.f32.gmra.mxu0 %v1683
        %v2218 = vpop.f32.mrf.mxu0
        %v2219 = vadd.f32 %v2199, %v2218
        %2220 = vdwg.mxu0
        %2221 = vmatpush.msra.mxu0 %v967
        %2222 = vmatpush.msra.mxu0 %v966
        %2223 = vmatpush.msra.mxu0 %v965
        %2224 = vmatpush.msra.mxu0 %v964
        %2225 = vmatpush.msra.mxu0 %v963
        %2226 = vmatpush.msra.mxu0 %v962
        %2227 = vmatpush.msra.mxu0 %v961
        %2228 = vmatpush.msra.mxu0 %v960
        %2229 = vmatpush.msra.mxu0 %v959
        %2230 = vmatpush.msra.mxu0 %v958
        %2231 = vmatpush.msra.mxu0 %v957
        %2232 = vmatpush.msra.mxu0 %v956
        %2233 = vmatpush.msra.mxu0 %v955
        %2234 = vmatpush.msra.mxu0 %v954
        %2235 = vmatpush.msra.mxu0 %v953
        %2236 = vmatpush.msra.mxu0 %v952
        %2237 = vmatmul.f32.gmra.mxu0 %v1684
        %v2238 = vpop.f32.mrf.mxu0
        %v2239 = vadd.f32 %v2219, %v2238
        %2240 = vdwg.mxu0
        %2241 = vmatpush.msra.mxu0 %v983
        %2242 = vmatpush.msra.mxu0 %v982
        %2243 = vmatpush.msra.mxu0 %v981
        %2244 = vmatpush.msra.mxu0 %v980
        %2245 = vmatpush.msra.mxu0 %v979
        %2246 = vmatpush.msra.mxu0 %v978
        %2247 = vmatpush.msra.mxu0 %v977
        %2248 = vmatpush.msra.mxu0 %v976
        %2249 = vmatpush.msra.mxu0 %v975
        %2250 = vmatpush.msra.mxu0 %v974
        %2251 = vmatpush.msra.mxu0 %v973
        %2252 = vmatpush.msra.mxu0 %v972
        %2253 = vmatpush.msra.mxu0 %v971
        %2254 = vmatpush.msra.mxu0 %v970
        %2255 = vmatpush.msra.mxu0 %v969
        %2256 = vmatpush.msra.mxu0 %v968
        %2257 = vmatmul.f32.gmra.mxu0 %v1685
        %v2258 = vpop.f32.mrf.mxu0
        %v2259 = vadd.f32 %v2239, %v2258
        %2260 = vdwg.mxu0
        %2261 = vmatpush.msra.mxu0 %v999
        %2262 = vmatpush.msra.mxu0 %v998
        %2263 = vmatpush.msra.mxu0 %v997
        %2264 = vmatpush.msra.mxu0 %v996
        %2265 = vmatpush.msra.mxu0 %v995
        %2266 = vmatpush.msra.mxu0 %v994
        %2267 = vmatpush.msra.mxu0 %v993
        %2268 = vmatpush.msra.mxu0 %v992
        %2269 = vmatpush.msra.mxu0 %v991
        %2270 = vmatpush.msra.mxu0 %v990
        %2271 = vmatpush.msra.mxu0 %v989
        %2272 = vmatpush.msra.mxu0 %v988
        %2273 = vmatpush.msra.mxu0 %v987
        %2274 = vmatpush.msra.mxu0 %v986
        %2275 = vmatpush.msra.mxu0 %v985
        %2276 = vmatpush.msra.mxu0 %v984
        %2277 = vmatmul.f32.gmra.mxu0 %v1686
        %v2278 = vpop.f32.mrf.mxu0
        %v2279 = vadd.f32 %v2259, %v2278
        %2280 = vdwg.mxu0
        %2281 = vmatpush.msra.mxu0 %v1015
        %2282 = vmatpush.msra.mxu0 %v1014
        %2283 = vmatpush.msra.mxu0 %v1013
        %2284 = vmatpush.msra.mxu0 %v1012
        %2285 = vmatpush.msra.mxu0 %v1011
        %2286 = vmatpush.msra.mxu0 %v1010
        %2287 = vmatpush.msra.mxu0 %v1009
        %2288 = vmatpush.msra.mxu0 %v1008
        %2289 = vmatpush.msra.mxu0 %v1007
        %2290 = vmatpush.msra.mxu0 %v1006
        %2291 = vmatpush.msra.mxu0 %v1005
        %2292 = vmatpush.msra.mxu0 %v1004
        %2293 = vmatpush.msra.mxu0 %v1003
        %2294 = vmatpush.msra.mxu0 %v1002
        %2295 = vmatpush.msra.mxu0 %v1001
        %2296 = vmatpush.msra.mxu0 %v1000
        %2297 = vmatmul.f32.gmra.mxu0 %v1689
        %v2298 = vpop.f32.mrf.mxu0
        %v2299 = vadd.f32 %v2279, %v2298
        %2300 = vdwg.mxu0
        %2301 = vmatpush.msra.mxu0 %v1031
        %2302 = vmatpush.msra.mxu0 %v1030
        %2303 = vmatpush.msra.mxu0 %v1029
        %2304 = vmatpush.msra.mxu0 %v1028
        %2305 = vmatpush.msra.mxu0 %v1027
        %2306 = vmatpush.msra.mxu0 %v1026
        %2307 = vmatpush.msra.mxu0 %v1025
        %2308 = vmatpush.msra.mxu0 %v1024
        %2309 = vmatpush.msra.mxu0 %v1023
        %2310 = vmatpush.msra.mxu0 %v1022
        %2311 = vmatpush.msra.mxu0 %v1021
        %2312 = vmatpush.msra.mxu0 %v1020
        %2313 = vmatpush.msra.mxu0 %v1019
        %2314 = vmatpush.msra.mxu0 %v1018
        %2315 = vmatpush.msra.mxu0 %v1017
        %2316 = vmatpush.msra.mxu0 %v1016
        %2317 = vmatmul.f32.gmra.mxu0 %v1690
        %v2318 = vpop.f32.mrf.mxu0
        %v2319 = vadd.f32 %v2299, %v2318
        %2320 = vdwg.mxu0
        %2321 = vmatpush.msra.mxu0 %v1047
        %2322 = vmatpush.msra.mxu0 %v1046
        %2323 = vmatpush.msra.mxu0 %v1045
        %2324 = vmatpush.msra.mxu0 %v1044
        %2325 = vmatpush.msra.mxu0 %v1043
        %2326 = vmatpush.msra.mxu0 %v1042
        %2327 = vmatpush.msra.mxu0 %v1041
        %2328 = vmatpush.msra.mxu0 %v1040
        %2329 = vmatpush.msra.mxu0 %v1039
        %2330 = vmatpush.msra.mxu0 %v1038
        %2331 = vmatpush.msra.mxu0 %v1037
        %2332 = vmatpush.msra.mxu0 %v1036
        %2333 = vmatpush.msra.mxu0 %v1035
        %2334 = vmatpush.msra.mxu0 %v1034
        %2335 = vmatpush.msra.mxu0 %v1033
        %2336 = vmatpush.msra.mxu0 %v1032
        %2337 = vmatmul.f32.gmra.mxu0 %v1691
        %v2338 = vpop.f32.mrf.mxu0
        %v2339 = vadd.f32 %v2319, %v2338
        %2340 = vdwg.mxu0
        %2341 = vmatpush.msra.mxu0 %v1063
        %2342 = vmatpush.msra.mxu0 %v1062
        %2343 = vmatpush.msra.mxu0 %v1061
        %2344 = vmatpush.msra.mxu0 %v1060
        %2345 = vmatpush.msra.mxu0 %v1059
        %2346 = vmatpush.msra.mxu0 %v1058
        %2347 = vmatpush.msra.mxu0 %v1057
        %2348 = vmatpush.msra.mxu0 %v1056
        %2349 = vmatpush.msra.mxu0 %v1055
        %2350 = vmatpush.msra.mxu0 %v1054
        %2351 = vmatpush.msra.mxu0 %v1053
        %2352 = vmatpush.msra.mxu0 %v1052
        %2353 = vmatpush.msra.mxu0 %v1051
        %2354 = vmatpush.msra.mxu0 %v1050
        %2355 = vmatpush.msra.mxu0 %v1049
        %2356 = vmatpush.msra.mxu0 %v1048
        %2357 = vmatmul.f32.gmra.mxu0 %v1692
        %v2358 = vpop.f32.mrf.mxu0
        %v2359 = vadd.f32 %v2339, %v2358
        %2360 = vdwg.mxu0
        %2361 = vmatpush.msra.mxu0 %v1079
        %2362 = vmatpush.msra.mxu0 %v1078
        %2363 = vmatpush.msra.mxu0 %v1077
        %2364 = vmatpush.msra.mxu0 %v1076
        %2365 = vmatpush.msra.mxu0 %v1075
        %2366 = vmatpush.msra.mxu0 %v1074
        %2367 = vmatpush.msra.mxu0 %v1073
        %2368 = vmatpush.msra.mxu0 %v1072
        %2369 = vmatpush.msra.mxu0 %v1071
        %2370 = vmatpush.msra.mxu0 %v1070
        %2371 = vmatpush.msra.mxu0 %v1069
        %2372 = vmatpush.msra.mxu0 %v1068
        %2373 = vmatpush.msra.mxu0 %v1067
        %2374 = vmatpush.msra.mxu0 %v1066
        %2375 = vmatpush.msra.mxu0 %v1065
        %2376 = vmatpush.msra.mxu0 %v1064
        %2377 = vmatmul.f32.gmra.mxu0 %v1693
        %v2378 = vpop.f32.mrf.mxu0
        %v2379 = vadd.f32 %v2359, %v2378
        %2380 = vdwg.mxu0
        %2381 = vmatpush.msra.mxu0 %v1095
        %2382 = vmatpush.msra.mxu0 %v1094
        %2383 = vmatpush.msra.mxu0 %v1093
        %2384 = vmatpush.msra.mxu0 %v1092
        %2385 = vmatpush.msra.mxu0 %v1091
        %2386 = vmatpush.msra.mxu0 %v1090
        %2387 = vmatpush.msra.mxu0 %v1089
        %2388 = vmatpush.msra.mxu0 %v1088
        %2389 = vmatpush.msra.mxu0 %v1087
        %2390 = vmatpush.msra.mxu0 %v1086
        %2391 = vmatpush.msra.mxu0 %v1085
        %2392 = vmatpush.msra.mxu0 %v1084
        %2393 = vmatpush.msra.mxu0 %v1083
        %2394 = vmatpush.msra.mxu0 %v1082
        %2395 = vmatpush.msra.mxu0 %v1081
        %2396 = vmatpush.msra.mxu0 %v1080
        %2397 = vmatmul.f32.gmra.mxu0 %v1694
        %v2398 = vpop.f32.mrf.mxu0
        %v2399 = vadd.f32 %v2379, %v2398
        %2400 = vdwg.mxu0
        %2401 = vmatpush.msra.mxu0 %v1111
        %2402 = vmatpush.msra.mxu0 %v1110
        %2403 = vmatpush.msra.mxu0 %v1109
        %2404 = vmatpush.msra.mxu0 %v1108
        %2405 = vmatpush.msra.mxu0 %v1107
        %2406 = vmatpush.msra.mxu0 %v1106
        %2407 = vmatpush.msra.mxu0 %v1105
        %2408 = vmatpush.msra.mxu0 %v1104
        %2409 = vmatpush.msra.mxu0 %v1103
        %2410 = vmatpush.msra.mxu0 %v1102
        %2411 = vmatpush.msra.mxu0 %v1101
        %2412 = vmatpush.msra.mxu0 %v1100
        %2413 = vmatpush.msra.mxu0 %v1099
        %2414 = vmatpush.msra.mxu0 %v1098
        %2415 = vmatpush.msra.mxu0 %v1097
        %2416 = vmatpush.msra.mxu0 %v1096
        %2417 = vmatmul.f32.gmra.mxu0 %v1695
        %v2418 = vpop.f32.mrf.mxu0
        %v2419 = vadd.f32 %v2399, %v2418
        %2420 = vdwg.mxu0
        %2421 = vmatpush.msra.mxu0 %v1127
        %2422 = vmatpush.msra.mxu0 %v1126
        %2423 = vmatpush.msra.mxu0 %v1125
        %2424 = vmatpush.msra.mxu0 %v1124
        %2425 = vmatpush.msra.mxu0 %v1123
        %2426 = vmatpush.msra.mxu0 %v1122
        %2427 = vmatpush.msra.mxu0 %v1121
        %2428 = vmatpush.msra.mxu0 %v1120
        %2429 = vmatpush.msra.mxu0 %v1119
        %2430 = vmatpush.msra.mxu0 %v1118
        %2431 = vmatpush.msra.mxu0 %v1117
        %2432 = vmatpush.msra.mxu0 %v1116
        %2433 = vmatpush.msra.mxu0 %v1115
        %2434 = vmatpush.msra.mxu0 %v1114
        %2435 = vmatpush.msra.mxu0 %v1113
        %2436 = vmatpush.msra.mxu0 %v1112
        %2437 = vmatmul.f32.gmra.mxu0 %v1696
        %v2438 = vpop.f32.mrf.mxu0
        %v2439 = vadd.f32 %v2419, %v2438
        %2440 = vdwg.mxu0
        %2441 = vmatpush.msra.mxu0 %v1143
        %2442 = vmatpush.msra.mxu0 %v1142
        %2443 = vmatpush.msra.mxu0 %v1141
        %2444 = vmatpush.msra.mxu0 %v1140
        %2445 = vmatpush.msra.mxu0 %v1139
        %2446 = vmatpush.msra.mxu0 %v1138
        %2447 = vmatpush.msra.mxu0 %v1137
        %2448 = vmatpush.msra.mxu0 %v1136
        %2449 = vmatpush.msra.mxu0 %v1135
        %2450 = vmatpush.msra.mxu0 %v1134
        %2451 = vmatpush.msra.mxu0 %v1133
        %2452 = vmatpush.msra.mxu0 %v1132
        %2453 = vmatpush.msra.mxu0 %v1131
        %2454 = vmatpush.msra.mxu0 %v1130
        %2455 = vmatpush.msra.mxu0 %v1129
        %2456 = vmatpush.msra.mxu0 %v1128
        %2457 = vmatmul.f32.gmra.mxu0 %v1699
        %v2458 = vpop.f32.mrf.mxu0
        %v2459 = vadd.f32 %v2439, %v2458
        %2460 = vdwg.mxu0
        %2461 = vmatpush.msra.mxu0 %v1159
        %2462 = vmatpush.msra.mxu0 %v1158
        %2463 = vmatpush.msra.mxu0 %v1157
        %2464 = vmatpush.msra.mxu0 %v1156
        %2465 = vmatpush.msra.mxu0 %v1155
        %2466 = vmatpush.msra.mxu0 %v1154
        %2467 = vmatpush.msra.mxu0 %v1153
        %2468 = vmatpush.msra.mxu0 %v1152
        %2469 = vmatpush.msra.mxu0 %v1151
        %2470 = vmatpush.msra.mxu0 %v1150
        %2471 = vmatpush.msra.mxu0 %v1149
        %2472 = vmatpush.msra.mxu0 %v1148
        %2473 = vmatpush.msra.mxu0 %v1147
        %2474 = vmatpush.msra.mxu0 %v1146
        %2475 = vmatpush.msra.mxu0 %v1145
        %2476 = vmatpush.msra.mxu0 %v1144
        %2477 = vmatmul.f32.gmra.mxu0 %v1700
        %v2478 = vpop.f32.mrf.mxu0
        %v2479 = vadd.f32 %v2459, %v2478
        %2480 = vdwg.mxu0
        %2481 = vmatpush.msra.mxu0 %v1175
        %2482 = vmatpush.msra.mxu0 %v1174
        %2483 = vmatpush.msra.mxu0 %v1173
        %2484 = vmatpush.msra.mxu0 %v1172
        %2485 = vmatpush.msra.mxu0 %v1171
        %2486 = vmatpush.msra.mxu0 %v1170
        %2487 = vmatpush.msra.mxu0 %v1169
        %2488 = vmatpush.msra.mxu0 %v1168
        %2489 = vmatpush.msra.mxu0 %v1167
        %2490 = vmatpush.msra.mxu0 %v1166
        %2491 = vmatpush.msra.mxu0 %v1165
        %2492 = vmatpush.msra.mxu0 %v1164
        %2493 = vmatpush.msra.mxu0 %v1163
        %2494 = vmatpush.msra.mxu0 %v1162
        %2495 = vmatpush.msra.mxu0 %v1161
        %2496 = vmatpush.msra.mxu0 %v1160
        %2497 = vmatmul.f32.gmra.mxu0 %v1701
        %v2498 = vpop.f32.mrf.mxu0
        %v2499 = vadd.f32 %v2479, %v2498
        %2500 = vdwg.mxu0
        %2501 = vmatpush.msra.mxu0 %v1191
        %2502 = vmatpush.msra.mxu0 %v1190
        %2503 = vmatpush.msra.mxu0 %v1189
        %2504 = vmatpush.msra.mxu0 %v1188
        %2505 = vmatpush.msra.mxu0 %v1187
        %2506 = vmatpush.msra.mxu0 %v1186
        %2507 = vmatpush.msra.mxu0 %v1185
        %2508 = vmatpush.msra.mxu0 %v1184
        %2509 = vmatpush.msra.mxu0 %v1183
        %2510 = vmatpush.msra.mxu0 %v1182
        %2511 = vmatpush.msra.mxu0 %v1181
        %2512 = vmatpush.msra.mxu0 %v1180
        %2513 = vmatpush.msra.mxu0 %v1179
        %2514 = vmatpush.msra.mxu0 %v1178
        %2515 = vmatpush.msra.mxu0 %v1177
        %2516 = vmatpush.msra.mxu0 %v1176
        %2517 = vmatmul.f32.gmra.mxu0 %v1702
        %v2518 = vpop.f32.mrf.mxu0
        %v2519 = vadd.f32 %v2499, %v2518
        %2520 = vdwg.mxu0
        %2521 = vmatpush.msra.mxu0 %v1207
        %2522 = vmatpush.msra.mxu0 %v1206
        %2523 = vmatpush.msra.mxu0 %v1205
        %2524 = vmatpush.msra.mxu0 %v1204
        %2525 = vmatpush.msra.mxu0 %v1203
        %2526 = vmatpush.msra.mxu0 %v1202
        %2527 = vmatpush.msra.mxu0 %v1201
        %2528 = vmatpush.msra.mxu0 %v1200
        %2529 = vmatpush.msra.mxu0 %v1199
        %2530 = vmatpush.msra.mxu0 %v1198
        %2531 = vmatpush.msra.mxu0 %v1197
        %2532 = vmatpush.msra.mxu0 %v1196
        %2533 = vmatpush.msra.mxu0 %v1195
        %2534 = vmatpush.msra.mxu0 %v1194
        %2535 = vmatpush.msra.mxu0 %v1193
        %2536 = vmatpush.msra.mxu0 %v1192
        %2537 = vmatmul.f32.gmra.mxu0 %v1703
        %v2538 = vpop.f32.mrf.mxu0
        %v2539 = vadd.f32 %v2519, %v2538
        %2540 = vdwg.mxu0
        %2541 = vmatpush.msra.mxu0 %v1223
        %2542 = vmatpush.msra.mxu0 %v1222
        %2543 = vmatpush.msra.mxu0 %v1221
        %2544 = vmatpush.msra.mxu0 %v1220
        %2545 = vmatpush.msra.mxu0 %v1219
        %2546 = vmatpush.msra.mxu0 %v1218
        %2547 = vmatpush.msra.mxu0 %v1217
        %2548 = vmatpush.msra.mxu0 %v1216
        %2549 = vmatpush.msra.mxu0 %v1215
        %2550 = vmatpush.msra.mxu0 %v1214
        %2551 = vmatpush.msra.mxu0 %v1213
        %2552 = vmatpush.msra.mxu0 %v1212
        %2553 = vmatpush.msra.mxu0 %v1211
        %2554 = vmatpush.msra.mxu0 %v1210
        %2555 = vmatpush.msra.mxu0 %v1209
        %2556 = vmatpush.msra.mxu0 %v1208
        %2557 = vmatmul.f32.gmra.mxu0 %v1704
        %v2558 = vpop.f32.mrf.mxu0
        %v2559 = vadd.f32 %v2539, %v2558
        %2560 = vdwg.mxu0
        %2561 = vmatpush.msra.mxu0 %v1239
        %2562 = vmatpush.msra.mxu0 %v1238
        %2563 = vmatpush.msra.mxu0 %v1237
        %2564 = vmatpush.msra.mxu0 %v1236
        %2565 = vmatpush.msra.mxu0 %v1235
        %2566 = vmatpush.msra.mxu0 %v1234
        %2567 = vmatpush.msra.mxu0 %v1233
        %2568 = vmatpush.msra.mxu0 %v1232
        %2569 = vmatpush.msra.mxu0 %v1231
        %2570 = vmatpush.msra.mxu0 %v1230
        %2571 = vmatpush.msra.mxu0 %v1229
        %2572 = vmatpush.msra.mxu0 %v1228
        %2573 = vmatpush.msra.mxu0 %v1227
        %2574 = vmatpush.msra.mxu0 %v1226
        %2575 = vmatpush.msra.mxu0 %v1225
        %2576 = vmatpush.msra.mxu0 %v1224
        %2577 = vmatmul.f32.gmra.mxu0 %v1705
        %v2578 = vpop.f32.mrf.mxu0
        %v2579 = vadd.f32 %v2559, %v2578
        %2580 = vdwg.mxu0
        %2581 = vmatpush.msra.mxu0 %v1255
        %2582 = vmatpush.msra.mxu0 %v1254
        %2583 = vmatpush.msra.mxu0 %v1253
        %2584 = vmatpush.msra.mxu0 %v1252
        %2585 = vmatpush.msra.mxu0 %v1251
        %2586 = vmatpush.msra.mxu0 %v1250
        %2587 = vmatpush.msra.mxu0 %v1249
        %2588 = vmatpush.msra.mxu0 %v1248
        %2589 = vmatpush.msra.mxu0 %v1247
        %2590 = vmatpush.msra.mxu0 %v1246
        %2591 = vmatpush.msra.mxu0 %v1245
        %2592 = vmatpush.msra.mxu0 %v1244
        %2593 = vmatpush.msra.mxu0 %v1243
        %2594 = vmatpush.msra.mxu0 %v1242
        %2595 = vmatpush.msra.mxu0 %v1241
        %2596 = vmatpush.msra.mxu0 %v1240
        %2597 = vmatmul.f32.gmra.mxu0 %v1706
        %v2598 = vpop.f32.mrf.mxu0
        %v2599 = vadd.f32 %v2579, %v2598
        %2600 = vdwg.mxu0
        %2601 = vmatpush.msra.mxu0 %v1271
        %2602 = vmatpush.msra.mxu0 %v1270
        %2603 = vmatpush.msra.mxu0 %v1269
        %2604 = vmatpush.msra.mxu0 %v1268
        %2605 = vmatpush.msra.mxu0 %v1267
        %2606 = vmatpush.msra.mxu0 %v1266
        %2607 = vmatpush.msra.mxu0 %v1265
        %2608 = vmatpush.msra.mxu0 %v1264
        %2609 = vmatpush.msra.mxu0 %v1263
        %2610 = vmatpush.msra.mxu0 %v1262
        %2611 = vmatpush.msra.mxu0 %v1261
        %2612 = vmatpush.msra.mxu0 %v1260
        %2613 = vmatpush.msra.mxu0 %v1259
        %2614 = vmatpush.msra.mxu0 %v1258
        %2615 = vmatpush.msra.mxu0 %v1257
        %2616 = vmatpush.msra.mxu0 %v1256
        %2617 = vmatmul.f32.gmra.mxu0 %v1709
        %v2618 = vpop.f32.mrf.mxu0
        %v2619 = vadd.f32 %v2599, %v2618
        %2620 = vdwg.mxu0
        %2621 = vmatpush.msra.mxu0 %v1287
        %2622 = vmatpush.msra.mxu0 %v1286
        %2623 = vmatpush.msra.mxu0 %v1285
        %2624 = vmatpush.msra.mxu0 %v1284
        %2625 = vmatpush.msra.mxu0 %v1283
        %2626 = vmatpush.msra.mxu0 %v1282
        %2627 = vmatpush.msra.mxu0 %v1281
        %2628 = vmatpush.msra.mxu0 %v1280
        %2629 = vmatpush.msra.mxu0 %v1279
        %2630 = vmatpush.msra.mxu0 %v1278
        %2631 = vmatpush.msra.mxu0 %v1277
        %2632 = vmatpush.msra.mxu0 %v1276
        %2633 = vmatpush.msra.mxu0 %v1275
        %2634 = vmatpush.msra.mxu0 %v1274
        %2635 = vmatpush.msra.mxu0 %v1273
        %2636 = vmatpush.msra.mxu0 %v1272
        %2637 = vmatmul.f32.gmra.mxu0 %v1710
        %v2638 = vpop.f32.mrf.mxu0
        %v2639 = vadd.f32 %v2619, %v2638
        %2640 = vdwg.mxu0
        %2641 = vmatpush.msra.mxu0 %v1303
        %2642 = vmatpush.msra.mxu0 %v1302
        %2643 = vmatpush.msra.mxu0 %v1301
        %2644 = vmatpush.msra.mxu0 %v1300
        %2645 = vmatpush.msra.mxu0 %v1299
        %2646 = vmatpush.msra.mxu0 %v1298
        %2647 = vmatpush.msra.mxu0 %v1297
        %2648 = vmatpush.msra.mxu0 %v1296
        %2649 = vmatpush.msra.mxu0 %v1295
        %2650 = vmatpush.msra.mxu0 %v1294
        %2651 = vmatpush.msra.mxu0 %v1293
        %2652 = vmatpush.msra.mxu0 %v1292
        %2653 = vmatpush.msra.mxu0 %v1291
        %2654 = vmatpush.msra.mxu0 %v1290
        %2655 = vmatpush.msra.mxu0 %v1289
        %2656 = vmatpush.msra.mxu0 %v1288
        %2657 = vmatmul.f32.gmra.mxu0 %v1711
        %v2658 = vpop.f32.mrf.mxu0
        %v2659 = vadd.f32 %v2639, %v2658
        %2660 = vdwg.mxu0
        %2661 = vmatpush.msra.mxu0 %v1319
        %2662 = vmatpush.msra.mxu0 %v1318
        %2663 = vmatpush.msra.mxu0 %v1317
        %2664 = vmatpush.msra.mxu0 %v1316
        %2665 = vmatpush.msra.mxu0 %v1315
        %2666 = vmatpush.msra.mxu0 %v1314
        %2667 = vmatpush.msra.mxu0 %v1313
        %2668 = vmatpush.msra.mxu0 %v1312
        %2669 = vmatpush.msra.mxu0 %v1311
        %2670 = vmatpush.msra.mxu0 %v1310
        %2671 = vmatpush.msra.mxu0 %v1309
        %2672 = vmatpush.msra.mxu0 %v1308
        %2673 = vmatpush.msra.mxu0 %v1307
        %2674 = vmatpush.msra.mxu0 %v1306
        %2675 = vmatpush.msra.mxu0 %v1305
        %2676 = vmatpush.msra.mxu0 %v1304
        %2677 = vmatmul.f32.gmra.mxu0 %v1712
        %v2678 = vpop.f32.mrf.mxu0
        %v2679 = vadd.f32 %v2659, %v2678
        %2680 = vdwg.mxu0
        %2681 = vmatpush.msra.mxu0 %v1335
        %2682 = vmatpush.msra.mxu0 %v1334
        %2683 = vmatpush.msra.mxu0 %v1333
        %2684 = vmatpush.msra.mxu0 %v1332
        %2685 = vmatpush.msra.mxu0 %v1331
        %2686 = vmatpush.msra.mxu0 %v1330
        %2687 = vmatpush.msra.mxu0 %v1329
        %2688 = vmatpush.msra.mxu0 %v1328
        %2689 = vmatpush.msra.mxu0 %v1327
        %2690 = vmatpush.msra.mxu0 %v1326
        %2691 = vmatpush.msra.mxu0 %v1325
        %2692 = vmatpush.msra.mxu0 %v1324
        %2693 = vmatpush.msra.mxu0 %v1323
        %2694 = vmatpush.msra.mxu0 %v1322
        %2695 = vmatpush.msra.mxu0 %v1321
        %2696 = vmatpush.msra.mxu0 %v1320
        %2697 = vmatmul.f32.gmra.mxu0 %v1713
        %v2698 = vpop.f32.mrf.mxu0
        %v2699 = vadd.f32 %v2679, %v2698
        %2700 = vdwg.mxu0
        %2701 = vmatpush.msra.mxu0 %v1351
        %2702 = vmatpush.msra.mxu0 %v1350
        %2703 = vmatpush.msra.mxu0 %v1349
        %2704 = vmatpush.msra.mxu0 %v1348
        %2705 = vmatpush.msra.mxu0 %v1347
        %2706 = vmatpush.msra.mxu0 %v1346
        %2707 = vmatpush.msra.mxu0 %v1345
        %2708 = vmatpush.msra.mxu0 %v1344
        %2709 = vmatpush.msra.mxu0 %v1343
        %2710 = vmatpush.msra.mxu0 %v1342
        %2711 = vmatpush.msra.mxu0 %v1341
        %2712 = vmatpush.msra.mxu0 %v1340
        %2713 = vmatpush.msra.mxu0 %v1339
        %2714 = vmatpush.msra.mxu0 %v1338
        %2715 = vmatpush.msra.mxu0 %v1337
        %2716 = vmatpush.msra.mxu0 %v1336
        %2717 = vmatmul.f32.gmra.mxu0 %v1714
        %v2718 = vpop.f32.mrf.mxu0
        %v2719 = vadd.f32 %v2699, %v2718
        %2720 = vdwg.mxu0
        %2721 = vmatpush.msra.mxu0 %v1367
        %2722 = vmatpush.msra.mxu0 %v1366
        %2723 = vmatpush.msra.mxu0 %v1365
        %2724 = vmatpush.msra.mxu0 %v1364
        %2725 = vmatpush.msra.mxu0 %v1363
        %2726 = vmatpush.msra.mxu0 %v1362
        %2727 = vmatpush.msra.mxu0 %v1361
        %2728 = vmatpush.msra.mxu0 %v1360
        %2729 = vmatpush.msra.mxu0 %v1359
        %2730 = vmatpush.msra.mxu0 %v1358
        %2731 = vmatpush.msra.mxu0 %v1357
        %2732 = vmatpush.msra.mxu0 %v1356
        %2733 = vmatpush.msra.mxu0 %v1355
        %2734 = vmatpush.msra.mxu0 %v1354
        %2735 = vmatpush.msra.mxu0 %v1353
        %2736 = vmatpush.msra.mxu0 %v1352
        %2737 = vmatmul.f32.gmra.mxu0 %v1715
        %v2738 = vpop.f32.mrf.mxu0
        %v2739 = vadd.f32 %v2719, %v2738
        %2740 = vdwg.mxu0
        %2741 = vmatpush.msra.mxu0 %v1383
        %2742 = vmatpush.msra.mxu0 %v1382
        %2743 = vmatpush.msra.mxu0 %v1381
        %2744 = vmatpush.msra.mxu0 %v1380
        %2745 = vmatpush.msra.mxu0 %v1379
        %2746 = vmatpush.msra.mxu0 %v1378
        %2747 = vmatpush.msra.mxu0 %v1377
        %2748 = vmatpush.msra.mxu0 %v1376
        %2749 = vmatpush.msra.mxu0 %v1375
        %2750 = vmatpush.msra.mxu0 %v1374
        %2751 = vmatpush.msra.mxu0 %v1373
        %2752 = vmatpush.msra.mxu0 %v1372
        %2753 = vmatpush.msra.mxu0 %v1371
        %2754 = vmatpush.msra.mxu0 %v1370
        %2755 = vmatpush.msra.mxu0 %v1369
        %2756 = vmatpush.msra.mxu0 %v1368
        %2757 = vmatmul.f32.gmra.mxu0 %v1716
        %v2758 = vpop.f32.mrf.mxu0
        %v2759 = vadd.f32 %v2739, %v2758
        %2760 = vdwg.mxu0
        %2761 = vmatpush.msra.mxu0 %v1399
        %2762 = vmatpush.msra.mxu0 %v1398
        %2763 = vmatpush.msra.mxu0 %v1397
        %2764 = vmatpush.msra.mxu0 %v1396
        %2765 = vmatpush.msra.mxu0 %v1395
        %2766 = vmatpush.msra.mxu0 %v1394
        %2767 = vmatpush.msra.mxu0 %v1393
        %2768 = vmatpush.msra.mxu0 %v1392
        %2769 = vmatpush.msra.mxu0 %v1391
        %2770 = vmatpush.msra.mxu0 %v1390
        %2771 = vmatpush.msra.mxu0 %v1389
        %2772 = vmatpush.msra.mxu0 %v1388
        %2773 = vmatpush.msra.mxu0 %v1387
        %2774 = vmatpush.msra.mxu0 %v1386
        %2775 = vmatpush.msra.mxu0 %v1385
        %2776 = vmatpush.msra.mxu0 %v1384
        %2777 = vmatmul.f32.gmra.mxu0 %v1719
        %v2778 = vpop.f32.mrf.mxu0
        %v2779 = vadd.f32 %v2759, %v2778
        %2780 = vdwg.mxu0
        %2781 = vmatpush.msra.mxu0 %v1415
        %2782 = vmatpush.msra.mxu0 %v1414
        %2783 = vmatpush.msra.mxu0 %v1413
        %2784 = vmatpush.msra.mxu0 %v1412
        %2785 = vmatpush.msra.mxu0 %v1411
        %2786 = vmatpush.msra.mxu0 %v1410
        %2787 = vmatpush.msra.mxu0 %v1409
        %2788 = vmatpush.msra.mxu0 %v1408
        %2789 = vmatpush.msra.mxu0 %v1407
        %2790 = vmatpush.msra.mxu0 %v1406
        %2791 = vmatpush.msra.mxu0 %v1405
        %2792 = vmatpush.msra.mxu0 %v1404
        %2793 = vmatpush.msra.mxu0 %v1403
        %2794 = vmatpush.msra.mxu0 %v1402
        %2795 = vmatpush.msra.mxu0 %v1401
        %2796 = vmatpush.msra.mxu0 %v1400
        %2797 = vmatmul.f32.gmra.mxu0 %v1720
        %v2798 = vpop.f32.mrf.mxu0
        %v2799 = vadd.f32 %v2779, %v2798
        %2800 = vdwg.mxu0
        %2801 = vmatpush.msra.mxu0 %v1431
        %2802 = vmatpush.msra.mxu0 %v1430
        %2803 = vmatpush.msra.mxu0 %v1429
        %2804 = vmatpush.msra.mxu0 %v1428
        %2805 = vmatpush.msra.mxu0 %v1427
        %2806 = vmatpush.msra.mxu0 %v1426
        %2807 = vmatpush.msra.mxu0 %v1425
        %2808 = vmatpush.msra.mxu0 %v1424
        %2809 = vmatpush.msra.mxu0 %v1423
        %2810 = vmatpush.msra.mxu0 %v1422
        %2811 = vmatpush.msra.mxu0 %v1421
        %2812 = vmatpush.msra.mxu0 %v1420
        %2813 = vmatpush.msra.mxu0 %v1419
        %2814 = vmatpush.msra.mxu0 %v1418
        %2815 = vmatpush.msra.mxu0 %v1417
        %2816 = vmatpush.msra.mxu0 %v1416
        %2817 = vmatmul.f32.gmra.mxu0 %v1721
        %v2818 = vpop.f32.mrf.mxu0
        %v2819 = vadd.f32 %v2799, %v2818
        %2820 = vdwg.mxu0
        %2821 = vmatpush.msra.mxu0 %v1447
        %2822 = vmatpush.msra.mxu0 %v1446
        %2823 = vmatpush.msra.mxu0 %v1445
        %2824 = vmatpush.msra.mxu0 %v1444
        %2825 = vmatpush.msra.mxu0 %v1443
        %2826 = vmatpush.msra.mxu0 %v1442
        %2827 = vmatpush.msra.mxu0 %v1441
        %2828 = vmatpush.msra.mxu0 %v1440
        %2829 = vmatpush.msra.mxu0 %v1439
        %2830 = vmatpush.msra.mxu0 %v1438
        %2831 = vmatpush.msra.mxu0 %v1437
        %2832 = vmatpush.msra.mxu0 %v1436
        %2833 = vmatpush.msra.mxu0 %v1435
        %2834 = vmatpush.msra.mxu0 %v1434
        %2835 = vmatpush.msra.mxu0 %v1433
        %2836 = vmatpush.msra.mxu0 %v1432
        %2837 = vmatmul.f32.gmra.mxu0 %v1722
        %v2838 = vpop.f32.mrf.mxu0
        %v2839 = vadd.f32 %v2819, %v2838
        %2840 = vdwg.mxu0
        %2841 = vmatpush.msra.mxu0 %v1463
        %2842 = vmatpush.msra.mxu0 %v1462
        %2843 = vmatpush.msra.mxu0 %v1461
        %2844 = vmatpush.msra.mxu0 %v1460
        %2845 = vmatpush.msra.mxu0 %v1459
        %2846 = vmatpush.msra.mxu0 %v1458
        %2847 = vmatpush.msra.mxu0 %v1457
        %2848 = vmatpush.msra.mxu0 %v1456
        %2849 = vmatpush.msra.mxu0 %v1455
        %2850 = vmatpush.msra.mxu0 %v1454
        %2851 = vmatpush.msra.mxu0 %v1453
        %2852 = vmatpush.msra.mxu0 %v1452
        %2853 = vmatpush.msra.mxu0 %v1451
        %2854 = vmatpush.msra.mxu0 %v1450
        %2855 = vmatpush.msra.mxu0 %v1449
        %2856 = vmatpush.msra.mxu0 %v1448
        %2857 = vmatmul.f32.gmra.mxu0 %v1723
        %v2858 = vpop.f32.mrf.mxu0
        %v2859 = vadd.f32 %v2839, %v2858
        %2860 = vdwg.mxu0
        %2861 = vmatpush.msra.mxu0 %v1479
        %2862 = vmatpush.msra.mxu0 %v1478
        %2863 = vmatpush.msra.mxu0 %v1477
        %2864 = vmatpush.msra.mxu0 %v1476
        %2865 = vmatpush.msra.mxu0 %v1475
        %2866 = vmatpush.msra.mxu0 %v1474
        %2867 = vmatpush.msra.mxu0 %v1473
        %2868 = vmatpush.msra.mxu0 %v1472
        %2869 = vmatpush.msra.mxu0 %v1471
        %2870 = vmatpush.msra.mxu0 %v1470
        %2871 = vmatpush.msra.mxu0 %v1469
        %2872 = vmatpush.msra.mxu0 %v1468
        %2873 = vmatpush.msra.mxu0 %v1467
        %2874 = vmatpush.msra.mxu0 %v1466
        %2875 = vmatpush.msra.mxu0 %v1465
        %2876 = vmatpush.msra.mxu0 %v1464
        %2877 = vmatmul.f32.gmra.mxu0 %v1724
        %v2878 = vpop.f32.mrf.mxu0
        %v2879 = vadd.f32 %v2859, %v2878
        %2880 = vdwg.mxu0
        %2881 = vmatpush.msra.mxu0 %v1495
        %2882 = vmatpush.msra.mxu0 %v1494
        %2883 = vmatpush.msra.mxu0 %v1493
        %2884 = vmatpush.msra.mxu0 %v1492
        %2885 = vmatpush.msra.mxu0 %v1491
        %2886 = vmatpush.msra.mxu0 %v1490
        %2887 = vmatpush.msra.mxu0 %v1489
        %2888 = vmatpush.msra.mxu0 %v1488
        %2889 = vmatpush.msra.mxu0 %v1487
        %2890 = vmatpush.msra.mxu0 %v1486
        %2891 = vmatpush.msra.mxu0 %v1485
        %2892 = vmatpush.msra.mxu0 %v1484
        %2893 = vmatpush.msra.mxu0 %v1483
        %2894 = vmatpush.msra.mxu0 %v1482
        %2895 = vmatpush.msra.mxu0 %v1481
        %2896 = vmatpush.msra.mxu0 %v1480
        %2897 = vmatmul.f32.gmra.mxu0 %v1725
        %v2898 = vpop.f32.mrf.mxu0
        %v2899 = vadd.f32 %v2879, %v2898
        %2900 = vdwg.mxu0
        %2901 = vmatpush.msra.mxu0 %v1511
        %2902 = vmatpush.msra.mxu0 %v1510
        %2903 = vmatpush.msra.mxu0 %v1509
        %2904 = vmatpush.msra.mxu0 %v1508
        %2905 = vmatpush.msra.mxu0 %v1507
        %2906 = vmatpush.msra.mxu0 %v1506
        %2907 = vmatpush.msra.mxu0 %v1505
        %2908 = vmatpush.msra.mxu0 %v1504
        %2909 = vmatpush.msra.mxu0 %v1503
        %2910 = vmatpush.msra.mxu0 %v1502
        %2911 = vmatpush.msra.mxu0 %v1501
        %2912 = vmatpush.msra.mxu0 %v1500
        %2913 = vmatpush.msra.mxu0 %v1499
        %2914 = vmatpush.msra.mxu0 %v1498
        %2915 = vmatpush.msra.mxu0 %v1497
        %2916 = vmatpush.msra.mxu0 %v1496
        %2917 = vmatmul.f32.gmra.mxu0 %v1726
        %v2918 = vpop.f32.mrf.mxu0
        %v2919 = vadd.f32 %v2899, %v2918
        %2920 = vdwg.mxu0
        %2921 = vmatpush.msra.mxu0 %v1527
        %2922 = vmatpush.msra.mxu0 %v1526
        %2923 = vmatpush.msra.mxu0 %v1525
        %2924 = vmatpush.msra.mxu0 %v1524
        %2925 = vmatpush.msra.mxu0 %v1523
        %2926 = vmatpush.msra.mxu0 %v1522
        %2927 = vmatpush.msra.mxu0 %v1521
        %2928 = vmatpush.msra.mxu0 %v1520
        %2929 = vmatpush.msra.mxu0 %v1519
        %2930 = vmatpush.msra.mxu0 %v1518
        %2931 = vmatpush.msra.mxu0 %v1517
        %2932 = vmatpush.msra.mxu0 %v1516
        %2933 = vmatpush.msra.mxu0 %v1515
        %2934 = vmatpush.msra.mxu0 %v1514
        %2935 = vmatpush.msra.mxu0 %v1513
        %2936 = vmatpush.msra.mxu0 %v1512
        %2937 = vmatmul.f32.gmra.mxu0 %v1729
        %v2938 = vpop.f32.mrf.mxu0
        %v2939 = vadd.f32 %v2919, %v2938
        %2940 = vdwg.mxu0
        %2941 = vmatpush.msra.mxu0 %v1543
        %2942 = vmatpush.msra.mxu0 %v1542
        %2943 = vmatpush.msra.mxu0 %v1541
        %2944 = vmatpush.msra.mxu0 %v1540
        %2945 = vmatpush.msra.mxu0 %v1539
        %2946 = vmatpush.msra.mxu0 %v1538
        %2947 = vmatpush.msra.mxu0 %v1537
        %2948 = vmatpush.msra.mxu0 %v1536
        %2949 = vmatpush.msra.mxu0 %v1535
        %2950 = vmatpush.msra.mxu0 %v1534
        %2951 = vmatpush.msra.mxu0 %v1533
        %2952 = vmatpush.msra.mxu0 %v1532
        %2953 = vmatpush.msra.mxu0 %v1531
        %2954 = vmatpush.msra.mxu0 %v1530
        %2955 = vmatpush.msra.mxu0 %v1529
        %2956 = vmatpush.msra.mxu0 %v1528
        %2957 = vmatmul.f32.gmra.mxu0 %v1730
        %v2958 = vpop.f32.mrf.mxu0
        %v2959 = vadd.f32 %v2939, %v2958
        %2960 = vdwg.mxu0
        %2961 = vmatpush.msra.mxu0 %v1559
        %2962 = vmatpush.msra.mxu0 %v1558
        %2963 = vmatpush.msra.mxu0 %v1557
        %2964 = vmatpush.msra.mxu0 %v1556
        %2965 = vmatpush.msra.mxu0 %v1555
        %2966 = vmatpush.msra.mxu0 %v1554
        %2967 = vmatpush.msra.mxu0 %v1553
        %2968 = vmatpush.msra.mxu0 %v1552
        %2969 = vmatpush.msra.mxu0 %v1551
        %2970 = vmatpush.msra.mxu0 %v1550
        %2971 = vmatpush.msra.mxu0 %v1549
        %2972 = vmatpush.msra.mxu0 %v1548
        %2973 = vmatpush.msra.mxu0 %v1547
        %2974 = vmatpush.msra.mxu0 %v1546
        %2975 = vmatpush.msra.mxu0 %v1545
        %2976 = vmatpush.msra.mxu0 %v1544
        %2977 = vmatmul.f32.gmra.mxu0 %v1731
        %v2978 = vpop.f32.mrf.mxu0
        %v2979 = vadd.f32 %v2959, %v2978
        %2980 = vdwg.mxu0
        %2981 = vmatpush.msra.mxu0 %v1575
        %2982 = vmatpush.msra.mxu0 %v1574
        %2983 = vmatpush.msra.mxu0 %v1573
        %2984 = vmatpush.msra.mxu0 %v1572
        %2985 = vmatpush.msra.mxu0 %v1571
        %2986 = vmatpush.msra.mxu0 %v1570
        %2987 = vmatpush.msra.mxu0 %v1569
        %2988 = vmatpush.msra.mxu0 %v1568
        %2989 = vmatpush.msra.mxu0 %v1567
        %2990 = vmatpush.msra.mxu0 %v1566
        %2991 = vmatpush.msra.mxu0 %v1565
        %2992 = vmatpush.msra.mxu0 %v1564
        %2993 = vmatpush.msra.mxu0 %v1563
        %2994 = vmatpush.msra.mxu0 %v1562
        %2995 = vmatpush.msra.mxu0 %v1561
        %2996 = vmatpush.msra.mxu0 %v1560
        %2997 = vmatmul.f32.gmra.mxu0 %v1732
        %v2998 = vpop.f32.mrf.mxu0
        %v2999 = vadd.f32 %v2979, %v2998
        %3000 = vdwg.mxu0
        %3001 = vmatpush.msra.mxu0 %v1591
        %3002 = vmatpush.msra.mxu0 %v1590
        %3003 = vmatpush.msra.mxu0 %v1589
        %3004 = vmatpush.msra.mxu0 %v1588
        %3005 = vmatpush.msra.mxu0 %v1587
        %3006 = vmatpush.msra.mxu0 %v1586
        %3007 = vmatpush.msra.mxu0 %v1585
        %3008 = vmatpush.msra.mxu0 %v1584
        %3009 = vmatpush.msra.mxu0 %v1583
        %3010 = vmatpush.msra.mxu0 %v1582
        %3011 = vmatpush.msra.mxu0 %v1581
        %3012 = vmatpush.msra.mxu0 %v1580
        %3013 = vmatpush.msra.mxu0 %v1579
        %3014 = vmatpush.msra.mxu0 %v1578
        %3015 = vmatpush.msra.mxu0 %v1577
        %3016 = vmatpush.msra.mxu0 %v1576
        %3017 = vmatmul.f32.gmra.mxu0 %v1733
        %v3018 = vpop.f32.mrf.mxu0
        %v3019 = vadd.f32 %v2999, %v3018
        %3020 = vdwg.mxu0
        %3021 = vmatpush.msra.mxu0 %v1607
        %3022 = vmatpush.msra.mxu0 %v1606
        %3023 = vmatpush.msra.mxu0 %v1605
        %3024 = vmatpush.msra.mxu0 %v1604
        %3025 = vmatpush.msra.mxu0 %v1603
        %3026 = vmatpush.msra.mxu0 %v1602
        %3027 = vmatpush.msra.mxu0 %v1601
        %3028 = vmatpush.msra.mxu0 %v1600
        %3029 = vmatpush.msra.mxu0 %v1599
        %3030 = vmatpush.msra.mxu0 %v1598
        %3031 = vmatpush.msra.mxu0 %v1597
        %3032 = vmatpush.msra.mxu0 %v1596
        %3033 = vmatpush.msra.mxu0 %v1595
        %3034 = vmatpush.msra.mxu0 %v1594
        %3035 = vmatpush.msra.mxu0 %v1593
        %3036 = vmatpush.msra.mxu0 %v1592
        %3037 = vmatmul.f32.gmra.mxu0 %v1734
        %v3038 = vpop.f32.mrf.mxu0
        %v3039 = vadd.f32 %v3019, %v3038
        %3040 = vdwg.mxu0
        %3041 = vmatpush.msra.mxu0 %v1623
        %3042 = vmatpush.msra.mxu0 %v1622
        %3043 = vmatpush.msra.mxu0 %v1621
        %3044 = vmatpush.msra.mxu0 %v1620
        %3045 = vmatpush.msra.mxu0 %v1619
        %3046 = vmatpush.msra.mxu0 %v1618
        %3047 = vmatpush.msra.mxu0 %v1617
        %3048 = vmatpush.msra.mxu0 %v1616
        %3049 = vmatpush.msra.mxu0 %v1615
        %3050 = vmatpush.msra.mxu0 %v1614
        %3051 = vmatpush.msra.mxu0 %v1613
        %3052 = vmatpush.msra.mxu0 %v1612
        %3053 = vmatpush.msra.mxu0 %v1611
        %3054 = vmatpush.msra.mxu0 %v1610
        %3055 = vmatpush.msra.mxu0 %v1609
        %3056 = vmatpush.msra.mxu0 %v1608
        %3057 = vmatmul.f32.gmra.mxu0 %v1735
        %v3058 = vpop.f32.mrf.mxu0
        %v3059 = vadd.f32 %v3039, %v3058
        %3060 = vdwg.mxu0
        %3061 = vmatpush.msra.mxu0 %v1639
        %3062 = vmatpush.msra.mxu0 %v1638
        %3063 = vmatpush.msra.mxu0 %v1637
        %3064 = vmatpush.msra.mxu0 %v1636
        %3065 = vmatpush.msra.mxu0 %v1635
        %3066 = vmatpush.msra.mxu0 %v1634
        %3067 = vmatpush.msra.mxu0 %v1633
        %3068 = vmatpush.msra.mxu0 %v1632
        %3069 = vmatpush.msra.mxu0 %v1631
        %3070 = vmatpush.msra.mxu0 %v1630
        %3071 = vmatpush.msra.mxu0 %v1629
        %3072 = vmatpush.msra.mxu0 %v1628
        %3073 = vmatpush.msra.mxu0 %v1627
        %3074 = vmatpush.msra.mxu0 %v1626
        %3075 = vmatpush.msra.mxu0 %v1625
        %3076 = vmatpush.msra.mxu0 %v1624
        %3077 = vmatmul.f32.gmra.mxu0 %v1736
        %v3078 = vpop.f32.mrf.mxu0
        %v3079 = vadd.f32 %v3059, %v3078
        %3080 = vdwg.mxu0
        %p3081 = scmp.eq.s32.totalorder %s22, 0
        // Predicated region
        $region107: #{model_forward.1} parent=81 // pred_check
          %p3082 = pneg %p3081
        $region108: #{model_forward.1} parent=81 // pred_check_branch
          %3084 = sbr.rel (%p3082) target = $region110
        $region109: #{model_forward.1} parent=81 // pred_region
          %3085 = vst [vmem:[#allocation2] sm:$0x3] %v3079
        $region110: #{model_forward.1} parent=81 // pred_fallthru
          _
        %p3086 = scmp.gt.s32.totalorder %s22, 0
        // Predicated region
        $region111: #{model_forward.1} parent=81 // pred_check
          %p3087 = pneg %p3086
        $region112: #{model_forward.1} parent=81 // pred_check_branch
          %3089 = sbr.rel (%p3087) target = $region114
        $region113: #{model_forward.1} parent=81 // pred_region
          %v3090 = vld [vmem:[#allocation2] sm:$0x3]
          %v3091 = vadd.f32 %v3090, %v3079
          %3092 = vst [vmem:[#allocation2] sm:$0x3] %v3091
        $region114: #{model_forward.1} parent=81 // pred_fallthru
          _
        %p3093 = scmp.eq.s32.totalorder %s22, 3
        // Predicated region
        $region115: #{model_forward.1} parent=81 // pred_check
          %p3094 = pneg %p3093
        $region116: #{model_forward.1} parent=81 // pred_check_branch
          %3096 = sbr.rel (%p3094) target = $region118
        $region117: #{model_forward.1} parent=81 // pred_region
          %v3097 = vld [vmem:[#allocation2] sm:$0x3]
          %v3098 = vld [vmem:[#allocation10] sm:$0x1]
          %v3100 = vperm.slane %v3098, 0
          %v3102 = vadd.f32 %v3097, %v3100
          %v3103 = vmax.f32 %v3102, 0.0
          %v3104 = vld [vmem:[%s5] sm:$0xff]
          %v3105 = vld [vmem:[%s5 + $0x8] sm:$0xff]
          %v3106 = vld [vmem:[%s5 + $0x10] sm:$0xff]
          %v3107 = vld [vmem:[%s5 + $0x18] sm:$0xff]
          %v3108 = vld [vmem:[%s5 + $0x20] sm:$0xff]
          %v3109 = vld [vmem:[%s5 + $0x28] sm:$0xff]
          %v3110 = vld [vmem:[%s5 + $0x30] sm:$0xff]
          %v3111 = vld [vmem:[%s5 + $0x38] sm:$0xff]
          %v3112 = vld [vmem:[%s5 + $0x40] sm:$0xff]
          %v3113 = vld [vmem:[%s5 + $0x48] sm:$0xff]
          %v3114 = vld [vmem:[%s5 + $0x50] sm:$0xff]
          %v3115 = vld [vmem:[%s5 + $0x58] sm:$0xff]
          %v3116 = vld [vmem:[%s5 + $0x60] sm:$0xff]
          %v3117 = vld [vmem:[%s5 + $0x68] sm:$0xff]
          %v3118 = vld [vmem:[%s5 + $0x70] sm:$0xff]
          %v3119 = vld [vmem:[%s5 + $0x78] sm:$0xff]
          %v3120 = vld [vmem:[#allocation11] sm:$0x1]
          %v3122 = vperm.slane %v3120, 0
          %3124 = vmatpush.msra.mxu0 %v3119
          %3125 = vmatpush.msra.mxu0 %v3118
          %3126 = vmatpush.msra.mxu0 %v3117
          %3127 = vmatpush.msra.mxu0 %v3116
          %3128 = vmatpush.msra.mxu0 %v3115
          %3129 = vmatpush.msra.mxu0 %v3114
          %3130 = vmatpush.msra.mxu0 %v3113
          %3131 = vmatpush.msra.mxu0 %v3112
          %3132 = vmatpush.msra.mxu0 %v3111
          %3133 = vmatpush.msra.mxu0 %v3110
          %3134 = vmatpush.msra.mxu0 %v3109
          %3135 = vmatpush.msra.mxu0 %v3108
          %3136 = vmatpush.msra.mxu0 %v3107
          %3137 = vmatpush.msra.mxu0 %v3106
          %3138 = vmatpush.msra.mxu0 %v3105
          %3139 = vmatpush.msra.mxu0 %v3104
          %3140 = vmatmul.f32.gmra.mxu0 %v3103
          %v3141 = vpop.f32.mrf.mxu0
          %v3142 = vadd.f32 %v3122, %v3141
          %3143 = vdwg.mxu0
          %vm3144 = vcmask 74752
          %3145 = vst.msk [vmem:[#allocation13] sm:$0x3] %vm3144, %v3142
        $region118: #{model_forward.1} parent=81 // pred_fallthru
          _
        // Predicated region
        $region119: #{model_forward.1} parent=81 // pred_check
          %p3146 = pneg %p192
        $region120: #{model_forward.1} parent=81 // pred_check_branch
          %3148 = sbr.rel (%p3146) target = $region122
        $region121: #{model_forward.1} parent=81 // pred_region
          %3150 = vsyncadd [#allocation6], 0
          %s3152 = sshll.u32 [#allocation13], 4
          %s3153 = int_to_ptr.vmem [resolvable:$true] %s3152
          %s3154 = sshll.u32 %s7, 4
          %s3155 = int_to_ptr.hbm [resolvable:$true] %s3154
          %3157 = dma.vmem_to_hbm [thread:$0]  %s3153, 32, %s3155, [#allocation6]
        $region122: #{model_forward.1} parent=81 // pred_fallthru
          _
        // Predicated region
        $region123: #{model_forward.1} parent=81 // pred_check
          %p3158 = pneg %p192
        $region124: #{model_forward.1} parent=81 // pred_check_branch
          %3160 = sbr.rel (%p3158) target = $region126
        $region125: #{model_forward.1} parent=81 // pred_region
          %3162 = dma.done [#allocation6], 32
        $region126: #{model_forward.1} parent=81 // pred_fallthru
          _
      $region82: #{model_forward.1} parent=5 // pred_fallthru
        _
      %p3163 = scmp.le.s32.totalorder 2, %s17
      // Predicated region
      $region127: #{model_forward.1} parent=5 // pred_check
        %p3164 = pneg %p3163
      $region128: #{model_forward.1} parent=5 // pred_check_branch
        %3166 = sbr.rel (%p3164) target = $region130
      $region129: #{model_forward.1} parent=5 // pred_region
        %s3167 = ssub.s32 %s17, 2
      $region130: #{model_forward.1} parent=5 // pred_fallthru
        _
    $region6: #{model_forward.1} parent=1 // loop_footer
      %s21 = sadd.s32 1, %s17
    $region7: #{model_forward.1} parent=1 // loop_footer_branch
      %16 = sbr.rel target = $region3
    $region8: #{model_forward.1} parent=1 // loop_exit
      _
    %3168 = vsyncpa [#allocation5], 1
    %s3169 = scalar_lea.sflag [#allocation5], 1
    %3170 = vsyncpa %s3169, 1
    %3171 = vsyncpa [#allocation8], 1
    %3172 = vsyncpa [#allocation12], 1
    %3173 = vsyncpa [#allocation6], 1
    %s3174 = scalar_lea.sflag [#allocation6], 1
    %3175 = vsyncpa %s3174, 1

</llo_original>
